<compile_context>
chip_gen: v7x
topology: tpu7x:2x2x1
jax: 0.10.0
libtpu: 0.0.40
codegen_flags: <defaults>
</compile_context>

<pallas_src>
import math
from functools import partial

import jax
import jax.numpy as jnp
from jax import lax
from jax.experimental import pallas as pl
from jax.experimental.pallas import tpu as pltpu


def msa_kernel(x_ref, wq_ref, wk_ref, wv_ref, bq_ref, bk_ref, bv_ref,
               wo_ref, bo_ref, o_ref, q_ref, k_ref, v_ref, acc_ref,
               *, num_heads, head_dim, tb, seq_len):
    L = seq_len
    D = num_heads * head_dim
    rows = tb * L

    # (TB, L, D) -> (TB*L, D); single bf16 cast feeds all three QKV MXU dots.
    x = x_ref[...].reshape(rows, D).astype(jnp.bfloat16)

    # QKV projections: bf16 operands, f32 accumulation, f32 bias add, stored as bf16 in
    # VMEM scratch so the per-head loop reads bounded-lifetime ref slices instead of
    # keeping three (rows, D) f32 SSA slabs live across the whole unrolled loop.
    # The 1/sqrt(d_model) attention scale is already folded into wq/bq by the wrapper.
    q_ref[...] = (jnp.dot(x, wq_ref[...], preferred_element_type=jnp.float32)
                  + bq_ref[0]).astype(jnp.bfloat16)
    k_ref[...] = (jnp.dot(x, wk_ref[...], preferred_element_type=jnp.float32)
                  + bk_ref[0]).astype(jnp.bfloat16)
    v_ref[...] = (jnp.dot(x, wv_ref[...], preferred_element_type=jnp.float32)
                  + bv_ref[0]).astype(jnp.bfloat16)

    # Per-head attention.  Each head contributes (p @ v_h) @ wo[h*hd:(h+1)*hd, :] straight
    # into the (rows, D) f32 accumulator: the hd-wide slice lands on wo's sublane axis and
    # the accumulator stores stay 128-lane dense (no masked vst into a heads slab).
    for h in range(num_heads):                              # static unroll (H small)
        c0 = h * head_dim
        wo_h = wo_ref[c0:c0 + head_dim, :]                  # (hd, D) bf16, loaded once/head
        for b in range(tb):                                 # static unroll (tb small)
            r0 = b * L
            qh = q_ref[r0:r0 + L, c0:c0 + head_dim]         # (L, hd) bf16, pre-scaled
            kh = k_ref[r0:r0 + L, c0:c0 + head_dim]
            vh = v_ref[r0:r0 + L, c0:c0 + head_dim]

            # scores = qh @ kh^T without an explicit transpose: contract last dims.
            s = lax.dot_general(qh, kh, (((1,), (1,)), ((), ())),
                                preferred_element_type=jnp.float32)       # (L, L) f32
            s = s - jnp.max(s, axis=-1, keepdims=True)
            p = jnp.exp(s)                                                # EUP, f32
            inv = pl.reciprocal(jnp.sum(p, axis=-1, keepdims=True), approx=True)

            # Unnormalized p @ v on the MXU (bf16 operands), normalize the narrow (L, hd)
            # result afterwards instead of the (L, L) probability matrix.
            hv = jnp.dot(p.astype(jnp.bfloat16), vh,
                         preferred_element_type=jnp.float32)              # (L, hd) f32
            hv = (hv * inv).astype(jnp.bfloat16)

            contrib = jnp.dot(hv, wo_h, preferred_element_type=jnp.float32)  # (L, D) f32
            if h == 0:
                acc_ref[r0:r0 + L, :] = contrib             # first head initializes
            else:
                acc_ref[r0:r0 + L, :] += contrib

    out = acc_ref[...] + bo_ref[0]
    o_ref[...] = out.reshape(tb, L, D).astype(o_ref.dtype)


def _choose_batch_tile(batch, seq_len, max_rows=512):
    """Largest divisor tb of `batch` such that:
       * the grid (batch // tb) keeps >= 2 steps (megacore split / DMA-compute overlap),
       * the flattened row slab tb*seq_len stays <= max_rows,
       * tb > 1 only when seq_len is 16-aligned (sublane-aligned row offsets for bf16)."""
    if batch <= 2:
        return 1
    best = 1
    for cand in range(1, batch + 1):
        if batch % cand:
            continue
        if batch // cand < 2:                 # keep at least 2 grid steps
            continue
        if cand > 1 and seq_len % 16:         # keep r0 = b*L sublane-aligned (bf16)
            continue
        if cand * seq_len > max_rows:
            continue
        best = cand
    return best


def msa_forward(x, params, num_heads):
    B, L, D = x.shape
    head_dim = D // num_heads
    tb = _choose_batch_tile(B, L)
    rows = tb * L
    grid = (B // tb,)

    w_qkv, b_qkv = params["w_qkv"], params["b_qkv"]      # (3D, D), (3D,)  (PyTorch layout)
    w_out, b_out = params["w_out"], params["b_out"]      # (D, D),  (D,)

    # PyTorch Linear: y = x @ W.T + b  -> pre-transpose to (in, out).
    # Reproduce reshape(..., H, 3*hd) + chunk: qkv output column h*3*hd + j belongs to head
    # h, with j in [0,hd) -> q, [hd,2hd) -> k, [2hd,3hd) -> v.
    W = w_qkv.T.reshape(D, num_heads, 3 * head_dim)
    # The module scales scores by 1/sqrt(d_model) (not head_dim); fold it into Q (free, one-time).
    scale = 1.0 / math.sqrt(D)
    wq = (W[:, :, :head_dim] * scale).reshape(D, D).astype(jnp.bfloat16)
    wk = W[:, :, head_dim:2 * head_dim].reshape(D, D).astype(jnp.bfloat16)
    wv = W[:, :, 2 * head_dim:].reshape(D, D).astype(jnp.bfloat16)
    br = b_qkv.reshape(num_heads, 3 * head_dim)
    bq = (br[:, :head_dim] * scale).reshape(1, D).astype(jnp.float32)    # biases stay f32
    bk = br[:, head_dim:2 * head_dim].reshape(1, D).astype(jnp.float32)
    bv = br[:, 2 * head_dim:].reshape(1, D).astype(jnp.float32)
    wo = w_out.T.astype(jnp.bfloat16)                                    # (D, D)
    bo = b_out.reshape(1, D).astype(jnp.float32)

    kernel = partial(msa_kernel, num_heads=num_heads, head_dim=head_dim,
                     tb=tb, seq_len=L)

    # VMEM budget: x/out blocks double-buffered, bf16 weights (ideally single-buffered),
    # bf16 q/k/v scratch + f32 accumulator, plus headroom for compiler temporaries.
    io_bytes = 2 * 2 * rows * D * x.dtype.itemsize                    # x + out, 2 buffers
    weight_bytes = 4 * D * D * 2 + 4 * 8 * D * 4                      # bf16 weights + padded f32 biases
    scratch_bytes = 3 * rows * D * 2 + rows * D * 4
    vmem_limit = int(1.5 * (io_bytes + 2 * weight_bytes + scratch_bytes)) + (4 << 20)
    vmem_limit = min(max(vmem_limit, 16 << 20), 64 << 20)

    def build(single_buffer_weights):
        def const2d(shape):
            # Constant-index weight/bias tiles: same block every grid step, so double
            # buffering only wastes VMEM (matters at ViT-Base on v5e/v7x).
            if single_buffer_weights:
                return pl.BlockSpec(shape, lambda b: (0, 0),
                                    pipeline_mode=pl.Buffered(1))
            return pl.BlockSpec(shape, lambda b: (0, 0))

        return pl.pallas_call(
            kernel,
            out_shape=jax.ShapeDtypeStruct((B, L, D), x.dtype),
            grid=grid,
            in_specs=[
                pl.BlockSpec((tb, L, D), lambda b: (b, 0, 0)),       # x: tb batch rows/step
                const2d((D, D)), const2d((D, D)), const2d((D, D)),   # wq, wk, wv (bf16)
                const2d((1, D)), const2d((1, D)), const2d((1, D)),   # bq, bk, bv (f32)
                const2d((D, D)), const2d((1, D)),                    # wo, bo
            ],
            out_specs=pl.BlockSpec((tb, L, D), lambda b: (b, 0, 0)),
            scratch_shapes=[pltpu.VMEM((rows, D), jnp.bfloat16),     # q slab
                            pltpu.VMEM((rows, D), jnp.bfloat16),     # k slab
                            pltpu.VMEM((rows, D), jnp.bfloat16),     # v slab
                            pltpu.VMEM((rows, D), jnp.float32)],     # output accumulator
            compiler_params=pltpu.CompilerParams(
                dimension_semantics=("parallel",),
                vmem_limit_bytes=vmem_limit),
        )

    args = (x, wq, wk, wv, bq, bk, bv, wo, bo)
    try:
        return build(True)(*args)
    except Exception:
        # Fallback if this jax/libtpu build rejects pipeline_mode=pl.Buffered(1) on a
        # pallas_call BlockSpec: identical kernel, default (double-buffered) weight tiles.
        return build(False)(*args)


def msa_reference(x, params, num_heads):
    """Pure-JAX replica of the PyTorch forward, for correctness checking."""
    B, L, D = x.shape
    hd = D // num_heads
    qkv = x @ params["w_qkv"].T + params["b_qkv"]                     # (B, L, 3D)
    qkv = qkv.reshape(B, L, num_heads, hd * 3).transpose(0, 2, 1, 3)  # (B, H, L, 3hd)
    q, k, v = jnp.split(qkv, 3, axis=-1)
    s = jnp.einsum("bhqd,bhkd->bhqk", q, k) / math.sqrt(D)
    p = jax.nn.softmax(s, axis=-1)
    heads = jnp.einsum("bhqk,bhkd->bhqd", p, v)
    heads = heads.transpose(0, 2, 1, 3).reshape(B, L, D)
    return heads @ params["w_out"].T + params["b_out"]


if __name__ == "__main__":
    # Small shapes consistent with the module: batch=2, max_len=8, d_model=32, num_heads=4.
    B, L, D, H = 2, 8, 32, 4

    key = jax.random.PRNGKey(0)
    kx, k1, k2, k3, k4 = jax.random.split(key, 5)

    x = jax.random.normal(kx, (B, L, D), dtype=jnp.float32)

    bound = 1.0 / math.sqrt(D)  # nn.Linear default init range
    params = {
        "w_qkv": jax.random.uniform(k1, (3 * D, D), jnp.float32, -bound, bound),
        "b_qkv": jax.random.uniform(k2, (3 * D,), jnp.float32, -bound, bound),
        "w_out": jax.random.uniform(k3, (D, D), jnp.float32, -bound, bound),
        "b_out": jax.random.uniform(k4, (D,), jnp.float32, -bound, bound),
    }

    out = msa_forward(x, params, H)
    out = jax.block_until_ready(out)

    ref = msa_reference(x, params, H)
    assert out.shape == (B, L, D)
    # Tolerance accounts for bf16 MXU operands and the approximate (EUP) softmax reciprocal.
    assert jnp.allclose(out, ref, atol=3e-2, rtol=3e-2), "Pallas MSA mismatch vs reference"

    print("KERNEL_OK")
</pallas_src>

<mosaic_0001>
module attributes {stable_mosaic.version = 11 : i64} {
  func.func @msa_kernel(%arg0: i32, %arg1: memref<1x8x32xf32, #tpu.memory_space<vmem>>, %arg2: memref<32x32xbf16, #tpu.memory_space<vmem>>, %arg3: memref<32x32xbf16, #tpu.memory_space<vmem>>, %arg4: memref<32x32xbf16, #tpu.memory_space<vmem>>, %arg5: memref<1x32xf32, #tpu.memory_space<vmem>>, %arg6: memref<1x32xf32, #tpu.memory_space<vmem>>, %arg7: memref<1x32xf32, #tpu.memory_space<vmem>>, %arg8: memref<32x32xbf16, #tpu.memory_space<vmem>>, %arg9: memref<1x32xf32, #tpu.memory_space<vmem>>, %arg10: memref<1x8x32xf32, #tpu.memory_space<vmem>>, %arg11: memref<8x32xbf16, #tpu.memory_space<vmem>>, %arg12: memref<8x32xbf16, #tpu.memory_space<vmem>>, %arg13: memref<8x32xbf16, #tpu.memory_space<vmem>>, %arg14: memref<8x32xf32, #tpu.memory_space<vmem>>) attributes {dimension_semantics = [#tpu.dimension_semantics<parallel>], iteration_bounds = array<i64: 2>, scalar_prefetch = 0 : i64, scratch_operands = 4 : i64, tpu.core_type = #tpu.core_type<tc>, window_params = [{transform_indices = @transform_0, window_bounds = array<i64: 1, 8, 32>}, {pipeline_mode = #tpu.pipeline_mode<synchronous>, transform_indices = @transform_1, window_bounds = array<i64: 32, 32>}, {pipeline_mode = #tpu.pipeline_mode<synchronous>, transform_indices = @transform_2, window_bounds = array<i64: 32, 32>}, {pipeline_mode = #tpu.pipeline_mode<synchronous>, transform_indices = @transform_3, window_bounds = array<i64: 32, 32>}, {pipeline_mode = #tpu.pipeline_mode<synchronous>, transform_indices = @transform_4, window_bounds = array<i64: 1, 32>}, {pipeline_mode = #tpu.pipeline_mode<synchronous>, transform_indices = @transform_5, window_bounds = array<i64: 1, 32>}, {pipeline_mode = #tpu.pipeline_mode<synchronous>, transform_indices = @transform_6, window_bounds = array<i64: 1, 32>}, {pipeline_mode = #tpu.pipeline_mode<synchronous>, transform_indices = @transform_7, window_bounds = array<i64: 32, 32>}, {pipeline_mode = #tpu.pipeline_mode<synchronous>, transform_indices = @transform_8, window_bounds = array<i64: 1, 32>}, {transform_indices = @transform_9, window_bounds = array<i64: 1, 8, 32>}]} {
    %c0 = arith.constant 0 : index
    %c0_0 = arith.constant 0 : index
    %c0_1 = arith.constant 0 : index
    %0 = vector.load %arg1[%c0, %c0_0, %c0_1] : memref<1x8x32xf32, #tpu.memory_space<vmem>>, vector<1x8x32xf32>
    %1 = vector.shape_cast %0 : vector<1x8x32xf32> to vector<8x32xf32>
    %2 = arith.truncf %1 : vector<8x32xf32> to vector<8x32xbf16>
    %c0_2 = arith.constant 0 : index
    %c0_3 = arith.constant 0 : index
    %3 = vector.load %arg2[%c0_2, %c0_3] : memref<32x32xbf16, #tpu.memory_space<vmem>>, vector<32x32xbf16>
    %cst = arith.constant dense<0.000000e+00> : vector<8x32xf32>
    %4 = tpu.matmul %2, %3, %cst {dimension_numbers = #tpu.dot_dimension_numbers<[1], [0], [0], [1], [0, 0, 1, 1], [], []>} : vector<8x32xbf16>, vector<32x32xbf16>, vector<8x32xf32> -> vector<8x32xf32>
    %c0_4 = arith.constant 0 : index
    %c0_5 = arith.constant 0 : index
    %5 = vector.load %arg5[%c0_4, %c0_5] : memref<1x32xf32, #tpu.memory_space<vmem>>, vector<1x32xf32>
    %6 = vector.shape_cast %5 : vector<1x32xf32> to vector<32xf32>
    %7 = vector.shape_cast %6 : vector<32xf32> to vector<1x32xf32>
    %8 = vector.broadcast %7 : vector<1x32xf32> to vector<8x32xf32>
    %9 = arith.addf %4, %8 : vector<8x32xf32>
    %10 = arith.truncf %9 : vector<8x32xf32> to vector<8x32xbf16>
    %c0_6 = arith.constant 0 : index
    %c0_7 = arith.constant 0 : index
    %11 = vector.load %arg11[%c0_6, %c0_7] : memref<8x32xbf16, #tpu.memory_space<vmem>>, vector<8x32xbf16>
    tpu.vector_store %arg11[%c0_6, %c0_7], %10 {strides = array<i32>} : memref<8x32xbf16, #tpu.memory_space<vmem>>, vector<8x32xbf16>,
    %c0_8 = arith.constant 0 : index
    %c0_9 = arith.constant 0 : index
    %12 = vector.load %arg3[%c0_8, %c0_9] : memref<32x32xbf16, #tpu.memory_space<vmem>>, vector<32x32xbf16>
    %cst_10 = arith.constant dense<0.000000e+00> : vector<8x32xf32>
    %13 = tpu.matmul %2, %12, %cst_10 {dimension_numbers = #tpu.dot_dimension_numbers<[1], [0], [0], [1], [0, 0, 1, 1], [], []>} : vector<8x32xbf16>, vector<32x32xbf16>, vector<8x32xf32> -> vector<8x32xf32>
    %c0_11 = arith.constant 0 : index
    %c0_12 = arith.constant 0 : index
    %14 = vector.load %arg6[%c0_11, %c0_12] : memref<1x32xf32, #tpu.memory_space<vmem>>, vector<1x32xf32>
    %15 = vector.shape_cast %14 : vector<1x32xf32> to vector<32xf32>
    %16 = vector.shape_cast %15 : vector<32xf32> to vector<1x32xf32>
    %17 = vector.broadcast %16 : vector<1x32xf32> to vector<8x32xf32>
    %18 = arith.addf %13, %17 : vector<8x32xf32>
    %19 = arith.truncf %18 : vector<8x32xf32> to vector<8x32xbf16>
    %c0_13 = arith.constant 0 : index
    %c0_14 = arith.constant 0 : index
    %20 = vector.load %arg12[%c0_13, %c0_14] : memref<8x32xbf16, #tpu.memory_space<vmem>>, vector<8x32xbf16>
    tpu.vector_store %arg12[%c0_13, %c0_14], %19 {strides = array<i32>} : memref<8x32xbf16, #tpu.memory_space<vmem>>, vector<8x32xbf16>,
    %c0_15 = arith.constant 0 : index
    %c0_16 = arith.constant 0 : index
    %21 = vector.load %arg4[%c0_15, %c0_16] : memref<32x32xbf16, #tpu.memory_space<vmem>>, vector<32x32xbf16>
    %cst_17 = arith.constant dense<0.000000e+00> : vector<8x32xf32>
    %22 = tpu.matmul %2, %21, %cst_17 {dimension_numbers = #tpu.dot_dimension_numbers<[1], [0], [0], [1], [0, 0, 1, 1], [], []>} : vector<8x32xbf16>, vector<32x32xbf16>, vector<8x32xf32> -> vector<8x32xf32>
    %c0_18 = arith.constant 0 : index
    %c0_19 = arith.constant 0 : index
    %23 = vector.load %arg7[%c0_18, %c0_19] : memref<1x32xf32, #tpu.memory_space<vmem>>, vector<1x32xf32>
    %24 = vector.shape_cast %23 : vector<1x32xf32> to vector<32xf32>
    %25 = vector.shape_cast %24 : vector<32xf32> to vector<1x32xf32>
    %26 = vector.broadcast %25 : vector<1x32xf32> to vector<8x32xf32>
    %27 = arith.addf %22, %26 : vector<8x32xf32>
    %28 = arith.truncf %27 : vector<8x32xf32> to vector<8x32xbf16>
    %c0_20 = arith.constant 0 : index
    %c0_21 = arith.constant 0 : index
    %29 = vector.load %arg13[%c0_20, %c0_21] : memref<8x32xbf16, #tpu.memory_space<vmem>>, vector<8x32xbf16>
    tpu.vector_store %arg13[%c0_20, %c0_21], %28 {strides = array<i32>} : memref<8x32xbf16, #tpu.memory_space<vmem>>, vector<8x32xbf16>,
    %c0_22 = arith.constant 0 : index
    %c0_23 = arith.constant 0 : index
    %30 = vector.load %arg8[%c0_22, %c0_23] : memref<32x32xbf16, #tpu.memory_space<vmem>>, vector<8x32xbf16>
    %c0_24 = arith.constant 0 : index
    %c0_25 = arith.constant 0 : index
    %31 = vector.load %arg11[%c0_24, %c0_25] : memref<8x32xbf16, #tpu.memory_space<vmem>>, vector<8x8xbf16>
    %c0_26 = arith.constant 0 : index
    %c0_27 = arith.constant 0 : index
    %32 = vector.load %arg12[%c0_26, %c0_27] : memref<8x32xbf16, #tpu.memory_space<vmem>>, vector<8x8xbf16>
    %c0_28 = arith.constant 0 : index
    %c0_29 = arith.constant 0 : index
    %33 = vector.load %arg13[%c0_28, %c0_29] : memref<8x32xbf16, #tpu.memory_space<vmem>>, vector<8x8xbf16>
    %cst_30 = arith.constant dense<0.000000e+00> : vector<8x8xf32>
    %34 = tpu.matmul %31, %32, %cst_30 {dimension_numbers = #tpu.dot_dimension_numbers<[1], [1], [0], [0], [0, 0, 1, 0], [], []>} : vector<8x8xbf16>, vector<8x8xbf16>, vector<8x8xf32> -> vector<8x8xf32>
    %cst_31 = arith.constant dense<0xFF800000> : vector<8xf32>
    %35 = vector.multi_reduction <maximumf>, %34, %cst_31 [1] : vector<8x8xf32> to vector<8xf32>
    %36 = vector.shape_cast %35 : vector<8xf32> to vector<8x1xf32>
    %37 = vector.broadcast %36 : vector<8x1xf32> to vector<8x8xf32>
    %38 = arith.subf %34, %37 : vector<8x8xf32>
    %39 = math.exp %38 : vector<8x8xf32>
    %cst_32 = arith.constant dense<0.000000e+00> : vector<8xf32>
    %40 = vector.multi_reduction <add>, %39, %cst_32 [1] : vector<8x8xf32> to vector<8xf32>
    %41 = vector.shape_cast %40 : vector<8xf32> to vector<8x1xf32>
    %42 = tpu.reciprocal %41 {approx = true} : vector<8x1xf32> -> vector<8x1xf32>
    %43 = arith.truncf %39 : vector<8x8xf32> to vector<8x8xbf16>
    %cst_33 = arith.constant dense<0.000000e+00> : vector<8x8xf32>
    %44 = tpu.matmul %43, %33, %cst_33 {dimension_numbers = #tpu.dot_dimension_numbers<[1], [0], [0], [1], [0, 0, 1, 1], [], []>} : vector<8x8xbf16>, vector<8x8xbf16>, vector<8x8xf32> -> vector<8x8xf32>
    %45 = vector.broadcast %42 : vector<8x1xf32> to vector<8x8xf32>
    %46 = arith.mulf %44, %45 : vector<8x8xf32>
    %47 = arith.truncf %46 : vector<8x8xf32> to vector<8x8xbf16>
    %cst_34 = arith.constant dense<0.000000e+00> : vector<8x32xf32>
    %48 = tpu.matmul %47, %30, %cst_34 {dimension_numbers = #tpu.dot_dimension_numbers<[1], [0], [0], [1], [0, 0, 1, 1], [], []>} : vector<8x8xbf16>, vector<8x32xbf16>, vector<8x32xf32> -> vector<8x32xf32>
    %c0_35 = arith.constant 0 : index
    %c0_36 = arith.constant 0 : index
    %49 = vector.load %arg14[%c0_35, %c0_36] : memref<8x32xf32, #tpu.memory_space<vmem>>, vector<8x32xf32>
    tpu.vector_store %arg14[%c0_35, %c0_36], %48 {strides = array<i32>} : memref<8x32xf32, #tpu.memory_space<vmem>>, vector<8x32xf32>,
    %c8 = arith.constant 8 : index
    %c0_37 = arith.constant 0 : index
    %50 = vector.load %arg8[%c8, %c0_37] : memref<32x32xbf16, #tpu.memory_space<vmem>>, vector<8x32xbf16>
    %c0_38 = arith.constant 0 : index
    %c8_39 = arith.constant 8 : index
    %51 = vector.load %arg11[%c0_38, %c8_39] : memref<8x32xbf16, #tpu.memory_space<vmem>>, vector<8x8xbf16>
    %c0_40 = arith.constant 0 : index
    %c8_41 = arith.constant 8 : index
    %52 = vector.load %arg12[%c0_40, %c8_41] : memref<8x32xbf16, #tpu.memory_space<vmem>>, vector<8x8xbf16>
    %c0_42 = arith.constant 0 : index
    %c8_43 = arith.constant 8 : index
    %53 = vector.load %arg13[%c0_42, %c8_43] : memref<8x32xbf16, #tpu.memory_space<vmem>>, vector<8x8xbf16>
    %cst_44 = arith.constant dense<0.000000e+00> : vector<8x8xf32>
    %54 = tpu.matmul %51, %52, %cst_44 {dimension_numbers = #tpu.dot_dimension_numbers<[1], [1], [0], [0], [0, 0, 1, 0], [], []>} : vector<8x8xbf16>, vector<8x8xbf16>, vector<8x8xf32> -> vector<8x8xf32>
    %cst_45 = arith.constant dense<0xFF800000> : vector<8xf32>
    %55 = vector.multi_reduction <maximumf>, %54, %cst_45 [1] : vector<8x8xf32> to vector<8xf32>
    %56 = vector.shape_cast %55 : vector<8xf32> to vector<8x1xf32>
    %57 = vector.broadcast %56 : vector<8x1xf32> to vector<8x8xf32>
    %58 = arith.subf %54, %57 : vector<8x8xf32>
    %59 = math.exp %58 : vector<8x8xf32>
    %cst_46 = arith.constant dense<0.000000e+00> : vector<8xf32>
    %60 = vector.multi_reduction <add>, %59, %cst_46 [1] : vector<8x8xf32> to vector<8xf32>
    %61 = vector.shape_cast %60 : vector<8xf32> to vector<8x1xf32>
    %62 = tpu.reciprocal %61 {approx = true} : vector<8x1xf32> -> vector<8x1xf32>
    %63 = arith.truncf %59 : vector<8x8xf32> to vector<8x8xbf16>
    %cst_47 = arith.constant dense<0.000000e+00> : vector<8x8xf32>
    %64 = tpu.matmul %63, %53, %cst_47 {dimension_numbers = #tpu.dot_dimension_numbers<[1], [0], [0], [1], [0, 0, 1, 1], [], []>} : vector<8x8xbf16>, vector<8x8xbf16>, vector<8x8xf32> -> vector<8x8xf32>
    %65 = vector.broadcast %62 : vector<8x1xf32> to vector<8x8xf32>
    %66 = arith.mulf %64, %65 : vector<8x8xf32>
    %67 = arith.truncf %66 : vector<8x8xf32> to vector<8x8xbf16>
    %cst_48 = arith.constant dense<0.000000e+00> : vector<8x32xf32>
    %68 = tpu.matmul %67, %50, %cst_48 {dimension_numbers = #tpu.dot_dimension_numbers<[1], [0], [0], [1], [0, 0, 1, 1], [], []>} : vector<8x8xbf16>, vector<8x32xbf16>, vector<8x32xf32> -> vector<8x32xf32>
    %c0_49 = arith.constant 0 : index
    %c0_50 = arith.constant 0 : index
    %69 = vector.load %arg14[%c0_49, %c0_50] : memref<8x32xf32, #tpu.memory_space<vmem>>, vector<8x32xf32>
    %70 = arith.addf %69, %68 : vector<8x32xf32>
    %c0_51 = arith.constant 0 : index
    %c0_52 = arith.constant 0 : index
    %71 = vector.load %arg14[%c0_51, %c0_52] : memref<8x32xf32, #tpu.memory_space<vmem>>, vector<8x32xf32>
    tpu.vector_store %arg14[%c0_51, %c0_52], %70 {strides = array<i32>} : memref<8x32xf32, #tpu.memory_space<vmem>>, vector<8x32xf32>,
    %c16 = arith.constant 16 : index
    %c0_53 = arith.constant 0 : index
    %72 = vector.load %arg8[%c16, %c0_53] : memref<32x32xbf16, #tpu.memory_space<vmem>>, vector<8x32xbf16>
    %c0_54 = arith.constant 0 : index
    %c16_55 = arith.constant 16 : index
    %73 = vector.load %arg11[%c0_54, %c16_55] : memref<8x32xbf16, #tpu.memory_space<vmem>>, vector<8x8xbf16>
    %c0_56 = arith.constant 0 : index
    %c16_57 = arith.constant 16 : index
    %74 = vector.load %arg12[%c0_56, %c16_57] : memref<8x32xbf16, #tpu.memory_space<vmem>>, vector<8x8xbf16>
    %c0_58 = arith.constant 0 : index
    %c16_59 = arith.constant 16 : index
    %75 = vector.load %arg13[%c0_58, %c16_59] : memref<8x32xbf16, #tpu.memory_space<vmem>>, vector<8x8xbf16>
    %cst_60 = arith.constant dense<0.000000e+00> : vector<8x8xf32>
    %76 = tpu.matmul %73, %74, %cst_60 {dimension_numbers = #tpu.dot_dimension_numbers<[1], [1], [0], [0], [0, 0, 1, 0], [], []>} : vector<8x8xbf16>, vector<8x8xbf16>, vector<8x8xf32> -> vector<8x8xf32>
    %cst_61 = arith.constant dense<0xFF800000> : vector<8xf32>
    %77 = vector.multi_reduction <maximumf>, %76, %cst_61 [1] : vector<8x8xf32> to vector<8xf32>
    %78 = vector.shape_cast %77 : vector<8xf32> to vector<8x1xf32>
    %79 = vector.broadcast %78 : vector<8x1xf32> to vector<8x8xf32>
    %80 = arith.subf %76, %79 : vector<8x8xf32>
    %81 = math.exp %80 : vector<8x8xf32>
    %cst_62 = arith.constant dense<0.000000e+00> : vector<8xf32>
    %82 = vector.multi_reduction <add>, %81, %cst_62 [1] : vector<8x8xf32> to vector<8xf32>
    %83 = vector.shape_cast %82 : vector<8xf32> to vector<8x1xf32>
    %84 = tpu.reciprocal %83 {approx = true} : vector<8x1xf32> -> vector<8x1xf32>
    %85 = arith.truncf %81 : vector<8x8xf32> to vector<8x8xbf16>
    %cst_63 = arith.constant dense<0.000000e+00> : vector<8x8xf32>
    %86 = tpu.matmul %85, %75, %cst_63 {dimension_numbers = #tpu.dot_dimension_numbers<[1], [0], [0], [1], [0, 0, 1, 1], [], []>} : vector<8x8xbf16>, vector<8x8xbf16>, vector<8x8xf32> -> vector<8x8xf32>
    %87 = vector.broadcast %84 : vector<8x1xf32> to vector<8x8xf32>
    %88 = arith.mulf %86, %87 : vector<8x8xf32>
    %89 = arith.truncf %88 : vector<8x8xf32> to vector<8x8xbf16>
    %cst_64 = arith.constant dense<0.000000e+00> : vector<8x32xf32>
    %90 = tpu.matmul %89, %72, %cst_64 {dimension_numbers = #tpu.dot_dimension_numbers<[1], [0], [0], [1], [0, 0, 1, 1], [], []>} : vector<8x8xbf16>, vector<8x32xbf16>, vector<8x32xf32> -> vector<8x32xf32>
    %c0_65 = arith.constant 0 : index
    %c0_66 = arith.constant 0 : index
    %91 = vector.load %arg14[%c0_65, %c0_66] : memref<8x32xf32, #tpu.memory_space<vmem>>, vector<8x32xf32>
    %92 = arith.addf %91, %90 : vector<8x32xf32>
    %c0_67 = arith.constant 0 : index
    %c0_68 = arith.constant 0 : index
    %93 = vector.load %arg14[%c0_67, %c0_68] : memref<8x32xf32, #tpu.memory_space<vmem>>, vector<8x32xf32>
    tpu.vector_store %arg14[%c0_67, %c0_68], %92 {strides = array<i32>} : memref<8x32xf32, #tpu.memory_space<vmem>>, vector<8x32xf32>,
    %c24 = arith.constant 24 : index
    %c0_69 = arith.constant 0 : index
    %94 = vector.load %arg8[%c24, %c0_69] : memref<32x32xbf16, #tpu.memory_space<vmem>>, vector<8x32xbf16>
    %c0_70 = arith.constant 0 : index
    %c24_71 = arith.constant 24 : index
    %95 = vector.load %arg11[%c0_70, %c24_71] : memref<8x32xbf16, #tpu.memory_space<vmem>>, vector<8x8xbf16>
    %c0_72 = arith.constant 0 : index
    %c24_73 = arith.constant 24 : index
    %96 = vector.load %arg12[%c0_72, %c24_73] : memref<8x32xbf16, #tpu.memory_space<vmem>>, vector<8x8xbf16>
    %c0_74 = arith.constant 0 : index
    %c24_75 = arith.constant 24 : index
    %97 = vector.load %arg13[%c0_74, %c24_75] : memref<8x32xbf16, #tpu.memory_space<vmem>>, vector<8x8xbf16>
    %cst_76 = arith.constant dense<0.000000e+00> : vector<8x8xf32>
    %98 = tpu.matmul %95, %96, %cst_76 {dimension_numbers = #tpu.dot_dimension_numbers<[1], [1], [0], [0], [0, 0, 1, 0], [], []>} : vector<8x8xbf16>, vector<8x8xbf16>, vector<8x8xf32> -> vector<8x8xf32>
    %cst_77 = arith.constant dense<0xFF800000> : vector<8xf32>
    %99 = vector.multi_reduction <maximumf>, %98, %cst_77 [1] : vector<8x8xf32> to vector<8xf32>
    %100 = vector.shape_cast %99 : vector<8xf32> to vector<8x1xf32>
    %101 = vector.broadcast %100 : vector<8x1xf32> to vector<8x8xf32>
    %102 = arith.subf %98, %101 : vector<8x8xf32>
    %103 = math.exp %102 : vector<8x8xf32>
    %cst_78 = arith.constant dense<0.000000e+00> : vector<8xf32>
    %104 = vector.multi_reduction <add>, %103, %cst_78 [1] : vector<8x8xf32> to vector<8xf32>
    %105 = vector.shape_cast %104 : vector<8xf32> to vector<8x1xf32>
    %106 = tpu.reciprocal %105 {approx = true} : vector<8x1xf32> -> vector<8x1xf32>
    %107 = arith.truncf %103 : vector<8x8xf32> to vector<8x8xbf16>
    %cst_79 = arith.constant dense<0.000000e+00> : vector<8x8xf32>
    %108 = tpu.matmul %107, %97, %cst_79 {dimension_numbers = #tpu.dot_dimension_numbers<[1], [0], [0], [1], [0, 0, 1, 1], [], []>} : vector<8x8xbf16>, vector<8x8xbf16>, vector<8x8xf32> -> vector<8x8xf32>
    %109 = vector.broadcast %106 : vector<8x1xf32> to vector<8x8xf32>
    %110 = arith.mulf %108, %109 : vector<8x8xf32>
    %111 = arith.truncf %110 : vector<8x8xf32> to vector<8x8xbf16>
    %cst_80 = arith.constant dense<0.000000e+00> : vector<8x32xf32>
    %112 = tpu.matmul %111, %94, %cst_80 {dimension_numbers = #tpu.dot_dimension_numbers<[1], [0], [0], [1], [0, 0, 1, 1], [], []>} : vector<8x8xbf16>, vector<8x32xbf16>, vector<8x32xf32> -> vector<8x32xf32>
    %c0_81 = arith.constant 0 : index
    %c0_82 = arith.constant 0 : index
    %113 = vector.load %arg14[%c0_81, %c0_82] : memref<8x32xf32, #tpu.memory_space<vmem>>, vector<8x32xf32>
    %114 = arith.addf %113, %112 : vector<8x32xf32>
    %c0_83 = arith.constant 0 : index
    %c0_84 = arith.constant 0 : index
    %115 = vector.load %arg14[%c0_83, %c0_84] : memref<8x32xf32, #tpu.memory_space<vmem>>, vector<8x32xf32>
    tpu.vector_store %arg14[%c0_83, %c0_84], %114 {strides = array<i32>} : memref<8x32xf32, #tpu.memory_space<vmem>>, vector<8x32xf32>,
    %c0_85 = arith.constant 0 : index
    %c0_86 = arith.constant 0 : index
    %116 = vector.load %arg14[%c0_85, %c0_86] : memref<8x32xf32, #tpu.memory_space<vmem>>, vector<8x32xf32>
    %c0_87 = arith.constant 0 : index
    %c0_88 = arith.constant 0 : index
    %117 = vector.load %arg9[%c0_87, %c0_88] : memref<1x32xf32, #tpu.memory_space<vmem>>, vector<1x32xf32>
    %118 = vector.shape_cast %117 : vector<1x32xf32> to vector<32xf32>
    %119 = vector.shape_cast %118 : vector<32xf32> to vector<1x32xf32>
    %120 = vector.broadcast %119 : vector<1x32xf32> to vector<8x32xf32>
    %121 = arith.addf %116, %120 : vector<8x32xf32>
    %122 = vector.shape_cast %121 : vector<8x32xf32> to vector<1x8x32xf32>
    %c0_89 = arith.constant 0 : index
    %c0_90 = arith.constant 0 : index
    %c0_91 = arith.constant 0 : index
    %123 = vector.load %arg10[%c0_89, %c0_90, %c0_91] : memref<1x8x32xf32, #tpu.memory_space<vmem>>, vector<1x8x32xf32>
    tpu.vector_store %arg10[%c0_89, %c0_90, %c0_91], %122 {strides = array<i32>} : memref<1x8x32xf32, #tpu.memory_space<vmem>>, vector<1x8x32xf32>,
    return
  }
  func.func @transform_0(%arg0: i32) -> (i32, i32, i32) {
    %c0_i32 = arith.constant 0 : i32
    %c0_i32_0 = arith.constant 0 : i32
    %c0_i32_1 = arith.constant 0 : i32
    return %arg0, %c0_i32, %c0_i32_0 : i32, i32, i32
  }
  func.func @transform_1(%arg0: i32) -> (i32, i32) {
    %c0_i32 = arith.constant 0 : i32
    %c0_i32_0 = arith.constant 0 : i32
    %c0_i32_1 = arith.constant 0 : i32
    return %c0_i32, %c0_i32_0 : i32, i32
  }
  func.func @transform_2(%arg0: i32) -> (i32, i32) {
    %c0_i32 = arith.constant 0 : i32
    %c0_i32_0 = arith.constant 0 : i32
    %c0_i32_1 = arith.constant 0 : i32
    return %c0_i32, %c0_i32_0 : i32, i32
  }
  func.func @transform_3(%arg0: i32) -> (i32, i32) {
    %c0_i32 = arith.constant 0 : i32
    %c0_i32_0 = arith.constant 0 : i32
    %c0_i32_1 = arith.constant 0 : i32
    return %c0_i32, %c0_i32_0 : i32, i32
  }
  func.func @transform_4(%arg0: i32) -> (i32, i32) {
    %c0_i32 = arith.constant 0 : i32
    %c0_i32_0 = arith.constant 0 : i32
    %c0_i32_1 = arith.constant 0 : i32
    return %c0_i32, %c0_i32_0 : i32, i32
  }
  func.func @transform_5(%arg0: i32) -> (i32, i32) {
    %c0_i32 = arith.constant 0 : i32
    %c0_i32_0 = arith.constant 0 : i32
    %c0_i32_1 = arith.constant 0 : i32
    return %c0_i32, %c0_i32_0 : i32, i32
  }
  func.func @transform_6(%arg0: i32) -> (i32, i32) {
    %c0_i32 = arith.constant 0 : i32
    %c0_i32_0 = arith.constant 0 : i32
    %c0_i32_1 = arith.constant 0 : i32
    return %c0_i32, %c0_i32_0 : i32, i32
  }
  func.func @transform_7(%arg0: i32) -> (i32, i32) {
    %c0_i32 = arith.constant 0 : i32
    %c0_i32_0 = arith.constant 0 : i32
    %c0_i32_1 = arith.constant 0 : i32
    return %c0_i32, %c0_i32_0 : i32, i32
  }
  func.func @transform_8(%arg0: i32) -> (i32, i32) {
    %c0_i32 = arith.constant 0 : i32
    %c0_i32_0 = arith.constant 0 : i32
    %c0_i32_1 = arith.constant 0 : i32
    return %c0_i32, %c0_i32_0 : i32, i32
  }
  func.func @transform_9(%arg0: i32) -> (i32, i32, i32) {
    %c0_i32 = arith.constant 0 : i32
    %c0_i32_0 = arith.constant 0 : i32
    %c0_i32_1 = arith.constant 0 : i32
    return %arg0, %c0_i32, %c0_i32_0 : i32, i32, i32
  }
}

module attributes {stable_mosaic.version = 11 : i64} {
  func.func @msa_kernel(%arg0: i32, %arg1: memref<1x8x32xf32, #tpu.memory_space<vmem>>, %arg2: memref<32x32xbf16, #tpu.memory_space<vmem>>, %arg3: memref<32x32xbf16, #tpu.memory_space<vmem>>, %arg4: memref<32x32xbf16, #tpu.memory_space<vmem>>, %arg5: memref<1x32xf32, #tpu.memory_space<vmem>>, %arg6: memref<1x32xf32, #tpu.memory_space<vmem>>, %arg7: memref<1x32xf32, #tpu.memory_space<vmem>>, %arg8: memref<32x32xbf16, #tpu.memory_space<vmem>>, %arg9: memref<1x32xf32, #tpu.memory_space<vmem>>, %arg10: memref<1x8x32xf32, #tpu.memory_space<vmem>>, %arg11: memref<8x32xbf16, #tpu.memory_space<vmem>>, %arg12: memref<8x32xbf16, #tpu.memory_space<vmem>>, %arg13: memref<8x32xbf16, #tpu.memory_space<vmem>>, %arg14: memref<8x32xf32, #tpu.memory_space<vmem>>) attributes {dimension_semantics = [#tpu.dimension_semantics<parallel>], iteration_bounds = array<i64: 2>, scalar_prefetch = 0 : i64, scratch_operands = 4 : i64, tpu.core_type = #tpu.core_type<tc>, window_params = [{transform_indices = @transform_0, window_bounds = array<i64: 1, 8, 32>}, {pipeline_mode = #tpu.pipeline_mode<synchronous>, transform_indices = @transform_1, window_bounds = array<i64: 32, 32>}, {pipeline_mode = #tpu.pipeline_mode<synchronous>, transform_indices = @transform_2, window_bounds = array<i64: 32, 32>}, {pipeline_mode = #tpu.pipeline_mode<synchronous>, transform_indices = @transform_3, window_bounds = array<i64: 32, 32>}, {pipeline_mode = #tpu.pipeline_mode<synchronous>, transform_indices = @transform_4, window_bounds = array<i64: 1, 32>}, {pipeline_mode = #tpu.pipeline_mode<synchronous>, transform_indices = @transform_5, window_bounds = array<i64: 1, 32>}, {pipeline_mode = #tpu.pipeline_mode<synchronous>, transform_indices = @transform_6, window_bounds = array<i64: 1, 32>}, {pipeline_mode = #tpu.pipeline_mode<synchronous>, transform_indices = @transform_7, window_bounds = array<i64: 32, 32>}, {pipeline_mode = #tpu.pipeline_mode<synchronous>, transform_indices = @transform_8, window_bounds = array<i64: 1, 32>}, {transform_indices = @transform_9, window_bounds = array<i64: 1, 8, 32>}]} {
    %c0 = arith.constant 0 : index
    %c0_0 = arith.constant 0 : index
    %c0_1 = arith.constant 0 : index
    %0 = vector.load %arg1[%c0, %c0_0, %c0_1] : memref<1x8x32xf32, #tpu.memory_space<vmem>>, vector<1x8x32xf32>
    %1 = vector.shape_cast %0 : vector<1x8x32xf32> to vector<8x32xf32>
    %2 = arith.truncf %1 : vector<8x32xf32> to vector<8x32xbf16>
    %c0_2 = arith.constant 0 : index
    %c0_3 = arith.constant 0 : index
    %3 = vector.load %arg2[%c0_2, %c0_3] : memref<32x32xbf16, #tpu.memory_space<vmem>>, vector<32x32xbf16>
    %cst = arith.constant dense<0.000000e+00> : vector<8x32xf32>
    %4 = tpu.matmul %2, %3, %cst {dimension_numbers = #tpu.dot_dimension_numbers<[1], [0], [0], [1], [0, 0, 1, 1], [], []>} : vector<8x32xbf16>, vector<32x32xbf16>, vector<8x32xf32> -> vector<8x32xf32>
    %c0_4 = arith.constant 0 : index
    %c0_5 = arith.constant 0 : index
    %5 = vector.load %arg5[%c0_4, %c0_5] : memref<1x32xf32, #tpu.memory_space<vmem>>, vector<1x32xf32>
    %6 = vector.shape_cast %5 : vector<1x32xf32> to vector<32xf32>
    %7 = vector.shape_cast %6 : vector<32xf32> to vector<1x32xf32>
    %8 = vector.broadcast %7 : vector<1x32xf32> to vector<8x32xf32>
    %9 = arith.addf %4, %8 : vector<8x32xf32>
    %10 = arith.truncf %9 : vector<8x32xf32> to vector<8x32xbf16>
    %c0_6 = arith.constant 0 : index
    %c0_7 = arith.constant 0 : index
    %11 = vector.load %arg11[%c0_6, %c0_7] : memref<8x32xbf16, #tpu.memory_space<vmem>>, vector<8x32xbf16>
    tpu.vector_store %arg11[%c0_6, %c0_7], %10 {strides = array<i32>} : memref<8x32xbf16, #tpu.memory_space<vmem>>, vector<8x32xbf16>,
    %c0_8 = arith.constant 0 : index
    %c0_9 = arith.constant 0 : index
    %12 = vector.load %arg3[%c0_8, %c0_9] : memref<32x32xbf16, #tpu.memory_space<vmem>>, vector<32x32xbf16>
    %cst_10 = arith.constant dense<0.000000e+00> : vector<8x32xf32>
    %13 = tpu.matmul %2, %12, %cst_10 {dimension_numbers = #tpu.dot_dimension_numbers<[1], [0], [0], [1], [0, 0, 1, 1], [], []>} : vector<8x32xbf16>, vector<32x32xbf16>, vector<8x32xf32> -> vector<8x32xf32>
    %c0_11 = arith.constant 0 : index
    %c0_12 = arith.constant 0 : index
    %14 = vector.load %arg6[%c0_11, %c0_12] : memref<1x32xf32, #tpu.memory_space<vmem>>, vector<1x32xf32>
    %15 = vector.shape_cast %14 : vector<1x32xf32> to vector<32xf32>
    %16 = vector.shape_cast %15 : vector<32xf32> to vector<1x32xf32>
    %17 = vector.broadcast %16 : vector<1x32xf32> to vector<8x32xf32>
    %18 = arith.addf %13, %17 : vector<8x32xf32>
    %19 = arith.truncf %18 : vector<8x32xf32> to vector<8x32xbf16>
    %c0_13 = arith.constant 0 : index
    %c0_14 = arith.constant 0 : index
    %20 = vector.load %arg12[%c0_13, %c0_14] : memref<8x32xbf16, #tpu.memory_space<vmem>>, vector<8x32xbf16>
    tpu.vector_store %arg12[%c0_13, %c0_14], %19 {strides = array<i32>} : memref<8x32xbf16, #tpu.memory_space<vmem>>, vector<8x32xbf16>,
    %c0_15 = arith.constant 0 : index
    %c0_16 = arith.constant 0 : index
    %21 = vector.load %arg4[%c0_15, %c0_16] : memref<32x32xbf16, #tpu.memory_space<vmem>>, vector<32x32xbf16>
    %cst_17 = arith.constant dense<0.000000e+00> : vector<8x32xf32>
    %22 = tpu.matmul %2, %21, %cst_17 {dimension_numbers = #tpu.dot_dimension_numbers<[1], [0], [0], [1], [0, 0, 1, 1], [], []>} : vector<8x32xbf16>, vector<32x32xbf16>, vector<8x32xf32> -> vector<8x32xf32>
    %c0_18 = arith.constant 0 : index
    %c0_19 = arith.constant 0 : index
    %23 = vector.load %arg7[%c0_18, %c0_19] : memref<1x32xf32, #tpu.memory_space<vmem>>, vector<1x32xf32>
    %24 = vector.shape_cast %23 : vector<1x32xf32> to vector<32xf32>
    %25 = vector.shape_cast %24 : vector<32xf32> to vector<1x32xf32>
    %26 = vector.broadcast %25 : vector<1x32xf32> to vector<8x32xf32>
    %27 = arith.addf %22, %26 : vector<8x32xf32>
    %28 = arith.truncf %27 : vector<8x32xf32> to vector<8x32xbf16>
    %c0_20 = arith.constant 0 : index
    %c0_21 = arith.constant 0 : index
    %29 = vector.load %arg13[%c0_20, %c0_21] : memref<8x32xbf16, #tpu.memory_space<vmem>>, vector<8x32xbf16>
    tpu.vector_store %arg13[%c0_20, %c0_21], %28 {strides = array<i32>} : memref<8x32xbf16, #tpu.memory_space<vmem>>, vector<8x32xbf16>,
    %c0_22 = arith.constant 0 : index
    %c0_23 = arith.constant 0 : index
    %30 = vector.load %arg8[%c0_22, %c0_23] : memref<32x32xbf16, #tpu.memory_space<vmem>>, vector<8x32xbf16>
    %c0_24 = arith.constant 0 : index
    %c0_25 = arith.constant 0 : index
    %31 = vector.load %arg11[%c0_24, %c0_25] : memref<8x32xbf16, #tpu.memory_space<vmem>>, vector<8x8xbf16>
    %c0_26 = arith.constant 0 : index
    %c0_27 = arith.constant 0 : index
    %32 = vector.load %arg12[%c0_26, %c0_27] : memref<8x32xbf16, #tpu.memory_space<vmem>>, vector<8x8xbf16>
    %c0_28 = arith.constant 0 : index
    %c0_29 = arith.constant 0 : index
    %33 = vector.load %arg13[%c0_28, %c0_29] : memref<8x32xbf16, #tpu.memory_space<vmem>>, vector<8x8xbf16>
    %cst_30 = arith.constant dense<0.000000e+00> : vector<8x8xf32>
    %34 = tpu.matmul %31, %32, %cst_30 {dimension_numbers = #tpu.dot_dimension_numbers<[1], [1], [0], [0], [0, 0, 1, 0], [], []>} : vector<8x8xbf16>, vector<8x8xbf16>, vector<8x8xf32> -> vector<8x8xf32>
    %cst_31 = arith.constant dense<0xFF800000> : vector<8xf32>
    %35 = vector.multi_reduction <maximumf>, %34, %cst_31 [1] : vector<8x8xf32> to vector<8xf32>
    %36 = vector.shape_cast %35 : vector<8xf32> to vector<8x1xf32>
    %37 = vector.broadcast %36 : vector<8x1xf32> to vector<8x8xf32>
    %38 = arith.subf %34, %37 : vector<8x8xf32>
    %39 = math.exp %38 : vector<8x8xf32>
    %cst_32 = arith.constant dense<0.000000e+00> : vector<8xf32>
    %40 = vector.multi_reduction <add>, %39, %cst_32 [1] : vector<8x8xf32> to vector<8xf32>
    %41 = vector.shape_cast %40 : vector<8xf32> to vector<8x1xf32>
    %42 = tpu.reciprocal %41 {approx = true} : vector<8x1xf32> -> vector<8x1xf32>
    %43 = arith.truncf %39 : vector<8x8xf32> to vector<8x8xbf16>
    %cst_33 = arith.constant dense<0.000000e+00> : vector<8x8xf32>
    %44 = tpu.matmul %43, %33, %cst_33 {dimension_numbers = #tpu.dot_dimension_numbers<[1], [0], [0], [1], [0, 0, 1, 1], [], []>} : vector<8x8xbf16>, vector<8x8xbf16>, vector<8x8xf32> -> vector<8x8xf32>
    %45 = vector.broadcast %42 : vector<8x1xf32> to vector<8x8xf32>
    %46 = arith.mulf %44, %45 : vector<8x8xf32>
    %47 = arith.truncf %46 : vector<8x8xf32> to vector<8x8xbf16>
    %cst_34 = arith.constant dense<0.000000e+00> : vector<8x32xf32>
    %48 = tpu.matmul %47, %30, %cst_34 {dimension_numbers = #tpu.dot_dimension_numbers<[1], [0], [0], [1], [0, 0, 1, 1], [], []>} : vector<8x8xbf16>, vector<8x32xbf16>, vector<8x32xf32> -> vector<8x32xf32>
    %c0_35 = arith.constant 0 : index
    %c0_36 = arith.constant 0 : index
    %49 = vector.load %arg14[%c0_35, %c0_36] : memref<8x32xf32, #tpu.memory_space<vmem>>, vector<8x32xf32>
    tpu.vector_store %arg14[%c0_35, %c0_36], %48 {strides = array<i32>} : memref<8x32xf32, #tpu.memory_space<vmem>>, vector<8x32xf32>,
    %c8 = arith.constant 8 : index
    %c0_37 = arith.constant 0 : index
    %50 = vector.load %arg8[%c8, %c0_37] : memref<32x32xbf16, #tpu.memory_space<vmem>>, vector<8x32xbf16>
    %c0_38 = arith.constant 0 : index
    %c8_39 = arith.constant 8 : index
    %51 = vector.load %arg11[%c0_38, %c8_39] : memref<8x32xbf16, #tpu.memory_space<vmem>>, vector<8x8xbf16>
    %c0_40 = arith.constant 0 : index
    %c8_41 = arith.constant 8 : index
    %52 = vector.load %arg12[%c0_40, %c8_41] : memref<8x32xbf16, #tpu.memory_space<vmem>>, vector<8x8xbf16>
    %c0_42 = arith.constant 0 : index
    %c8_43 = arith.constant 8 : index
    %53 = vector.load %arg13[%c0_42, %c8_43] : memref<8x32xbf16, #tpu.memory_space<vmem>>, vector<8x8xbf16>
    %cst_44 = arith.constant dense<0.000000e+00> : vector<8x8xf32>
    %54 = tpu.matmul %51, %52, %cst_44 {dimension_numbers = #tpu.dot_dimension_numbers<[1], [1], [0], [0], [0, 0, 1, 0], [], []>} : vector<8x8xbf16>, vector<8x8xbf16>, vector<8x8xf32> -> vector<8x8xf32>
    %cst_45 = arith.constant dense<0xFF800000> : vector<8xf32>
    %55 = vector.multi_reduction <maximumf>, %54, %cst_45 [1] : vector<8x8xf32> to vector<8xf32>
    %56 = vector.shape_cast %55 : vector<8xf32> to vector<8x1xf32>
    %57 = vector.broadcast %56 : vector<8x1xf32> to vector<8x8xf32>
    %58 = arith.subf %54, %57 : vector<8x8xf32>
    %59 = math.exp %58 : vector<8x8xf32>
    %cst_46 = arith.constant dense<0.000000e+00> : vector<8xf32>
    %60 = vector.multi_reduction <add>, %59, %cst_46 [1] : vector<8x8xf32> to vector<8xf32>
    %61 = vector.shape_cast %60 : vector<8xf32> to vector<8x1xf32>
    %62 = tpu.reciprocal %61 {approx = true} : vector<8x1xf32> -> vector<8x1xf32>
    %63 = arith.truncf %59 : vector<8x8xf32> to vector<8x8xbf16>
    %cst_47 = arith.constant dense<0.000000e+00> : vector<8x8xf32>
    %64 = tpu.matmul %63, %53, %cst_47 {dimension_numbers = #tpu.dot_dimension_numbers<[1], [0], [0], [1], [0, 0, 1, 1], [], []>} : vector<8x8xbf16>, vector<8x8xbf16>, vector<8x8xf32> -> vector<8x8xf32>
    %65 = vector.broadcast %62 : vector<8x1xf32> to vector<8x8xf32>
    %66 = arith.mulf %64, %65 : vector<8x8xf32>
    %67 = arith.truncf %66 : vector<8x8xf32> to vector<8x8xbf16>
    %cst_48 = arith.constant dense<0.000000e+00> : vector<8x32xf32>
    %68 = tpu.matmul %67, %50, %cst_48 {dimension_numbers = #tpu.dot_dimension_numbers<[1], [0], [0], [1], [0, 0, 1, 1], [], []>} : vector<8x8xbf16>, vector<8x32xbf16>, vector<8x32xf32> -> vector<8x32xf32>
    %c0_49 = arith.constant 0 : index
    %c0_50 = arith.constant 0 : index
    %69 = vector.load %arg14[%c0_49, %c0_50] : memref<8x32xf32, #tpu.memory_space<vmem>>, vector<8x32xf32>
    %70 = arith.addf %69, %68 : vector<8x32xf32>
    %c0_51 = arith.constant 0 : index
    %c0_52 = arith.constant 0 : index
    %71 = vector.load %arg14[%c0_51, %c0_52] : memref<8x32xf32, #tpu.memory_space<vmem>>, vector<8x32xf32>
    tpu.vector_store %arg14[%c0_51, %c0_52], %70 {strides = array<i32>} : memref<8x32xf32, #tpu.memory_space<vmem>>, vector<8x32xf32>,
    %c16 = arith.constant 16 : index
    %c0_53 = arith.constant 0 : index
    %72 = vector.load %arg8[%c16, %c0_53] : memref<32x32xbf16, #tpu.memory_space<vmem>>, vector<8x32xbf16>
    %c0_54 = arith.constant 0 : index
    %c16_55 = arith.constant 16 : index
    %73 = vector.load %arg11[%c0_54, %c16_55] : memref<8x32xbf16, #tpu.memory_space<vmem>>, vector<8x8xbf16>
    %c0_56 = arith.constant 0 : index
    %c16_57 = arith.constant 16 : index
    %74 = vector.load %arg12[%c0_56, %c16_57] : memref<8x32xbf16, #tpu.memory_space<vmem>>, vector<8x8xbf16>
    %c0_58 = arith.constant 0 : index
    %c16_59 = arith.constant 16 : index
    %75 = vector.load %arg13[%c0_58, %c16_59] : memref<8x32xbf16, #tpu.memory_space<vmem>>, vector<8x8xbf16>
    %cst_60 = arith.constant dense<0.000000e+00> : vector<8x8xf32>
    %76 = tpu.matmul %73, %74, %cst_60 {dimension_numbers = #tpu.dot_dimension_numbers<[1], [1], [0], [0], [0, 0, 1, 0], [], []>} : vector<8x8xbf16>, vector<8x8xbf16>, vector<8x8xf32> -> vector<8x8xf32>
    %cst_61 = arith.constant dense<0xFF800000> : vector<8xf32>
    %77 = vector.multi_reduction <maximumf>, %76, %cst_61 [1] : vector<8x8xf32> to vector<8xf32>
    %78 = vector.shape_cast %77 : vector<8xf32> to vector<8x1xf32>
    %79 = vector.broadcast %78 : vector<8x1xf32> to vector<8x8xf32>
    %80 = arith.subf %76, %79 : vector<8x8xf32>
    %81 = math.exp %80 : vector<8x8xf32>
    %cst_62 = arith.constant dense<0.000000e+00> : vector<8xf32>
    %82 = vector.multi_reduction <add>, %81, %cst_62 [1] : vector<8x8xf32> to vector<8xf32>
    %83 = vector.shape_cast %82 : vector<8xf32> to vector<8x1xf32>
    %84 = tpu.reciprocal %83 {approx = true} : vector<8x1xf32> -> vector<8x1xf32>
    %85 = arith.truncf %81 : vector<8x8xf32> to vector<8x8xbf16>
    %cst_63 = arith.constant dense<0.000000e+00> : vector<8x8xf32>
    %86 = tpu.matmul %85, %75, %cst_63 {dimension_numbers = #tpu.dot_dimension_numbers<[1], [0], [0], [1], [0, 0, 1, 1], [], []>} : vector<8x8xbf16>, vector<8x8xbf16>, vector<8x8xf32> -> vector<8x8xf32>
    %87 = vector.broadcast %84 : vector<8x1xf32> to vector<8x8xf32>
    %88 = arith.mulf %86, %87 : vector<8x8xf32>
    %89 = arith.truncf %88 : vector<8x8xf32> to vector<8x8xbf16>
    %cst_64 = arith.constant dense<0.000000e+00> : vector<8x32xf32>
    %90 = tpu.matmul %89, %72, %cst_64 {dimension_numbers = #tpu.dot_dimension_numbers<[1], [0], [0], [1], [0, 0, 1, 1], [], []>} : vector<8x8xbf16>, vector<8x32xbf16>, vector<8x32xf32> -> vector<8x32xf32>
    %c0_65 = arith.constant 0 : index
    %c0_66 = arith.constant 0 : index
    %91 = vector.load %arg14[%c0_65, %c0_66] : memref<8x32xf32, #tpu.memory_space<vmem>>, vector<8x32xf32>
    %92 = arith.addf %91, %90 : vector<8x32xf32>
    %c0_67 = arith.constant 0 : index
    %c0_68 = arith.constant 0 : index
    %93 = vector.load %arg14[%c0_67, %c0_68] : memref<8x32xf32, #tpu.memory_space<vmem>>, vector<8x32xf32>
    tpu.vector_store %arg14[%c0_67, %c0_68], %92 {strides = array<i32>} : memref<8x32xf32, #tpu.memory_space<vmem>>, vector<8x32xf32>,
    %c24 = arith.constant 24 : index
    %c0_69 = arith.constant 0 : index
    %94 = vector.load %arg8[%c24, %c0_69] : memref<32x32xbf16, #tpu.memory_space<vmem>>, vector<8x32xbf16>
    %c0_70 = arith.constant 0 : index
    %c24_71 = arith.constant 24 : index
    %95 = vector.load %arg11[%c0_70, %c24_71] : memref<8x32xbf16, #tpu.memory_space<vmem>>, vector<8x8xbf16>
    %c0_72 = arith.constant 0 : index
    %c24_73 = arith.constant 24 : index
    %96 = vector.load %arg12[%c0_72, %c24_73] : memref<8x32xbf16, #tpu.memory_space<vmem>>, vector<8x8xbf16>
    %c0_74 = arith.constant 0 : index
    %c24_75 = arith.constant 24 : index
    %97 = vector.load %arg13[%c0_74, %c24_75] : memref<8x32xbf16, #tpu.memory_space<vmem>>, vector<8x8xbf16>
    %cst_76 = arith.constant dense<0.000000e+00> : vector<8x8xf32>
    %98 = tpu.matmul %95, %96, %cst_76 {dimension_numbers = #tpu.dot_dimension_numbers<[1], [1], [0], [0], [0, 0, 1, 0], [], []>} : vector<8x8xbf16>, vector<8x8xbf16>, vector<8x8xf32> -> vector<8x8xf32>
    %cst_77 = arith.constant dense<0xFF800000> : vector<8xf32>
    %99 = vector.multi_reduction <maximumf>, %98, %cst_77 [1] : vector<8x8xf32> to vector<8xf32>
    %100 = vector.shape_cast %99 : vector<8xf32> to vector<8x1xf32>
    %101 = vector.broadcast %100 : vector<8x1xf32> to vector<8x8xf32>
    %102 = arith.subf %98, %101 : vector<8x8xf32>
    %103 = math.exp %102 : vector<8x8xf32>
    %cst_78 = arith.constant dense<0.000000e+00> : vector<8xf32>
    %104 = vector.multi_reduction <add>, %103, %cst_78 [1] : vector<8x8xf32> to vector<8xf32>
    %105 = vector.shape_cast %104 : vector<8xf32> to vector<8x1xf32>
    %106 = tpu.reciprocal %105 {approx = true} : vector<8x1xf32> -> vector<8x1xf32>
    %107 = arith.truncf %103 : vector<8x8xf32> to vector<8x8xbf16>
    %cst_79 = arith.constant dense<0.000000e+00> : vector<8x8xf32>
    %108 = tpu.matmul %107, %97, %cst_79 {dimension_numbers = #tpu.dot_dimension_numbers<[1], [0], [0], [1], [0, 0, 1, 1], [], []>} : vector<8x8xbf16>, vector<8x8xbf16>, vector<8x8xf32> -> vector<8x8xf32>
    %109 = vector.broadcast %106 : vector<8x1xf32> to vector<8x8xf32>
    %110 = arith.mulf %108, %109 : vector<8x8xf32>
    %111 = arith.truncf %110 : vector<8x8xf32> to vector<8x8xbf16>
    %cst_80 = arith.constant dense<0.000000e+00> : vector<8x32xf32>
    %112 = tpu.matmul %111, %94, %cst_80 {dimension_numbers = #tpu.dot_dimension_numbers<[1], [0], [0], [1], [0, 0, 1, 1], [], []>} : vector<8x8xbf16>, vector<8x32xbf16>, vector<8x32xf32> -> vector<8x32xf32>
    %c0_81 = arith.constant 0 : index
    %c0_82 = arith.constant 0 : index
    %113 = vector.load %arg14[%c0_81, %c0_82] : memref<8x32xf32, #tpu.memory_space<vmem>>, vector<8x32xf32>
    %114 = arith.addf %113, %112 : vector<8x32xf32>
    %c0_83 = arith.constant 0 : index
    %c0_84 = arith.constant 0 : index
    %115 = vector.load %arg14[%c0_83, %c0_84] : memref<8x32xf32, #tpu.memory_space<vmem>>, vector<8x32xf32>
    tpu.vector_store %arg14[%c0_83, %c0_84], %114 {strides = array<i32>} : memref<8x32xf32, #tpu.memory_space<vmem>>, vector<8x32xf32>,
    %c0_85 = arith.constant 0 : index
    %c0_86 = arith.constant 0 : index
    %116 = vector.load %arg14[%c0_85, %c0_86] : memref<8x32xf32, #tpu.memory_space<vmem>>, vector<8x32xf32>
    %c0_87 = arith.constant 0 : index
    %c0_88 = arith.constant 0 : index
    %117 = vector.load %arg9[%c0_87, %c0_88] : memref<1x32xf32, #tpu.memory_space<vmem>>, vector<1x32xf32>
    %118 = vector.shape_cast %117 : vector<1x32xf32> to vector<32xf32>
    %119 = vector.shape_cast %118 : vector<32xf32> to vector<1x32xf32>
    %120 = vector.broadcast %119 : vector<1x32xf32> to vector<8x32xf32>
    %121 = arith.addf %116, %120 : vector<8x32xf32>
    %122 = vector.shape_cast %121 : vector<8x32xf32> to vector<1x8x32xf32>
    %c0_89 = arith.constant 0 : index
    %c0_90 = arith.constant 0 : index
    %c0_91 = arith.constant 0 : index
    %123 = vector.load %arg10[%c0_89, %c0_90, %c0_91] : memref<1x8x32xf32, #tpu.memory_space<vmem>>, vector<1x8x32xf32>
    tpu.vector_store %arg10[%c0_89, %c0_90, %c0_91], %122 {strides = array<i32>} : memref<1x8x32xf32, #tpu.memory_space<vmem>>, vector<1x8x32xf32>,
    return
  }
  func.func @transform_0(%arg0: i32) -> (i32, i32, i32) {
    %c0_i32 = arith.constant 0 : i32
    %c0_i32_0 = arith.constant 0 : i32
    %c0_i32_1 = arith.constant 0 : i32
    return %arg0, %c0_i32, %c0_i32_0 : i32, i32, i32
  }
  func.func @transform_1(%arg0: i32) -> (i32, i32) {
    %c0_i32 = arith.constant 0 : i32
    %c0_i32_0 = arith.constant 0 : i32
    %c0_i32_1 = arith.constant 0 : i32
    return %c0_i32, %c0_i32_0 : i32, i32
  }
  func.func @transform_2(%arg0: i32) -> (i32, i32) {
    %c0_i32 = arith.constant 0 : i32
    %c0_i32_0 = arith.constant 0 : i32
    %c0_i32_1 = arith.constant 0 : i32
    return %c0_i32, %c0_i32_0 : i32, i32
  }
  func.func @transform_3(%arg0: i32) -> (i32, i32) {
    %c0_i32 = arith.constant 0 : i32
    %c0_i32_0 = arith.constant 0 : i32
    %c0_i32_1 = arith.constant 0 : i32
    return %c0_i32, %c0_i32_0 : i32, i32
  }
  func.func @transform_4(%arg0: i32) -> (i32, i32) {
    %c0_i32 = arith.constant 0 : i32
    %c0_i32_0 = arith.constant 0 : i32
    %c0_i32_1 = arith.constant 0 : i32
    return %c0_i32, %c0_i32_0 : i32, i32
  }
  func.func @transform_5(%arg0: i32) -> (i32, i32) {
    %c0_i32 = arith.constant 0 : i32
    %c0_i32_0 = arith.constant 0 : i32
    %c0_i32_1 = arith.constant 0 : i32
    return %c0_i32, %c0_i32_0 : i32, i32
  }
  func.func @transform_6(%arg0: i32) -> (i32, i32) {
    %c0_i32 = arith.constant 0 : i32
    %c0_i32_0 = arith.constant 0 : i32
    %c0_i32_1 = arith.constant 0 : i32
    return %c0_i32, %c0_i32_0 : i32, i32
  }
  func.func @transform_7(%arg0: i32) -> (i32, i32) {
    %c0_i32 = arith.constant 0 : i32
    %c0_i32_0 = arith.constant 0 : i32
    %c0_i32_1 = arith.constant 0 : i32
    return %c0_i32, %c0_i32_0 : i32, i32
  }
  func.func @transform_8(%arg0: i32) -> (i32, i32) {
    %c0_i32 = arith.constant 0 : i32
    %c0_i32_0 = arith.constant 0 : i32
    %c0_i32_1 = arith.constant 0 : i32
    return %c0_i32, %c0_i32_0 : i32, i32
  }
  func.func @transform_9(%arg0: i32) -> (i32, i32, i32) {
    %c0_i32 = arith.constant 0 : i32
    %c0_i32_0 = arith.constant 0 : i32
    %c0_i32_1 = arith.constant 0 : i32
    return %arg0, %c0_i32, %c0_i32_0 : i32, i32, i32
  }
}

</mosaic_0001>

<llo_original>
// kernel: tpu_custom_call.1
$region0: #{tpu_custom_call.1}
  #allocation0 [shape = 'u32[]', space=smem, size = 0x4, offset = 0x4, fixed_abs, tag = 'smem constant byte address 0x4 - core index']
  #allocation1 [shape = 'u32[144,128]{1,0:T(1,128)}', space=vmem, size = 0x12000, scoped, tag = 'internal scratch']
  #allocation2 [shape = 'bf16[8,32]{1,0:T(8,128)(2,1)}', space=vmem, size = 0x800, scoped, tag = 'scratch operand']
  #allocation3 [shape = 'bf16[8,32]{1,0:T(8,128)(2,1)}', space=vmem, size = 0x800, scoped, tag = 'scratch operand']
  #allocation4 [shape = 'bf16[8,32]{1,0:T(8,128)(2,1)}', space=vmem, size = 0x800, scoped, tag = 'scratch operand']
  #allocation5 [shape = 'f32[8,32]{1,0:T(8,128)}', space=vmem, size = 0x1000, scoped, tag = 'scratch operand']
  %s0 = inlined_call_operand.hbm [shape: f32[2,8,32], index: 0, kind: input, shape index: {}]
  %s1 = inlined_call_operand.hbm [shape: bf16[32,32], index: 1, kind: input, shape index: {}]
  %s2 = inlined_call_operand.hbm [shape: bf16[32,32], index: 2, kind: input, shape index: {}]
  %s3 = inlined_call_operand.hbm [shape: bf16[32,32], index: 3, kind: input, shape index: {}]
  %s4 = inlined_call_operand.vmem [shape: f32[1,32], index: 4, kind: input, shape index: {}]
  %s5 = inlined_call_operand.vmem [shape: f32[1,32], index: 5, kind: input, shape index: {}]
  %s6 = inlined_call_operand.vmem [shape: f32[1,32], index: 6, kind: input, shape index: {}]
  %s7 = inlined_call_operand.vmem [shape: bf16[32,32], index: 7, kind: input, shape index: {}]
  %s8 = inlined_call_operand.vmem [shape: f32[1,32], index: 8, kind: input, shape index: {}]
  %s9 = inlined_call_operand.hbm [shape: f32[2,8,32], index: 9, kind: output, shape index: {}]
  %s10 = sld [smem:[#allocation0]]
  $region85: #{tpu_custom_call.1} parent=0
    _
  %s12 = ssub.s32 1, %s10
  %s13 = scalar_select 0, %s12, %s10
  $region1: #{tpu_custom_call.1} parent=0
    #allocation6 [shape = 'u8[8192]{0}', space=vmem, size = 0x2000, scoped, tag = 'input window, operand 0']
    #allocation7 [shape = 's32[2]{0}', space=sflag, size = 0x8, scoped, tag = 'scoped memory for tpu_custom_call.1']
    #allocation8 [shape = 's32[2]{0}', space=sflag, size = 0x8, scoped, tag = 'scoped memory for tpu_custom_call.1']
    #allocation9 [shape = 'u8[8192]{0}', space=vmem, size = 0x2000, scoped, tag = 'input window, operand 1, single buffered']
    #allocation10 [shape = 's32[1]{0}', space=sflag, size = 0x4, scoped, tag = 'scoped memory for tpu_custom_call.1']
    #allocation11 [shape = 'u8[8192]{0}', space=vmem, size = 0x2000, scoped, tag = 'input window, operand 2, single buffered']
    #allocation12 [shape = 'u8[8192]{0}', space=vmem, size = 0x2000, scoped, tag = 'input window, operand 3, single buffered']
    #allocation13 [shape = 's32[1]{0}', space=sflag, size = 0x4, scoped, tag = 'scoped memory for tpu_custom_call.1']
    #allocation14 [shape = 'u8[8192]{0}', space=vmem, size = 0x2000, scoped, tag = 'output window, operand 0']
    %14 = vsyncpa [#allocation7], 0
    %s15 = scalar_lea.sflag [#allocation7], 1
    %16 = vsyncpa %s15, 0
    %17 = vsyncpa [#allocation10], 0
    %18 = vsyncpa [#allocation13], 0
    %19 = vsyncpa [#allocation8], 0
    %s20 = scalar_lea.sflag [#allocation8], 1
    %21 = vsyncpa %s20, 0
    loop: start=0, step=1, limit=4
    $region2: #{tpu_custom_call.1} parent=1 // loop_pre_header
      _
    $region3: #{tpu_custom_call.1} parent=1 // loop_header
      %s23 = sphi 0, %s27
      %p24 = scmp.ge.s32.totalorder %s23, 4
      %s33 = sphi 0, %s35
      %s36 = sphi 0, %s33
      %s37 = sphi 0, %s36
      %s53 = sphi 0, %s37
      %s57 = sphi 0, %s57
      %s59 = sphi 0, %s57
      %s60 = sphi 0, %s59
      %s74 = sphi 0, %s60
      %s78 = sphi 0, %s78
      %s80 = sphi 0, %s78
      %s81 = sphi 0, %s80
      %s95 = sphi 0, %s81
      %s99 = sphi 0, %s99
      %s101 = sphi 0, %s99
      %s102 = sphi 0, %s101
      %s116 = sphi 0, %s102
      %s120 = sphi 0, %s120
      %s122 = sphi 0, %s120
      %s123 = sphi 0, %s122
      %s137 = sphi 0, %s123
      %s141 = sphi 0, %s141
      %s143 = sphi 0, %s141
      %s144 = sphi 0, %s143
      %s158 = sphi 0, %s144
      %s162 = sphi 0, %s162
      %s164 = sphi 0, %s162
      %s165 = sphi 0, %s164
      %s179 = sphi 0, %s165
      %s183 = sphi 0, %s183
      %s185 = sphi 0, %s183
      %s186 = sphi 0, %s185
      %s200 = sphi 0, %s186
      %s204 = sphi 0, %s204
      %s206 = sphi 0, %s204
      %s207 = sphi 0, %s206
      %s221 = sphi 0, %s207
      %s227 = sphi 0, %s229
      %s230 = sphi 0, %s227
      %s231 = sphi 0, %s230
      %s247 = sphi 0, %s231
    $region4: #{tpu_custom_call.1} parent=1 // loop_header_branch
      %26 = sbr.rel (%p24) target = $region8
    $region5: #{tpu_custom_call.1} parent=1 // loop_body
      %s28 = ssub.s32 %s23, 1
      %s29 = ssub.s32 %s23, 2
      %s30 = sadd.s32 %s23, 1
      %s31 = ssub.s32 %s23, %s30
      %p32 = scmp.eq.s32.totalorder %s31, 0
      %s34 = sadd.s32 %s33, 1
      %s35 = scalar_select %p32, %s33, %s34
      %p38 = pneg %p32
      %p39 = scmp.eq.s32.totalorder %s23, 1
      %p40 = por %p38, %p39
      %p41 = scmp.ne.s32.totalorder %s33, %s36
      %p42 = scmp.eq.s32.totalorder %s23, 0
      %p43 = por %p41, %p42
      %p44 = scmp.ne.s32.totalorder %s33, %s36
      %p45 = scmp.eq.s32.totalorder %s28, 1
      %p46 = por %p44, %p45
      %p47 = scmp.ne.s32.totalorder %s36, %s37
      %p48 = scmp.eq.s32.totalorder %s28, 0
      %p49 = por %p47, %p48
      %p50 = scmp.ne.s32.totalorder %s36, %s37
      %p51 = scmp.eq.s32.totalorder %s29, 1
      %p52 = por %p50, %p51
      %p54 = scmp.ne.s32.totalorder %s37, %s53
      %p55 = scmp.eq.s32.totalorder %s29, 0
      %p56 = por %p54, %p55
      %s58 = sadd.s32 %s57, 1
      %p61 = scmp.eq.s32.totalorder %s23, 1
      %p62 = scmp.ne.s32.totalorder %s57, %s59
      %p63 = scmp.eq.s32.totalorder %s23, 0
      %p64 = por %p62, %p63
      %p65 = scmp.ne.s32.totalorder %s57, %s59
      %p66 = scmp.eq.s32.totalorder %s28, 1
      %p67 = por %p65, %p66
      %p68 = scmp.ne.s32.totalorder %s59, %s60
      %p69 = scmp.eq.s32.totalorder %s28, 0
      %p70 = por %p68, %p69
      %p71 = scmp.ne.s32.totalorder %s59, %s60
      %p72 = scmp.eq.s32.totalorder %s29, 1
      %p73 = por %p71, %p72
      %p75 = scmp.ne.s32.totalorder %s60, %s74
      %p76 = scmp.eq.s32.totalorder %s29, 0
      %p77 = por %p75, %p76
      %s79 = sadd.s32 %s78, 1
      %p82 = scmp.eq.s32.totalorder %s23, 1
      %p83 = scmp.ne.s32.totalorder %s78, %s80
      %p84 = scmp.eq.s32.totalorder %s23, 0
      %p85 = por %p83, %p84
      %p86 = scmp.ne.s32.totalorder %s78, %s80
      %p87 = scmp.eq.s32.totalorder %s28, 1
      %p88 = por %p86, %p87
      %p89 = scmp.ne.s32.totalorder %s80, %s81
      %p90 = scmp.eq.s32.totalorder %s28, 0
      %p91 = por %p89, %p90
      %p92 = scmp.ne.s32.totalorder %s80, %s81
      %p93 = scmp.eq.s32.totalorder %s29, 1
      %p94 = por %p92, %p93
      %p96 = scmp.ne.s32.totalorder %s81, %s95
      %p97 = scmp.eq.s32.totalorder %s29, 0
      %p98 = por %p96, %p97
      %s100 = sadd.s32 %s99, 1
      %p103 = scmp.eq.s32.totalorder %s23, 1
      %p104 = scmp.ne.s32.totalorder %s99, %s101
      %p105 = scmp.eq.s32.totalorder %s23, 0
      %p106 = por %p104, %p105
      %p107 = scmp.ne.s32.totalorder %s99, %s101
      %p108 = scmp.eq.s32.totalorder %s28, 1
      %p109 = por %p107, %p108
      %p110 = scmp.ne.s32.totalorder %s101, %s102
      %p111 = scmp.eq.s32.totalorder %s28, 0
      %p112 = por %p110, %p111
      %p113 = scmp.ne.s32.totalorder %s101, %s102
      %p114 = scmp.eq.s32.totalorder %s29, 1
      %p115 = por %p113, %p114
      %p117 = scmp.ne.s32.totalorder %s102, %s116
      %p118 = scmp.eq.s32.totalorder %s29, 0
      %p119 = por %p117, %p118
      %s121 = sadd.s32 %s120, 1
      %p124 = scmp.eq.s32.totalorder %s23, 1
      %p125 = scmp.ne.s32.totalorder %s120, %s122
      %p126 = scmp.eq.s32.totalorder %s23, 0
      %p127 = por %p125, %p126
      %p128 = scmp.ne.s32.totalorder %s120, %s122
      %p129 = scmp.eq.s32.totalorder %s28, 1
      %p130 = por %p128, %p129
      %p131 = scmp.ne.s32.totalorder %s122, %s123
      %p132 = scmp.eq.s32.totalorder %s28, 0
      %p133 = por %p131, %p132
      %p134 = scmp.ne.s32.totalorder %s122, %s123
      %p135 = scmp.eq.s32.totalorder %s29, 1
      %p136 = por %p134, %p135
      %p138 = scmp.ne.s32.totalorder %s123, %s137
      %p139 = scmp.eq.s32.totalorder %s29, 0
      %p140 = por %p138, %p139
      %s142 = sadd.s32 %s141, 1
      %p145 = scmp.eq.s32.totalorder %s23, 1
      %p146 = scmp.ne.s32.totalorder %s141, %s143
      %p147 = scmp.eq.s32.totalorder %s23, 0
      %p148 = por %p146, %p147
      %p149 = scmp.ne.s32.totalorder %s141, %s143
      %p150 = scmp.eq.s32.totalorder %s28, 1
      %p151 = por %p149, %p150
      %p152 = scmp.ne.s32.totalorder %s143, %s144
      %p153 = scmp.eq.s32.totalorder %s28, 0
      %p154 = por %p152, %p153
      %p155 = scmp.ne.s32.totalorder %s143, %s144
      %p156 = scmp.eq.s32.totalorder %s29, 1
      %p157 = por %p155, %p156
      %p159 = scmp.ne.s32.totalorder %s144, %s158
      %p160 = scmp.eq.s32.totalorder %s29, 0
      %p161 = por %p159, %p160
      %s163 = sadd.s32 %s162, 1
      %p166 = scmp.eq.s32.totalorder %s23, 1
      %p167 = scmp.ne.s32.totalorder %s162, %s164
      %p168 = scmp.eq.s32.totalorder %s23, 0
      %p169 = por %p167, %p168
      %p170 = scmp.ne.s32.totalorder %s162, %s164
      %p171 = scmp.eq.s32.totalorder %s28, 1
      %p172 = por %p170, %p171
      %p173 = scmp.ne.s32.totalorder %s164, %s165
      %p174 = scmp.eq.s32.totalorder %s28, 0
      %p175 = por %p173, %p174
      %p176 = scmp.ne.s32.totalorder %s164, %s165
      %p177 = scmp.eq.s32.totalorder %s29, 1
      %p178 = por %p176, %p177
      %p180 = scmp.ne.s32.totalorder %s165, %s179
      %p181 = scmp.eq.s32.totalorder %s29, 0
      %p182 = por %p180, %p181
      %s184 = sadd.s32 %s183, 1
      %p187 = scmp.eq.s32.totalorder %s23, 1
      %p188 = scmp.ne.s32.totalorder %s183, %s185
      %p189 = scmp.eq.s32.totalorder %s23, 0
      %p190 = por %p188, %p189
      %p191 = scmp.ne.s32.totalorder %s183, %s185
      %p192 = scmp.eq.s32.totalorder %s28, 1
      %p193 = por %p191, %p192
      %p194 = scmp.ne.s32.totalorder %s185, %s186
      %p195 = scmp.eq.s32.totalorder %s28, 0
      %p196 = por %p194, %p195
      %p197 = scmp.ne.s32.totalorder %s185, %s186
      %p198 = scmp.eq.s32.totalorder %s29, 1
      %p199 = por %p197, %p198
      %p201 = scmp.ne.s32.totalorder %s186, %s200
      %p202 = scmp.eq.s32.totalorder %s29, 0
      %p203 = por %p201, %p202
      %s205 = sadd.s32 %s204, 1
      %p208 = scmp.eq.s32.totalorder %s23, 1
      %p209 = scmp.ne.s32.totalorder %s204, %s206
      %p210 = scmp.eq.s32.totalorder %s23, 0
      %p211 = por %p209, %p210
      %p212 = scmp.ne.s32.totalorder %s204, %s206
      %p213 = scmp.eq.s32.totalorder %s28, 1
      %p214 = por %p212, %p213
      %p215 = scmp.ne.s32.totalorder %s206, %s207
      %p216 = scmp.eq.s32.totalorder %s28, 0
      %p217 = por %p215, %p216
      %p218 = scmp.ne.s32.totalorder %s206, %s207
      %p219 = scmp.eq.s32.totalorder %s29, 1
      %p220 = por %p218, %p219
      %p222 = scmp.ne.s32.totalorder %s207, %s221
      %p223 = scmp.eq.s32.totalorder %s29, 0
      %p224 = por %p222, %p223
      %s225 = ssub.s32 %s23, %s30
      %p226 = scmp.eq.s32.totalorder %s225, 0
      %s228 = sadd.s32 %s227, 1
      %s229 = scalar_select %p226, %s227, %s228
      %p232 = pneg %p226
      %p233 = scmp.eq.s32.totalorder %s23, 1
      %p234 = por %p232, %p233
      %p235 = scmp.ne.s32.totalorder %s227, %s230
      %p236 = scmp.eq.s32.totalorder %s23, 0
      %p237 = por %p235, %p236
      %p238 = scmp.ne.s32.totalorder %s227, %s230
      %p239 = scmp.eq.s32.totalorder %s28, 1
      %p240 = por %p238, %p239
      %p241 = scmp.ne.s32.totalorder %s230, %s231
      %p242 = scmp.eq.s32.totalorder %s28, 0
      %p243 = por %p241, %p242
      %p244 = scmp.ne.s32.totalorder %s230, %s231
      %p245 = scmp.eq.s32.totalorder %s29, 1
      %p246 = por %p244, %p245
      %p248 = scmp.ne.s32.totalorder %s231, %s247
      %p249 = scmp.eq.s32.totalorder %s29, 0
      %p250 = por %p248, %p249
      %p251 = scmp.le.s32.totalorder 1, %s23
      %p252 = scmp.lt.s32.totalorder %s23, 3
      %p253 = pnand %p251, %p252
      %p254 = pneg %p253
      // Predicated region
      $region9: #{tpu_custom_call.1} parent=5 // pred_check
        _
      $region10: #{tpu_custom_call.1} parent=5 // pred_check_branch
        %256 = sbr.rel (%p253) target = $region12
      $region11: #{tpu_custom_call.1} parent=5 // pred_region
        %s257 = ssub.s32 %s23, 1
        // Predicated region
        $region13: #{tpu_custom_call.1} parent=11 // pred_check
          %p258 = pneg %p70
        $region14: #{tpu_custom_call.1} parent=11 // pred_check_branch
          %260 = sbr.rel (%p258) target = $region16
        $region15: #{tpu_custom_call.1} parent=11 // pred_region
          %s262 = ssub.s32 256, 256
          %263 = vsyncadd [#allocation10], %s262
          %s264 = sshll.u32 [#allocation9], 4
          %s265 = int_to_ptr.vmem [resolvable:$true] %s264
          %270 = dma.hbm_to_vmem [thread:$0]  %s1, 256, %s265, [#allocation10], 64, 64, 4
        $region16: #{tpu_custom_call.1} parent=11 // pred_fallthru
          _
        // Predicated region
        $region17: #{tpu_custom_call.1} parent=11 // pred_check
          %p271 = pneg %p91
        $region18: #{tpu_custom_call.1} parent=11 // pred_check_branch
          %273 = sbr.rel (%p271) target = $region20
        $region19: #{tpu_custom_call.1} parent=11 // pred_region
          %s275 = ssub.s32 256, 256
          %276 = vsyncadd [#allocation10], %s275
          %s277 = sshll.u32 [#allocation11], 4
          %s278 = int_to_ptr.vmem [resolvable:$true] %s277
          %283 = dma.hbm_to_vmem [thread:$0]  %s2, 256, %s278, [#allocation10], 64, 64, 4
        $region20: #{tpu_custom_call.1} parent=11 // pred_fallthru
          _
        // Predicated region
        $region21: #{tpu_custom_call.1} parent=11 // pred_check
          %p284 = pneg %p112
        $region22: #{tpu_custom_call.1} parent=11 // pred_check_branch
          %286 = sbr.rel (%p284) target = $region24
        $region23: #{tpu_custom_call.1} parent=11 // pred_region
          %s288 = ssub.s32 256, 256
          %289 = vsyncadd [#allocation13], %s288
          %s290 = sshll.u32 [#allocation12], 4
          %s291 = int_to_ptr.vmem [resolvable:$true] %s290
          %296 = dma.hbm_to_vmem [thread:$0]  %s3, 256, %s291, [#allocation13], 64, 64, 4
        $region24: #{tpu_custom_call.1} parent=11 // pred_fallthru
          _
        // Predicated region
        $region25: #{tpu_custom_call.1} parent=11 // pred_check
          %p297 = pneg %p133
        $region26: #{tpu_custom_call.1} parent=11 // pred_check_branch
          %299 = sbr.rel (%p297) target = $region28
        $region27: #{tpu_custom_call.1} parent=11 // pred_region
          _
        $region28: #{tpu_custom_call.1} parent=11 // pred_fallthru
          _
        // Predicated region
        $region29: #{tpu_custom_call.1} parent=11 // pred_check
          %p300 = pneg %p154
        $region30: #{tpu_custom_call.1} parent=11 // pred_check_branch
          %302 = sbr.rel (%p300) target = $region32
        $region31: #{tpu_custom_call.1} parent=11 // pred_region
          _
        $region32: #{tpu_custom_call.1} parent=11 // pred_fallthru
          _
        // Predicated region
        $region33: #{tpu_custom_call.1} parent=11 // pred_check
          %p303 = pneg %p175
        $region34: #{tpu_custom_call.1} parent=11 // pred_check_branch
          %305 = sbr.rel (%p303) target = $region36
        $region35: #{tpu_custom_call.1} parent=11 // pred_region
          _
        $region36: #{tpu_custom_call.1} parent=11 // pred_fallthru
          _
        // Predicated region
        $region37: #{tpu_custom_call.1} parent=11 // pred_check
          %p306 = pneg %p196
        $region38: #{tpu_custom_call.1} parent=11 // pred_check_branch
          %308 = sbr.rel (%p306) target = $region40
        $region39: #{tpu_custom_call.1} parent=11 // pred_region
          _
        $region40: #{tpu_custom_call.1} parent=11 // pred_fallthru
          _
        // Predicated region
        $region41: #{tpu_custom_call.1} parent=11 // pred_check
          %p309 = pneg %p217
        $region42: #{tpu_custom_call.1} parent=11 // pred_check_branch
          %311 = sbr.rel (%p309) target = $region44
        $region43: #{tpu_custom_call.1} parent=11 // pred_region
          _
        $region44: #{tpu_custom_call.1} parent=11 // pred_fallthru
          _
      $region12: #{tpu_custom_call.1} parent=5 // pred_fallthru
        _
      %p312 = scmp.lt.s32.totalorder %s23, 2
      // Predicated region
      $region45: #{tpu_custom_call.1} parent=5 // pred_check
        %p313 = pneg %p312
      $region46: #{tpu_custom_call.1} parent=5 // pred_check_branch
        %315 = sbr.rel (%p313) target = $region48
      $region47: #{tpu_custom_call.1} parent=5 // pred_region
        // Predicated region
        $region49: #{tpu_custom_call.1} parent=47 // pred_check
          %p316 = pneg %p43
        $region50: #{tpu_custom_call.1} parent=47 // pred_check_branch
          %318 = sbr.rel (%p316) target = $region52
        $region51: #{tpu_custom_call.1} parent=47 // pred_region
          %s319 = sand.u32 %s33, 1
          %s320 = scalar_lea.sflag [#allocation7], %s319
          %s321 = sand.u32 %s33, 1
          %s322 = smul.addr %s321, 8
          %s323 = scalar_lea.vmem [#allocation6], %s322
          %s325 = ssub.s32 128, 128
          %326 = vsyncadd %s320, %s325
          %s327 = smul.addr %s23, 128
          %s328 = scalar_lea.hbm %s0, %s327
          %s330 = sshll.u32 %s323, 4
          %s331 = int_to_ptr.vmem [resolvable:$true] %s330
          %333 = dma.hbm_to_vmem [thread:$0]  %s328, 128, %s331, %s320
        $region52: #{tpu_custom_call.1} parent=47 // pred_fallthru
          _
      $region48: #{tpu_custom_call.1} parent=5 // pred_fallthru
        _
      %p334 = scmp.le.s32.totalorder 1, %s23
      %p335 = scmp.lt.s32.totalorder %s23, 3
      %p336 = pnand %p334, %p335
      %p337 = pneg %p336
      // Predicated region
      $region53: #{tpu_custom_call.1} parent=5 // pred_check
        _
      $region54: #{tpu_custom_call.1} parent=5 // pred_check_branch
        %339 = sbr.rel (%p336) target = $region56
      $region55: #{tpu_custom_call.1} parent=5 // pred_region
        %s340 = ssub.s32 %s23, 1
        %s341 = sand.u32 %s36, 1
        %s342 = scalar_lea.sflag [#allocation7], %s341
        %s343 = sand.u32 %s36, 1
        %s344 = smul.addr %s343, 8
        %s345 = scalar_lea.vmem [#allocation6], %s344
        // Predicated region
        $region57: #{tpu_custom_call.1} parent=55 // pred_check
          %p346 = pneg %p49
        $region58: #{tpu_custom_call.1} parent=55 // pred_check_branch
          %348 = sbr.rel (%p346) target = $region60
        $region59: #{tpu_custom_call.1} parent=55 // pred_region
          %349 = dma.done %s342, 128
        $region60: #{tpu_custom_call.1} parent=55 // pred_fallthru
          _
        // Predicated region
        $region61: #{tpu_custom_call.1} parent=55 // pred_check
          %p350 = pneg %p70
        $region62: #{tpu_custom_call.1} parent=55 // pred_check_branch
          %352 = sbr.rel (%p350) target = $region64
        $region63: #{tpu_custom_call.1} parent=55 // pred_region
          %353 = dma.done [#allocation10], 256
        $region64: #{tpu_custom_call.1} parent=55 // pred_fallthru
          _
        // Predicated region
        $region65: #{tpu_custom_call.1} parent=55 // pred_check
          %p354 = pneg %p91
        $region66: #{tpu_custom_call.1} parent=55 // pred_check_branch
          %356 = sbr.rel (%p354) target = $region68
        $region67: #{tpu_custom_call.1} parent=55 // pred_region
          %357 = dma.done [#allocation10], 256
        $region68: #{tpu_custom_call.1} parent=55 // pred_fallthru
          _
        // Predicated region
        $region69: #{tpu_custom_call.1} parent=55 // pred_check
          %p358 = pneg %p112
        $region70: #{tpu_custom_call.1} parent=55 // pred_check_branch
          %360 = sbr.rel (%p358) target = $region72
        $region71: #{tpu_custom_call.1} parent=55 // pred_region
          %361 = dma.done [#allocation13], 256
        $region72: #{tpu_custom_call.1} parent=55 // pred_fallthru
          _
        %s362 = sand.u32 %s36, 1
        %s363 = scalar_lea.sflag [#allocation7], %s362
        %s364 = sand.u32 %s36, 1
        %s365 = smul.addr %s364, 8
        %s366 = scalar_lea.vmem [#allocation6], %s365
        %p367 = pneg %p49
        %p368 = pneg %p46
        %p369 = pneg %p70
        %p370 = pneg %p67
        %p371 = pneg %p91
        %p372 = pneg %p88
        %p373 = pneg %p112
        %p374 = pneg %p109
        %p375 = pneg %p133
        %p376 = pneg %p130
        %p377 = pneg %p154
        %p378 = pneg %p151
        %p379 = pneg %p175
        %p380 = pneg %p172
        %p381 = pneg %p196
        %p382 = pneg %p193
        %p383 = pneg %p217
        %p384 = pneg %p214
        %p385 = pneg %p243
        %p386 = pneg %p240
        %s387 = sand.u32 %s230, 1
        %s388 = scalar_lea.sflag [#allocation8], %s387
        %s389 = sand.u32 %s230, 1
        %s390 = smul.addr %s389, 8
        %s391 = scalar_lea.vmem [#allocation14], %s390
        %v393 = vld [vmem:[%s345] sm:$0xff]
        %v394 = vpack.c.bf16 %v393, %v393
        %v395 = vld [vmem:[#allocation9] sm:$0xf]
        %v396 = vld [vmem:[#allocation9 + $0x4] sm:$0xf]
        %v397 = vld [vmem:[#allocation9 + $0x8] sm:$0xf]
        %v398 = vld [vmem:[#allocation9 + $0xc] sm:$0xf]
        %v399 = vld [vmem:[%s4] sm:$0x1]
        %v401 = vlaneseq
        %v402 = vshrl.u32 %v401, 7
        %v403 = vsub.s32 0, %v402
        %v404 = vrot.slane %v399, %v403
        %v410 = vunpack.c.l.b16 %v395
        %v411 = vunpack.c.l.b16 %v396
        %v412 = vunpack.c.l.b16 %v397
        %v413 = vunpack.c.l.b16 %v398
        %v414 = vpack.c.b16 %v411, %v410
        %v415 = vpack.c.b16 %v413, %v412
        %vm418 = vcmask 261120
        %v420 = vsel %vm418, %v394, 0
        %422 = vmatprep.subr.bf16.mxu0 0
        %423 = vmatpush1.bf16.msra.mxu0 %v414
        %424 = vmatprep.subr.bf16.mxu0 0
        %425 = vmatpush1.bf16.msra.mxu0 %v415
        %426 = vmatprep.subr.bf16.mxu0 0
        %427 = vmatpush1.bf16.msra.mxu0 0
        %428 = vmatprep.subr.bf16.mxu0 0
        %429 = vmatpush1.bf16.msra.mxu0 0
        %430 = vmatprep.subr.bf16.mxu0 0
        %431 = vmatpush1.bf16.msra.mxu0 0
        %432 = vmatprep.subr.bf16.mxu0 0
        %433 = vmatpush1.bf16.msra.mxu0 0
        %434 = vmatprep.subr.bf16.mxu0 0
        %435 = vmatpush1.bf16.msra.mxu0 0
        %436 = vmatprep.subr.bf16.mxu0 0
        %437 = vmatpush1.bf16.msra.mxu0 0
        %438 = vmatprep.subr.bf16.mxu0 0
        %439 = vmatpush1.bf16.msra.mxu0 0
        %440 = vmatprep.subr.bf16.mxu0 0
        %441 = vmatpush1.bf16.msra.mxu0 0
        %442 = vmatprep.subr.bf16.mxu0 0
        %443 = vmatpush1.bf16.msra.mxu0 0
        %444 = vmatprep.subr.bf16.mxu0 0
        %445 = vmatpush1.bf16.msra.mxu0 0
        %446 = vmatprep.subr.bf16.mxu0 0
        %447 = vmatpush1.bf16.msra.mxu0 0
        %448 = vmatprep.subr.bf16.mxu0 0
        %449 = vmatpush1.bf16.msra.mxu0 0
        %450 = vmatprep.subr.bf16.mxu0 0
        %451 = vmatpush1.bf16.msra.mxu0 0
        %452 = vmatprep.subr.bf16.mxu0 0
        %453 = vmatpush1.bf16.msra.mxu0 0
        %454 = vmatprep.mubr.bf16.mxu0 0
        %455 = vmatmul.mubr.bf16.gmra.mrb[0].mxu0 %v420
        %v456 = vpop.f32.mrb[0].mxu0
        %v457 = vadd.f32 %v404, %v456
        %v458 = vpop.f32.mrb[0].mxu0
        %v459 = vpop.f32.mrb[0].mxu0
        %v460 = vpop.f32.mrb[0].mxu0
        %461 = vdwg.mxu0
        %v462 = vpack.c.bf16 %v457, %v457
        %vm463 = vcmask 257024
        %464 = vst.msk [vmem:[#allocation2] sm:$0xf] %vm463, %v462
        %v465 = vld [vmem:[#allocation11] sm:$0xf]
        %v466 = vld [vmem:[#allocation11 + $0x4] sm:$0xf]
        %v467 = vld [vmem:[#allocation11 + $0x8] sm:$0xf]
        %v468 = vld [vmem:[#allocation11 + $0xc] sm:$0xf]
        %v469 = vld [vmem:[%s5] sm:$0x1]
        %v471 = vlaneseq
        %v472 = vshrl.u32 %v471, 7
        %v473 = vsub.s32 0, %v472
        %v474 = vrot.slane %v469, %v473
        %v480 = vunpack.c.l.b16 %v465
        %v481 = vunpack.c.l.b16 %v466
        %v482 = vunpack.c.l.b16 %v467
        %v483 = vunpack.c.l.b16 %v468
        %v484 = vpack.c.b16 %v481, %v480
        %v485 = vpack.c.b16 %v483, %v482
        %488 = vmatprep.subr.bf16.mxu0 0
        %489 = vmatpush1.bf16.msra.mxu0 %v484
        %490 = vmatprep.subr.bf16.mxu0 0
        %491 = vmatpush1.bf16.msra.mxu0 %v485
        %492 = vmatprep.subr.bf16.mxu0 0
        %493 = vmatpush1.bf16.msra.mxu0 0
        %494 = vmatprep.subr.bf16.mxu0 0
        %495 = vmatpush1.bf16.msra.mxu0 0
        %496 = vmatprep.subr.bf16.mxu0 0
        %497 = vmatpush1.bf16.msra.mxu0 0
        %498 = vmatprep.subr.bf16.mxu0 0
        %499 = vmatpush1.bf16.msra.mxu0 0
        %500 = vmatprep.subr.bf16.mxu0 0
        %501 = vmatpush1.bf16.msra.mxu0 0
        %502 = vmatprep.subr.bf16.mxu0 0
        %503 = vmatpush1.bf16.msra.mxu0 0
        %504 = vmatprep.subr.bf16.mxu0 0
        %505 = vmatpush1.bf16.msra.mxu0 0
        %506 = vmatprep.subr.bf16.mxu0 0
        %507 = vmatpush1.bf16.msra.mxu0 0
        %508 = vmatprep.subr.bf16.mxu0 0
        %509 = vmatpush1.bf16.msra.mxu0 0
        %510 = vmatprep.subr.bf16.mxu0 0
        %511 = vmatpush1.bf16.msra.mxu0 0
        %512 = vmatprep.subr.bf16.mxu0 0
        %513 = vmatpush1.bf16.msra.mxu0 0
        %514 = vmatprep.subr.bf16.mxu0 0
        %515 = vmatpush1.bf16.msra.mxu0 0
        %516 = vmatprep.subr.bf16.mxu0 0
        %517 = vmatpush1.bf16.msra.mxu0 0
        %518 = vmatprep.subr.bf16.mxu0 0
        %519 = vmatpush1.bf16.msra.mxu0 0
        %520 = vmatprep.mubr.bf16.mxu0 0
        %521 = vmatmul.mubr.bf16.gmra.mrb[0].mxu0 %v420
        %v522 = vpop.f32.mrb[0].mxu0
        %v523 = vadd.f32 %v474, %v522
        %v524 = vpop.f32.mrb[0].mxu0
        %v525 = vpop.f32.mrb[0].mxu0
        %v526 = vpop.f32.mrb[0].mxu0
        %527 = vdwg.mxu0
        %v528 = vpack.c.bf16 %v523, %v523
        %529 = vst.msk [vmem:[#allocation3] sm:$0xf] %vm463, %v528
        %v530 = vld [vmem:[#allocation12] sm:$0xf]
        %v531 = vld [vmem:[#allocation12 + $0x4] sm:$0xf]
        %v532 = vld [vmem:[#allocation12 + $0x8] sm:$0xf]
        %v533 = vld [vmem:[#allocation12 + $0xc] sm:$0xf]
        %v534 = vld [vmem:[%s6] sm:$0x1]
        %v536 = vlaneseq
        %v537 = vshrl.u32 %v536, 7
        %v538 = vsub.s32 0, %v537
        %v539 = vrot.slane %v534, %v538
        %v545 = vunpack.c.l.b16 %v530
        %v546 = vunpack.c.l.b16 %v531
        %v547 = vunpack.c.l.b16 %v532
        %v548 = vunpack.c.l.b16 %v533
        %v549 = vpack.c.b16 %v546, %v545
        %v550 = vpack.c.b16 %v548, %v547
        %553 = vmatprep.subr.bf16.mxu0 0
        %554 = vmatpush1.bf16.msra.mxu0 %v549
        %555 = vmatprep.subr.bf16.mxu0 0
        %556 = vmatpush1.bf16.msra.mxu0 %v550
        %557 = vmatprep.subr.bf16.mxu0 0
        %558 = vmatpush1.bf16.msra.mxu0 0
        %559 = vmatprep.subr.bf16.mxu0 0
        %560 = vmatpush1.bf16.msra.mxu0 0
        %561 = vmatprep.subr.bf16.mxu0 0
        %562 = vmatpush1.bf16.msra.mxu0 0
        %563 = vmatprep.subr.bf16.mxu0 0
        %564 = vmatpush1.bf16.msra.mxu0 0
        %565 = vmatprep.subr.bf16.mxu0 0
        %566 = vmatpush1.bf16.msra.mxu0 0
        %567 = vmatprep.subr.bf16.mxu0 0
        %568 = vmatpush1.bf16.msra.mxu0 0
        %569 = vmatprep.subr.bf16.mxu0 0
        %570 = vmatpush1.bf16.msra.mxu0 0
        %571 = vmatprep.subr.bf16.mxu0 0
        %572 = vmatpush1.bf16.msra.mxu0 0
        %573 = vmatprep.subr.bf16.mxu0 0
        %574 = vmatpush1.bf16.msra.mxu0 0
        %575 = vmatprep.subr.bf16.mxu0 0
        %576 = vmatpush1.bf16.msra.mxu0 0
        %577 = vmatprep.subr.bf16.mxu0 0
        %578 = vmatpush1.bf16.msra.mxu0 0
        %579 = vmatprep.subr.bf16.mxu0 0
        %580 = vmatpush1.bf16.msra.mxu0 0
        %581 = vmatprep.subr.bf16.mxu0 0
        %582 = vmatpush1.bf16.msra.mxu0 0
        %583 = vmatprep.subr.bf16.mxu0 0
        %584 = vmatpush1.bf16.msra.mxu0 0
        %585 = vmatprep.mubr.bf16.mxu0 0
        %586 = vmatmul.mubr.bf16.gmra.mrb[0].mxu0 %v420
        %v587 = vpop.f32.mrb[0].mxu0
        %v588 = vadd.f32 %v539, %v587
        %v589 = vpop.f32.mrb[0].mxu0
        %v590 = vpop.f32.mrb[0].mxu0
        %v591 = vpop.f32.mrb[0].mxu0
        %592 = vdwg.mxu0
        %v593 = vpack.c.bf16 %v588, %v588
        %594 = vst.msk [vmem:[#allocation4] sm:$0xf] %vm463, %v593
        %v595 = vld [vmem:[%s7] sm:$0xf]
        %v596 = vld [vmem:[#allocation2] sm:$0xf]
        %v597 = vld [vmem:[#allocation3] sm:$0xf]
        %v598 = vld [vmem:[#allocation4] sm:$0xf]
        %vm599 = vcmask 64512
        %v601 = vsel %vm599, %v596, 0
        %v604 = vsel %vm599, %v597, 0
        %606 = vmatprep.subr.bf16.mxu0 0
        %607 = vmatpush1.bf16.xpose.msra.mxu0 %v604
        %608 = vmatprep.subr.bf16.mxu0 0
        %609 = vmatpush1.bf16.xpose.msra.mxu0 0
        %610 = vmatprep.subr.bf16.mxu0 0
        %611 = vmatpush1.bf16.xpose.msra.mxu0 0
        %612 = vmatprep.subr.bf16.mxu0 0
        %613 = vmatpush1.bf16.xpose.msra.mxu0 0
        %614 = vmatprep.subr.bf16.mxu0 0
        %615 = vmatpush1.bf16.xpose.msra.mxu0 0
        %616 = vmatprep.subr.bf16.mxu0 0
        %617 = vmatpush1.bf16.xpose.msra.mxu0 0
        %618 = vmatprep.subr.bf16.mxu0 0
        %619 = vmatpush1.bf16.xpose.msra.mxu0 0
        %620 = vmatprep.subr.bf16.mxu0 0
        %621 = vmatpush1.bf16.xpose.msra.mxu0 0
        %622 = vmatprep.subr.bf16.mxu0 0
        %623 = vmatpush1.bf16.xpose.msra.mxu0 0
        %624 = vmatprep.subr.bf16.mxu0 0
        %625 = vmatpush1.bf16.xpose.msra.mxu0 0
        %626 = vmatprep.subr.bf16.mxu0 0
        %627 = vmatpush1.bf16.xpose.msra.mxu0 0
        %628 = vmatprep.subr.bf16.mxu0 0
        %629 = vmatpush1.bf16.xpose.msra.mxu0 0
        %630 = vmatprep.subr.bf16.mxu0 0
        %631 = vmatpush1.bf16.xpose.msra.mxu0 0
        %632 = vmatprep.subr.bf16.mxu0 0
        %633 = vmatpush1.bf16.xpose.msra.mxu0 0
        %634 = vmatprep.subr.bf16.mxu0 0
        %635 = vmatpush1.bf16.xpose.msra.mxu0 0
        %636 = vmatprep.subr.bf16.mxu0 0
        %637 = vmatpush1.bf16.xpose.msra.mxu0 0
        %638 = vmatprep.mubr.bf16.mxu0 0
        %639 = vmatmul.mubr.bf16.gmra.mrb[0].mxu0 %v601
        %v640 = vpop.f32.mrb[0].mxu0
        %v641 = vadd.f32 0.0, %v640
        %v642 = vpop.f32.mrb[0].mxu0
        %v643 = vpop.f32.mrb[0].mxu0
        %v644 = vpop.f32.mrb[0].mxu0
        %645 = vdwg.mxu0
        %v646 = vsel %vm599, %v641, -inf
        %647 = vmax.xlane.f32.xlu0 %v646
        %v648 = vpop.xlane.xlu0 %647
        %v649 = vsub.f32 %v641, %v648
        %v650 = vmul.f32 %v649, 1.442695
        %v651 = vpow.pop %v650
        %v652 = vsel %vm599, %v651, 0.0
        %653 = vadd.xlane.f32.xlu0 %v652
        %v654 = vpop.xlane.xlu0 %653
        %v655 = vrcp.pop %v654
        %v656 = vpack.c.bf16 %v651, %v651
        %v658 = vsel %vm599, %v656, 0
        %vm660 = vcmask 1043456
        %v662 = vsel %vm660, %v598, 0
        %664 = vmatprep.subr.bf16.mxu0 0
        %665 = vmatpush1.bf16.msra.mxu0 %v662
        %666 = vmatprep.subr.bf16.mxu0 0
        %667 = vmatpush1.bf16.msra.mxu0 0
        %668 = vmatprep.subr.bf16.mxu0 0
        %669 = vmatpush1.bf16.msra.mxu0 0
        %670 = vmatprep.subr.bf16.mxu0 0
        %671 = vmatpush1.bf16.msra.mxu0 0
        %672 = vmatprep.subr.bf16.mxu0 0
        %673 = vmatpush1.bf16.msra.mxu0 0
        %674 = vmatprep.subr.bf16.mxu0 0
        %675 = vmatpush1.bf16.msra.mxu0 0
        %676 = vmatprep.subr.bf16.mxu0 0
        %677 = vmatpush1.bf16.msra.mxu0 0
        %678 = vmatprep.subr.bf16.mxu0 0
        %679 = vmatpush1.bf16.msra.mxu0 0
        %680 = vmatprep.subr.bf16.mxu0 0
        %681 = vmatpush1.bf16.msra.mxu0 0
        %682 = vmatprep.subr.bf16.mxu0 0
        %683 = vmatpush1.bf16.msra.mxu0 0
        %684 = vmatprep.subr.bf16.mxu0 0
        %685 = vmatpush1.bf16.msra.mxu0 0
        %686 = vmatprep.subr.bf16.mxu0 0
        %687 = vmatpush1.bf16.msra.mxu0 0
        %688 = vmatprep.subr.bf16.mxu0 0
        %689 = vmatpush1.bf16.msra.mxu0 0
        %690 = vmatprep.subr.bf16.mxu0 0
        %691 = vmatpush1.bf16.msra.mxu0 0
        %692 = vmatprep.subr.bf16.mxu0 0
        %693 = vmatpush1.bf16.msra.mxu0 0
        %694 = vmatprep.subr.bf16.mxu0 0
        %695 = vmatpush1.bf16.msra.mxu0 0
        %696 = vmatprep.mubr.bf16.mxu0 0
        %697 = vmatmul.mubr.bf16.gmra.mrb[0].mxu0 %v658
        %v698 = vpop.f32.mrb[0].mxu0
        %v699 = vadd.f32 0.0, %v698
        %v700 = vpop.f32.mrb[0].mxu0
        %v701 = vpop.f32.mrb[0].mxu0
        %v702 = vpop.f32.mrb[0].mxu0
        %703 = vdwg.mxu0
        %v704 = vmul.f32 %v699, %v655
        %v705 = vpack.c.bf16 %v704, %v704
        %v707 = vsel %vm599, %v705, 0
        %v710 = vsel %vm660, %v595, 0
        %712 = vmatprep.subr.bf16.mxu0 0
        %713 = vmatpush1.bf16.msra.mxu0 %v710
        %714 = vmatprep.subr.bf16.mxu0 0
        %715 = vmatpush1.bf16.msra.mxu0 0
        %716 = vmatprep.subr.bf16.mxu0 0
        %717 = vmatpush1.bf16.msra.mxu0 0
        %718 = vmatprep.subr.bf16.mxu0 0
        %719 = vmatpush1.bf16.msra.mxu0 0
        %720 = vmatprep.subr.bf16.mxu0 0
        %721 = vmatpush1.bf16.msra.mxu0 0
        %722 = vmatprep.subr.bf16.mxu0 0
        %723 = vmatpush1.bf16.msra.mxu0 0
        %724 = vmatprep.subr.bf16.mxu0 0
        %725 = vmatpush1.bf16.msra.mxu0 0
        %726 = vmatprep.subr.bf16.mxu0 0
        %727 = vmatpush1.bf16.msra.mxu0 0
        %728 = vmatprep.subr.bf16.mxu0 0
        %729 = vmatpush1.bf16.msra.mxu0 0
        %730 = vmatprep.subr.bf16.mxu0 0
        %731 = vmatpush1.bf16.msra.mxu0 0
        %732 = vmatprep.subr.bf16.mxu0 0
        %733 = vmatpush1.bf16.msra.mxu0 0
        %734 = vmatprep.subr.bf16.mxu0 0
        %735 = vmatpush1.bf16.msra.mxu0 0
        %736 = vmatprep.subr.bf16.mxu0 0
        %737 = vmatpush1.bf16.msra.mxu0 0
        %738 = vmatprep.subr.bf16.mxu0 0
        %739 = vmatpush1.bf16.msra.mxu0 0
        %740 = vmatprep.subr.bf16.mxu0 0
        %741 = vmatpush1.bf16.msra.mxu0 0
        %742 = vmatprep.subr.bf16.mxu0 0
        %743 = vmatpush1.bf16.msra.mxu0 0
        %744 = vmatprep.mubr.bf16.mxu0 0
        %745 = vmatmul.mubr.bf16.gmra.mrb[0].mxu0 %v707
        %v746 = vpop.f32.mrb[0].mxu0
        %v747 = vadd.f32 0.0, %v746
        %v748 = vpop.f32.mrb[0].mxu0
        %v749 = vpop.f32.mrb[0].mxu0
        %v750 = vpop.f32.mrb[0].mxu0
        %751 = vdwg.mxu0
        %752 = vst.msk [vmem:[#allocation5] sm:$0xff] %vm418, %v747
        %v753 = vld [vmem:[%s7 + $0x4] sm:$0xf]
        %v754 = vld [vmem:[#allocation2] sm:$0xf]
        %v755 = vld [vmem:[#allocation3] sm:$0xf]
        %v756 = vld [vmem:[#allocation4] sm:$0xf]
        %v758 = vunpack.c.l.b16 %v754
        %v759 = vpack.c.b16 %v758, %v758
        %760 = vrot.lane.b32.xlu0 %v759, 120
        %v761 = vpop.permute.xlu0 %760
        %v763 = vunpack.c.l.b16 %v755
        %v764 = vpack.c.b16 %v763, %v763
        %765 = vrot.lane.b32.xlu0 %v764, 120
        %v766 = vpop.permute.xlu0 %765
        %v768 = vsel %vm599, %v761, 0
        %v771 = vsel %vm599, %v766, 0
        %773 = vmatprep.subr.bf16.mxu0 0
        %774 = vmatpush1.bf16.xpose.msra.mxu0 %v771
        %775 = vmatprep.subr.bf16.mxu0 0
        %776 = vmatpush1.bf16.xpose.msra.mxu0 0
        %777 = vmatprep.subr.bf16.mxu0 0
        %778 = vmatpush1.bf16.xpose.msra.mxu0 0
        %779 = vmatprep.subr.bf16.mxu0 0
        %780 = vmatpush1.bf16.xpose.msra.mxu0 0
        %781 = vmatprep.subr.bf16.mxu0 0
        %782 = vmatpush1.bf16.xpose.msra.mxu0 0
        %783 = vmatprep.subr.bf16.mxu0 0
        %784 = vmatpush1.bf16.xpose.msra.mxu0 0
        %785 = vmatprep.subr.bf16.mxu0 0
        %786 = vmatpush1.bf16.xpose.msra.mxu0 0
        %787 = vmatprep.subr.bf16.mxu0 0
        %788 = vmatpush1.bf16.xpose.msra.mxu0 0
        %789 = vmatprep.subr.bf16.mxu0 0
        %790 = vmatpush1.bf16.xpose.msra.mxu0 0
        %791 = vmatprep.subr.bf16.mxu0 0
        %792 = vmatpush1.bf16.xpose.msra.mxu0 0
        %793 = vmatprep.subr.bf16.mxu0 0
        %794 = vmatpush1.bf16.xpose.msra.mxu0 0
        %795 = vmatprep.subr.bf16.mxu0 0
        %796 = vmatpush1.bf16.xpose.msra.mxu0 0
        %797 = vmatprep.subr.bf16.mxu0 0
        %798 = vmatpush1.bf16.xpose.msra.mxu0 0
        %799 = vmatprep.subr.bf16.mxu0 0
        %800 = vmatpush1.bf16.xpose.msra.mxu0 0
        %801 = vmatprep.subr.bf16.mxu0 0
        %802 = vmatpush1.bf16.xpose.msra.mxu0 0
        %803 = vmatprep.subr.bf16.mxu0 0
        %804 = vmatpush1.bf16.xpose.msra.mxu0 0
        %805 = vmatprep.mubr.bf16.mxu0 0
        %806 = vmatmul.mubr.bf16.gmra.mrb[0].mxu0 %v768
        %v807 = vpop.f32.mrb[0].mxu0
        %v808 = vadd.f32 0.0, %v807
        %v809 = vpop.f32.mrb[0].mxu0
        %v810 = vpop.f32.mrb[0].mxu0
        %v811 = vpop.f32.mrb[0].mxu0
        %812 = vdwg.mxu0
        %v813 = vsel %vm599, %v808, -inf
        %814 = vmax.xlane.f32.xlu0 %v813
        %v815 = vpop.xlane.xlu0 %814
        %v816 = vsub.f32 %v808, %v815
        %v817 = vmul.f32 %v816, 1.442695
        %v818 = vpow.pop %v817
        %v819 = vsel %vm599, %v818, 0.0
        %820 = vadd.xlane.f32.xlu0 %v819
        %v821 = vpop.xlane.xlu0 %820
        %v822 = vrcp.pop %v821
        %v823 = vpack.c.bf16 %v818, %v818
        %v825 = vunpack.c.l.b16 %v756
        %v826 = vpack.c.b16 %v825, %v825
        %827 = vrot.lane.b32.xlu0 %v826, 120
        %v828 = vpop.permute.xlu0 %827
        %v830 = vsel %vm599, %v823, 0
        %v833 = vsel %vm660, %v828, 0
        %835 = vmatprep.subr.bf16.mxu0 0
        %836 = vmatpush1.bf16.msra.mxu0 %v833
        %837 = vmatprep.subr.bf16.mxu0 0
        %838 = vmatpush1.bf16.msra.mxu0 0
        %839 = vmatprep.subr.bf16.mxu0 0
        %840 = vmatpush1.bf16.msra.mxu0 0
        %841 = vmatprep.subr.bf16.mxu0 0
        %842 = vmatpush1.bf16.msra.mxu0 0
        %843 = vmatprep.subr.bf16.mxu0 0
        %844 = vmatpush1.bf16.msra.mxu0 0
        %845 = vmatprep.subr.bf16.mxu0 0
        %846 = vmatpush1.bf16.msra.mxu0 0
        %847 = vmatprep.subr.bf16.mxu0 0
        %848 = vmatpush1.bf16.msra.mxu0 0
        %849 = vmatprep.subr.bf16.mxu0 0
        %850 = vmatpush1.bf16.msra.mxu0 0
        %851 = vmatprep.subr.bf16.mxu0 0
        %852 = vmatpush1.bf16.msra.mxu0 0
        %853 = vmatprep.subr.bf16.mxu0 0
        %854 = vmatpush1.bf16.msra.mxu0 0
        %855 = vmatprep.subr.bf16.mxu0 0
        %856 = vmatpush1.bf16.msra.mxu0 0
        %857 = vmatprep.subr.bf16.mxu0 0
        %858 = vmatpush1.bf16.msra.mxu0 0
        %859 = vmatprep.subr.bf16.mxu0 0
        %860 = vmatpush1.bf16.msra.mxu0 0
        %861 = vmatprep.subr.bf16.mxu0 0
        %862 = vmatpush1.bf16.msra.mxu0 0
        %863 = vmatprep.subr.bf16.mxu0 0
        %864 = vmatpush1.bf16.msra.mxu0 0
        %865 = vmatprep.subr.bf16.mxu0 0
        %866 = vmatpush1.bf16.msra.mxu0 0
        %867 = vmatprep.mubr.bf16.mxu0 0
        %868 = vmatmul.mubr.bf16.gmra.mrb[0].mxu0 %v830
        %v869 = vpop.f32.mrb[0].mxu0
        %v870 = vadd.f32 0.0, %v869
        %v871 = vpop.f32.mrb[0].mxu0
        %v872 = vpop.f32.mrb[0].mxu0
        %v873 = vpop.f32.mrb[0].mxu0
        %874 = vdwg.mxu0
        %v875 = vmul.f32 %v870, %v822
        %v876 = vpack.c.bf16 %v875, %v875
        %v878 = vsel %vm599, %v876, 0
        %v881 = vsel %vm660, %v753, 0
        %883 = vmatprep.subr.bf16.mxu0 0
        %884 = vmatpush1.bf16.msra.mxu0 %v881
        %885 = vmatprep.subr.bf16.mxu0 0
        %886 = vmatpush1.bf16.msra.mxu0 0
        %887 = vmatprep.subr.bf16.mxu0 0
        %888 = vmatpush1.bf16.msra.mxu0 0
        %889 = vmatprep.subr.bf16.mxu0 0
        %890 = vmatpush1.bf16.msra.mxu0 0
        %891 = vmatprep.subr.bf16.mxu0 0
        %892 = vmatpush1.bf16.msra.mxu0 0
        %893 = vmatprep.subr.bf16.mxu0 0
        %894 = vmatpush1.bf16.msra.mxu0 0
        %895 = vmatprep.subr.bf16.mxu0 0
        %896 = vmatpush1.bf16.msra.mxu0 0
        %897 = vmatprep.subr.bf16.mxu0 0
        %898 = vmatpush1.bf16.msra.mxu0 0
        %899 = vmatprep.subr.bf16.mxu0 0
        %900 = vmatpush1.bf16.msra.mxu0 0
        %901 = vmatprep.subr.bf16.mxu0 0
        %902 = vmatpush1.bf16.msra.mxu0 0
        %903 = vmatprep.subr.bf16.mxu0 0
        %904 = vmatpush1.bf16.msra.mxu0 0
        %905 = vmatprep.subr.bf16.mxu0 0
        %906 = vmatpush1.bf16.msra.mxu0 0
        %907 = vmatprep.subr.bf16.mxu0 0
        %908 = vmatpush1.bf16.msra.mxu0 0
        %909 = vmatprep.subr.bf16.mxu0 0
        %910 = vmatpush1.bf16.msra.mxu0 0
        %911 = vmatprep.subr.bf16.mxu0 0
        %912 = vmatpush1.bf16.msra.mxu0 0
        %913 = vmatprep.subr.bf16.mxu0 0
        %914 = vmatpush1.bf16.msra.mxu0 0
        %915 = vmatprep.mubr.bf16.mxu0 0
        %916 = vmatmul.mubr.bf16.gmra.mrb[0].mxu0 %v878
        %v917 = vpop.f32.mrb[0].mxu0
        %v918 = vadd.f32 0.0, %v917
        %v919 = vpop.f32.mrb[0].mxu0
        %v920 = vpop.f32.mrb[0].mxu0
        %v921 = vpop.f32.mrb[0].mxu0
        %922 = vdwg.mxu0
        %v923 = vld [vmem:[#allocation5] sm:$0xff]
        %v924 = vadd.f32 %v923, %v918
        %925 = vst.msk [vmem:[#allocation5] sm:$0xff] %vm418, %v924
        %v926 = vld [vmem:[%s7 + $0x8] sm:$0xf]
        %v927 = vld [vmem:[#allocation2] sm:$0xf]
        %v928 = vld [vmem:[#allocation3] sm:$0xf]
        %v929 = vld [vmem:[#allocation4] sm:$0xf]
        %v931 = vunpack.c.l.b16 %v927
        %v932 = vpack.c.b16 %v931, %v931
        %933 = vrot.lane.b32.xlu0 %v932, 112
        %v934 = vpop.permute.xlu0 %933
        %v936 = vunpack.c.l.b16 %v928
        %v937 = vpack.c.b16 %v936, %v936
        %938 = vrot.lane.b32.xlu0 %v937, 112
        %v939 = vpop.permute.xlu0 %938
        %v941 = vsel %vm599, %v934, 0
        %v944 = vsel %vm599, %v939, 0
        %946 = vmatprep.subr.bf16.mxu0 0
        %947 = vmatpush1.bf16.xpose.msra.mxu0 %v944
        %948 = vmatprep.subr.bf16.mxu0 0
        %949 = vmatpush1.bf16.xpose.msra.mxu0 0
        %950 = vmatprep.subr.bf16.mxu0 0
        %951 = vmatpush1.bf16.xpose.msra.mxu0 0
        %952 = vmatprep.subr.bf16.mxu0 0
        %953 = vmatpush1.bf16.xpose.msra.mxu0 0
        %954 = vmatprep.subr.bf16.mxu0 0
        %955 = vmatpush1.bf16.xpose.msra.mxu0 0
        %956 = vmatprep.subr.bf16.mxu0 0
        %957 = vmatpush1.bf16.xpose.msra.mxu0 0
        %958 = vmatprep.subr.bf16.mxu0 0
        %959 = vmatpush1.bf16.xpose.msra.mxu0 0
        %960 = vmatprep.subr.bf16.mxu0 0
        %961 = vmatpush1.bf16.xpose.msra.mxu0 0
        %962 = vmatprep.subr.bf16.mxu0 0
        %963 = vmatpush1.bf16.xpose.msra.mxu0 0
        %964 = vmatprep.subr.bf16.mxu0 0
        %965 = vmatpush1.bf16.xpose.msra.mxu0 0
        %966 = vmatprep.subr.bf16.mxu0 0
        %967 = vmatpush1.bf16.xpose.msra.mxu0 0
        %968 = vmatprep.subr.bf16.mxu0 0
        %969 = vmatpush1.bf16.xpose.msra.mxu0 0
        %970 = vmatprep.subr.bf16.mxu0 0
        %971 = vmatpush1.bf16.xpose.msra.mxu0 0
        %972 = vmatprep.subr.bf16.mxu0 0
        %973 = vmatpush1.bf16.xpose.msra.mxu0 0
        %974 = vmatprep.subr.bf16.mxu0 0
        %975 = vmatpush1.bf16.xpose.msra.mxu0 0
        %976 = vmatprep.subr.bf16.mxu0 0
        %977 = vmatpush1.bf16.xpose.msra.mxu0 0
        %978 = vmatprep.mubr.bf16.mxu0 0
        %979 = vmatmul.mubr.bf16.gmra.mrb[0].mxu0 %v941
        %v980 = vpop.f32.mrb[0].mxu0
        %v981 = vadd.f32 0.0, %v980
        %v982 = vpop.f32.mrb[0].mxu0
        %v983 = vpop.f32.mrb[0].mxu0
        %v984 = vpop.f32.mrb[0].mxu0
        %985 = vdwg.mxu0
        %v986 = vsel %vm599, %v981, -inf
        %987 = vmax.xlane.f32.xlu0 %v986
        %v988 = vpop.xlane.xlu0 %987
        %v989 = vsub.f32 %v981, %v988
        %v990 = vmul.f32 %v989, 1.442695
        %v991 = vpow.pop %v990
        %v992 = vsel %vm599, %v991, 0.0
        %993 = vadd.xlane.f32.xlu0 %v992
        %v994 = vpop.xlane.xlu0 %993
        %v995 = vrcp.pop %v994
        %v996 = vpack.c.bf16 %v991, %v991
        %v998 = vunpack.c.l.b16 %v929
        %v999 = vpack.c.b16 %v998, %v998
        %1000 = vrot.lane.b32.xlu0 %v999, 112
        %v1001 = vpop.permute.xlu0 %1000
        %v1003 = vsel %vm599, %v996, 0
        %v1006 = vsel %vm660, %v1001, 0
        %1008 = vmatprep.subr.bf16.mxu0 0
        %1009 = vmatpush1.bf16.msra.mxu0 %v1006
        %1010 = vmatprep.subr.bf16.mxu0 0
        %1011 = vmatpush1.bf16.msra.mxu0 0
        %1012 = vmatprep.subr.bf16.mxu0 0
        %1013 = vmatpush1.bf16.msra.mxu0 0
        %1014 = vmatprep.subr.bf16.mxu0 0
        %1015 = vmatpush1.bf16.msra.mxu0 0
        %1016 = vmatprep.subr.bf16.mxu0 0
        %1017 = vmatpush1.bf16.msra.mxu0 0
        %1018 = vmatprep.subr.bf16.mxu0 0
        %1019 = vmatpush1.bf16.msra.mxu0 0
        %1020 = vmatprep.subr.bf16.mxu0 0
        %1021 = vmatpush1.bf16.msra.mxu0 0
        %1022 = vmatprep.subr.bf16.mxu0 0
        %1023 = vmatpush1.bf16.msra.mxu0 0
        %1024 = vmatprep.subr.bf16.mxu0 0
        %1025 = vmatpush1.bf16.msra.mxu0 0
        %1026 = vmatprep.subr.bf16.mxu0 0
        %1027 = vmatpush1.bf16.msra.mxu0 0
        %1028 = vmatprep.subr.bf16.mxu0 0
        %1029 = vmatpush1.bf16.msra.mxu0 0
        %1030 = vmatprep.subr.bf16.mxu0 0
        %1031 = vmatpush1.bf16.msra.mxu0 0
        %1032 = vmatprep.subr.bf16.mxu0 0
        %1033 = vmatpush1.bf16.msra.mxu0 0
        %1034 = vmatprep.subr.bf16.mxu0 0
        %1035 = vmatpush1.bf16.msra.mxu0 0
        %1036 = vmatprep.subr.bf16.mxu0 0
        %1037 = vmatpush1.bf16.msra.mxu0 0
        %1038 = vmatprep.subr.bf16.mxu0 0
        %1039 = vmatpush1.bf16.msra.mxu0 0
        %1040 = vmatprep.mubr.bf16.mxu0 0
        %1041 = vmatmul.mubr.bf16.gmra.mrb[0].mxu0 %v1003
        %v1042 = vpop.f32.mrb[0].mxu0
        %v1043 = vadd.f32 0.0, %v1042
        %v1044 = vpop.f32.mrb[0].mxu0
        %v1045 = vpop.f32.mrb[0].mxu0
        %v1046 = vpop.f32.mrb[0].mxu0
        %1047 = vdwg.mxu0
        %v1048 = vmul.f32 %v1043, %v995
        %v1049 = vpack.c.bf16 %v1048, %v1048
        %v1051 = vsel %vm599, %v1049, 0
        %v1054 = vsel %vm660, %v926, 0
        %1056 = vmatprep.subr.bf16.mxu0 0
        %1057 = vmatpush1.bf16.msra.mxu0 %v1054
        %1058 = vmatprep.subr.bf16.mxu0 0
        %1059 = vmatpush1.bf16.msra.mxu0 0
        %1060 = vmatprep.subr.bf16.mxu0 0
        %1061 = vmatpush1.bf16.msra.mxu0 0
        %1062 = vmatprep.subr.bf16.mxu0 0
        %1063 = vmatpush1.bf16.msra.mxu0 0
        %1064 = vmatprep.subr.bf16.mxu0 0
        %1065 = vmatpush1.bf16.msra.mxu0 0
        %1066 = vmatprep.subr.bf16.mxu0 0
        %1067 = vmatpush1.bf16.msra.mxu0 0
        %1068 = vmatprep.subr.bf16.mxu0 0
        %1069 = vmatpush1.bf16.msra.mxu0 0
        %1070 = vmatprep.subr.bf16.mxu0 0
        %1071 = vmatpush1.bf16.msra.mxu0 0
        %1072 = vmatprep.subr.bf16.mxu0 0
        %1073 = vmatpush1.bf16.msra.mxu0 0
        %1074 = vmatprep.subr.bf16.mxu0 0
        %1075 = vmatpush1.bf16.msra.mxu0 0
        %1076 = vmatprep.subr.bf16.mxu0 0
        %1077 = vmatpush1.bf16.msra.mxu0 0
        %1078 = vmatprep.subr.bf16.mxu0 0
        %1079 = vmatpush1.bf16.msra.mxu0 0
        %1080 = vmatprep.subr.bf16.mxu0 0
        %1081 = vmatpush1.bf16.msra.mxu0 0
        %1082 = vmatprep.subr.bf16.mxu0 0
        %1083 = vmatpush1.bf16.msra.mxu0 0
        %1084 = vmatprep.subr.bf16.mxu0 0
        %1085 = vmatpush1.bf16.msra.mxu0 0
        %1086 = vmatprep.subr.bf16.mxu0 0
        %1087 = vmatpush1.bf16.msra.mxu0 0
        %1088 = vmatprep.mubr.bf16.mxu0 0
        %1089 = vmatmul.mubr.bf16.gmra.mrb[0].mxu0 %v1051
        %v1090 = vpop.f32.mrb[0].mxu0
        %v1091 = vadd.f32 0.0, %v1090
        %v1092 = vpop.f32.mrb[0].mxu0
        %v1093 = vpop.f32.mrb[0].mxu0
        %v1094 = vpop.f32.mrb[0].mxu0
        %1095 = vdwg.mxu0
        %v1096 = vld [vmem:[#allocation5] sm:$0xff]
        %v1097 = vadd.f32 %v1096, %v1091
        %1098 = vst.msk [vmem:[#allocation5] sm:$0xff] %vm418, %v1097
        %v1099 = vld [vmem:[%s7 + $0xc] sm:$0xf]
        %v1100 = vld [vmem:[#allocation2] sm:$0xf]
        %v1101 = vld [vmem:[#allocation3] sm:$0xf]
        %v1102 = vld [vmem:[#allocation4] sm:$0xf]
        %v1104 = vunpack.c.l.b16 %v1100
        %v1105 = vpack.c.b16 %v1104, %v1104
        %1106 = vrot.lane.b32.xlu0 %v1105, 104
        %v1107 = vpop.permute.xlu0 %1106
        %v1109 = vunpack.c.l.b16 %v1101
        %v1110 = vpack.c.b16 %v1109, %v1109
        %1111 = vrot.lane.b32.xlu0 %v1110, 104
        %v1112 = vpop.permute.xlu0 %1111
        %v1114 = vsel %vm599, %v1107, 0
        %v1117 = vsel %vm599, %v1112, 0
        %1119 = vmatprep.subr.bf16.mxu0 0
        %1120 = vmatpush1.bf16.xpose.msra.mxu0 %v1117
        %1121 = vmatprep.subr.bf16.mxu0 0
        %1122 = vmatpush1.bf16.xpose.msra.mxu0 0
        %1123 = vmatprep.subr.bf16.mxu0 0
        %1124 = vmatpush1.bf16.xpose.msra.mxu0 0
        %1125 = vmatprep.subr.bf16.mxu0 0
        %1126 = vmatpush1.bf16.xpose.msra.mxu0 0
        %1127 = vmatprep.subr.bf16.mxu0 0
        %1128 = vmatpush1.bf16.xpose.msra.mxu0 0
        %1129 = vmatprep.subr.bf16.mxu0 0
        %1130 = vmatpush1.bf16.xpose.msra.mxu0 0
        %1131 = vmatprep.subr.bf16.mxu0 0
        %1132 = vmatpush1.bf16.xpose.msra.mxu0 0
        %1133 = vmatprep.subr.bf16.mxu0 0
        %1134 = vmatpush1.bf16.xpose.msra.mxu0 0
        %1135 = vmatprep.subr.bf16.mxu0 0
        %1136 = vmatpush1.bf16.xpose.msra.mxu0 0
        %1137 = vmatprep.subr.bf16.mxu0 0
        %1138 = vmatpush1.bf16.xpose.msra.mxu0 0
        %1139 = vmatprep.subr.bf16.mxu0 0
        %1140 = vmatpush1.bf16.xpose.msra.mxu0 0
        %1141 = vmatprep.subr.bf16.mxu0 0
        %1142 = vmatpush1.bf16.xpose.msra.mxu0 0
        %1143 = vmatprep.subr.bf16.mxu0 0
        %1144 = vmatpush1.bf16.xpose.msra.mxu0 0
        %1145 = vmatprep.subr.bf16.mxu0 0
        %1146 = vmatpush1.bf16.xpose.msra.mxu0 0
        %1147 = vmatprep.subr.bf16.mxu0 0
        %1148 = vmatpush1.bf16.xpose.msra.mxu0 0
        %1149 = vmatprep.subr.bf16.mxu0 0
        %1150 = vmatpush1.bf16.xpose.msra.mxu0 0
        %1151 = vmatprep.mubr.bf16.mxu0 0
        %1152 = vmatmul.mubr.bf16.gmra.mrb[0].mxu0 %v1114
        %v1153 = vpop.f32.mrb[0].mxu0
        %v1154 = vadd.f32 0.0, %v1153
        %v1155 = vpop.f32.mrb[0].mxu0
        %v1156 = vpop.f32.mrb[0].mxu0
        %v1157 = vpop.f32.mrb[0].mxu0
        %1158 = vdwg.mxu0
        %v1159 = vsel %vm599, %v1154, -inf
        %1160 = vmax.xlane.f32.xlu0 %v1159
        %v1161 = vpop.xlane.xlu0 %1160
        %v1162 = vsub.f32 %v1154, %v1161
        %v1163 = vmul.f32 %v1162, 1.442695
        %v1164 = vpow.pop %v1163
        %v1165 = vsel %vm599, %v1164, 0.0
        %1166 = vadd.xlane.f32.xlu0 %v1165
        %v1167 = vpop.xlane.xlu0 %1166
        %v1168 = vrcp.pop %v1167
        %v1169 = vpack.c.bf16 %v1164, %v1164
        %v1171 = vunpack.c.l.b16 %v1102
        %v1172 = vpack.c.b16 %v1171, %v1171
        %1173 = vrot.lane.b32.xlu0 %v1172, 104
        %v1174 = vpop.permute.xlu0 %1173
        %v1176 = vsel %vm599, %v1169, 0
        %v1179 = vsel %vm660, %v1174, 0
        %1181 = vmatprep.subr.bf16.mxu0 0
        %1182 = vmatpush1.bf16.msra.mxu0 %v1179
        %1183 = vmatprep.subr.bf16.mxu0 0
        %1184 = vmatpush1.bf16.msra.mxu0 0
        %1185 = vmatprep.subr.bf16.mxu0 0
        %1186 = vmatpush1.bf16.msra.mxu0 0
        %1187 = vmatprep.subr.bf16.mxu0 0
        %1188 = vmatpush1.bf16.msra.mxu0 0
        %1189 = vmatprep.subr.bf16.mxu0 0
        %1190 = vmatpush1.bf16.msra.mxu0 0
        %1191 = vmatprep.subr.bf16.mxu0 0
        %1192 = vmatpush1.bf16.msra.mxu0 0
        %1193 = vmatprep.subr.bf16.mxu0 0
        %1194 = vmatpush1.bf16.msra.mxu0 0
        %1195 = vmatprep.subr.bf16.mxu0 0
        %1196 = vmatpush1.bf16.msra.mxu0 0
        %1197 = vmatprep.subr.bf16.mxu0 0
        %1198 = vmatpush1.bf16.msra.mxu0 0
        %1199 = vmatprep.subr.bf16.mxu0 0
        %1200 = vmatpush1.bf16.msra.mxu0 0
        %1201 = vmatprep.subr.bf16.mxu0 0
        %1202 = vmatpush1.bf16.msra.mxu0 0
        %1203 = vmatprep.subr.bf16.mxu0 0
        %1204 = vmatpush1.bf16.msra.mxu0 0
        %1205 = vmatprep.subr.bf16.mxu0 0
        %1206 = vmatpush1.bf16.msra.mxu0 0
        %1207 = vmatprep.subr.bf16.mxu0 0
        %1208 = vmatpush1.bf16.msra.mxu0 0
        %1209 = vmatprep.subr.bf16.mxu0 0
        %1210 = vmatpush1.bf16.msra.mxu0 0
        %1211 = vmatprep.subr.bf16.mxu0 0
        %1212 = vmatpush1.bf16.msra.mxu0 0
        %1213 = vmatprep.mubr.bf16.mxu0 0
        %1214 = vmatmul.mubr.bf16.gmra.mrb[0].mxu0 %v1176
        %v1215 = vpop.f32.mrb[0].mxu0
        %v1216 = vadd.f32 0.0, %v1215
        %v1217 = vpop.f32.mrb[0].mxu0
        %v1218 = vpop.f32.mrb[0].mxu0
        %v1219 = vpop.f32.mrb[0].mxu0
        %1220 = vdwg.mxu0
        %v1221 = vmul.f32 %v1216, %v1168
        %v1222 = vpack.c.bf16 %v1221, %v1221
        %v1224 = vsel %vm599, %v1222, 0
        %v1227 = vsel %vm660, %v1099, 0
        %1229 = vmatprep.subr.bf16.mxu0 0
        %1230 = vmatpush1.bf16.msra.mxu0 %v1227
        %1231 = vmatprep.subr.bf16.mxu0 0
        %1232 = vmatpush1.bf16.msra.mxu0 0
        %1233 = vmatprep.subr.bf16.mxu0 0
        %1234 = vmatpush1.bf16.msra.mxu0 0
        %1235 = vmatprep.subr.bf16.mxu0 0
        %1236 = vmatpush1.bf16.msra.mxu0 0
        %1237 = vmatprep.subr.bf16.mxu0 0
        %1238 = vmatpush1.bf16.msra.mxu0 0
        %1239 = vmatprep.subr.bf16.mxu0 0
        %1240 = vmatpush1.bf16.msra.mxu0 0
        %1241 = vmatprep.subr.bf16.mxu0 0
        %1242 = vmatpush1.bf16.msra.mxu0 0
        %1243 = vmatprep.subr.bf16.mxu0 0
        %1244 = vmatpush1.bf16.msra.mxu0 0
        %1245 = vmatprep.subr.bf16.mxu0 0
        %1246 = vmatpush1.bf16.msra.mxu0 0
        %1247 = vmatprep.subr.bf16.mxu0 0
        %1248 = vmatpush1.bf16.msra.mxu0 0
        %1249 = vmatprep.subr.bf16.mxu0 0
        %1250 = vmatpush1.bf16.msra.mxu0 0
        %1251 = vmatprep.subr.bf16.mxu0 0
        %1252 = vmatpush1.bf16.msra.mxu0 0
        %1253 = vmatprep.subr.bf16.mxu0 0
        %1254 = vmatpush1.bf16.msra.mxu0 0
        %1255 = vmatprep.subr.bf16.mxu0 0
        %1256 = vmatpush1.bf16.msra.mxu0 0
        %1257 = vmatprep.subr.bf16.mxu0 0
        %1258 = vmatpush1.bf16.msra.mxu0 0
        %1259 = vmatprep.subr.bf16.mxu0 0
        %1260 = vmatpush1.bf16.msra.mxu0 0
        %1261 = vmatprep.mubr.bf16.mxu0 0
        %1262 = vmatmul.mubr.bf16.gmra.mrb[0].mxu0 %v1224
        %v1263 = vpop.f32.mrb[0].mxu0
        %v1264 = vadd.f32 0.0, %v1263
        %v1265 = vpop.f32.mrb[0].mxu0
        %v1266 = vpop.f32.mrb[0].mxu0
        %v1267 = vpop.f32.mrb[0].mxu0
        %1268 = vdwg.mxu0
        %v1269 = vld [vmem:[#allocation5] sm:$0xff]
        %v1270 = vadd.f32 %v1269, %v1264
        %1271 = vst.msk [vmem:[#allocation5] sm:$0xff] %vm418, %v1270
        %v1272 = vld [vmem:[#allocation5] sm:$0xff]
        %v1273 = vld [vmem:[%s8] sm:$0x1]
        %v1275 = vlaneseq
        %v1276 = vshrl.u32 %v1275, 7
        %v1277 = vsub.s32 0, %v1276
        %v1278 = vrot.slane %v1273, %v1277
        %v1280 = vadd.f32 %v1272, %v1278
        %1281 = vst.msk [vmem:[%s391] sm:$0xff] %vm418, %v1280
        %s1282 = sand.u32 %s230, 1
        %s1283 = scalar_lea.sflag [#allocation8], %s1282
        %s1284 = sand.u32 %s230, 1
        %s1285 = smul.addr %s1284, 8
        %s1286 = scalar_lea.vmem [#allocation14], %s1285
        // Predicated region
        $region73: #{tpu_custom_call.1} parent=55 // pred_check
          %p1287 = pneg %p240
        $region74: #{tpu_custom_call.1} parent=55 // pred_check_branch
          %1289 = sbr.rel (%p1287) target = $region76
        $region75: #{tpu_custom_call.1} parent=55 // pred_region
          %s1291 = ssub.s32 128, 128
          %1292 = vsyncadd %s1283, %s1291
          %s1293 = smul.addr %s28, 128
          %s1294 = scalar_lea.hbm %s9, %s1293
          %s1296 = sshll.u32 %s1286, 4
          %s1297 = int_to_ptr.vmem [resolvable:$true] %s1296
          %1299 = dma.vmem_to_hbm [thread:$0]  %s1297, 128, %s1294, %s1283
        $region76: #{tpu_custom_call.1} parent=55 // pred_fallthru
          _
      $region56: #{tpu_custom_call.1} parent=5 // pred_fallthru
        _
      %p1300 = scmp.le.s32.totalorder 2, %s23
      // Predicated region
      $region77: #{tpu_custom_call.1} parent=5 // pred_check
        %p1301 = pneg %p1300
      $region78: #{tpu_custom_call.1} parent=5 // pred_check_branch
        %1303 = sbr.rel (%p1301) target = $region80
      $region79: #{tpu_custom_call.1} parent=5 // pred_region
        %s1304 = ssub.s32 %s23, 2
        // Predicated region
        $region81: #{tpu_custom_call.1} parent=79 // pred_check
          %p1305 = pneg %p246
        $region82: #{tpu_custom_call.1} parent=79 // pred_check_branch
          %1307 = sbr.rel (%p1305) target = $region84
        $region83: #{tpu_custom_call.1} parent=79 // pred_region
          %s1308 = sand.u32 %s231, 1
          %s1309 = scalar_lea.sflag [#allocation8], %s1308
          %s1310 = sand.u32 %s231, 1
          %s1311 = smul.addr %s1310, 8
          %s1312 = scalar_lea.vmem [#allocation14], %s1311
          %1313 = dma.done %s1309, 128
        $region84: #{tpu_custom_call.1} parent=79 // pred_fallthru
          _
      $region80: #{tpu_custom_call.1} parent=5 // pred_fallthru
        _
    $region6: #{tpu_custom_call.1} parent=1 // loop_footer
      %s27 = sadd.s32 1, %s23
    $region7: #{tpu_custom_call.1} parent=1 // loop_footer_branch
      %22 = sbr.rel target = $region3
    $region8: #{tpu_custom_call.1} parent=1 // loop_exit
      _
    %1314 = vsyncpa [#allocation7], 1
    %s1315 = scalar_lea.sflag [#allocation7], 1
    %1316 = vsyncpa %s1315, 1
    %1317 = vsyncpa [#allocation10], 1
    %1318 = vsyncpa [#allocation13], 1
    %1319 = vsyncpa [#allocation8], 1
    %s1320 = scalar_lea.sflag [#allocation8], 1
    %1321 = vsyncpa %s1320, 1

// kernel: tpu_custom_call.1
$region0: #{tpu_custom_call.1}
  #allocation0 [shape = 'u32[]', space=smem, size = 0x4, offset = 0x4, fixed_abs, tag = 'smem constant byte address 0x4 - core index']
  #allocation1 [shape = 'u32[144,128]{1,0:T(1,128)}', space=vmem, size = 0x12000, scoped, tag = 'internal scratch']
  #allocation2 [shape = 'bf16[8,32]{1,0:T(8,128)(2,1)}', space=vmem, size = 0x800, scoped, tag = 'scratch operand']
  #allocation3 [shape = 'bf16[8,32]{1,0:T(8,128)(2,1)}', space=vmem, size = 0x800, scoped, tag = 'scratch operand']
  #allocation4 [shape = 'bf16[8,32]{1,0:T(8,128)(2,1)}', space=vmem, size = 0x800, scoped, tag = 'scratch operand']
  #allocation5 [shape = 'f32[8,32]{1,0:T(8,128)}', space=vmem, size = 0x1000, scoped, tag = 'scratch operand']
  %s0 = inlined_call_operand.hbm [shape: f32[2,8,32], index: 0, kind: input, shape index: {}]
  %s1 = inlined_call_operand.hbm [shape: bf16[32,32], index: 1, kind: input, shape index: {}]
  %s2 = inlined_call_operand.hbm [shape: bf16[32,32], index: 2, kind: input, shape index: {}]
  %s3 = inlined_call_operand.hbm [shape: bf16[32,32], index: 3, kind: input, shape index: {}]
  %s4 = inlined_call_operand.vmem [shape: f32[1,32], index: 4, kind: input, shape index: {}]
  %s5 = inlined_call_operand.vmem [shape: f32[1,32], index: 5, kind: input, shape index: {}]
  %s6 = inlined_call_operand.vmem [shape: f32[1,32], index: 6, kind: input, shape index: {}]
  %s7 = inlined_call_operand.vmem [shape: bf16[32,32], index: 7, kind: input, shape index: {}]
  %s8 = inlined_call_operand.vmem [shape: f32[1,32], index: 8, kind: input, shape index: {}]
  %s9 = inlined_call_operand.hbm [shape: f32[2,8,32], index: 9, kind: output, shape index: {}]
  %s10 = sld [smem:[#allocation0]]
  $region85: #{tpu_custom_call.1} parent=0
    _
  %s12 = ssub.s32 1, %s10
  %s13 = scalar_select 0, %s12, %s10
  $region1: #{tpu_custom_call.1} parent=0
    #allocation6 [shape = 'u8[8192]{0}', space=vmem, size = 0x2000, scoped, tag = 'input window, operand 0']
    #allocation7 [shape = 's32[2]{0}', space=sflag, size = 0x8, scoped, tag = 'scoped memory for tpu_custom_call.1']
    #allocation8 [shape = 's32[2]{0}', space=sflag, size = 0x8, scoped, tag = 'scoped memory for tpu_custom_call.1']
    #allocation9 [shape = 'u8[8192]{0}', space=vmem, size = 0x2000, scoped, tag = 'input window, operand 1, single buffered']
    #allocation10 [shape = 's32[1]{0}', space=sflag, size = 0x4, scoped, tag = 'scoped memory for tpu_custom_call.1']
    #allocation11 [shape = 'u8[8192]{0}', space=vmem, size = 0x2000, scoped, tag = 'input window, operand 2, single buffered']
    #allocation12 [shape = 'u8[8192]{0}', space=vmem, size = 0x2000, scoped, tag = 'input window, operand 3, single buffered']
    #allocation13 [shape = 's32[1]{0}', space=sflag, size = 0x4, scoped, tag = 'scoped memory for tpu_custom_call.1']
    #allocation14 [shape = 'u8[8192]{0}', space=vmem, size = 0x2000, scoped, tag = 'output window, operand 0']
    %14 = vsyncpa [#allocation7], 0
    %s15 = scalar_lea.sflag [#allocation7], 1
    %16 = vsyncpa %s15, 0
    %17 = vsyncpa [#allocation10], 0
    %18 = vsyncpa [#allocation13], 0
    %19 = vsyncpa [#allocation8], 0
    %s20 = scalar_lea.sflag [#allocation8], 1
    %21 = vsyncpa %s20, 0
    loop: start=0, step=1, limit=4
    $region2: #{tpu_custom_call.1} parent=1 // loop_pre_header
      _
    $region3: #{tpu_custom_call.1} parent=1 // loop_header
      %s23 = sphi 0, %s27
      %p24 = scmp.ge.s32.totalorder %s23, 4
      %s33 = sphi 0, %s35
      %s36 = sphi 0, %s33
      %s37 = sphi 0, %s36
      %s53 = sphi 0, %s37
      %s57 = sphi 0, %s57
      %s59 = sphi 0, %s57
      %s60 = sphi 0, %s59
      %s74 = sphi 0, %s60
      %s78 = sphi 0, %s78
      %s80 = sphi 0, %s78
      %s81 = sphi 0, %s80
      %s95 = sphi 0, %s81
      %s99 = sphi 0, %s99
      %s101 = sphi 0, %s99
      %s102 = sphi 0, %s101
      %s116 = sphi 0, %s102
      %s120 = sphi 0, %s120
      %s122 = sphi 0, %s120
      %s123 = sphi 0, %s122
      %s137 = sphi 0, %s123
      %s141 = sphi 0, %s141
      %s143 = sphi 0, %s141
      %s144 = sphi 0, %s143
      %s158 = sphi 0, %s144
      %s162 = sphi 0, %s162
      %s164 = sphi 0, %s162
      %s165 = sphi 0, %s164
      %s179 = sphi 0, %s165
      %s183 = sphi 0, %s183
      %s185 = sphi 0, %s183
      %s186 = sphi 0, %s185
      %s200 = sphi 0, %s186
      %s204 = sphi 0, %s204
      %s206 = sphi 0, %s204
      %s207 = sphi 0, %s206
      %s221 = sphi 0, %s207
      %s227 = sphi 0, %s229
      %s230 = sphi 0, %s227
      %s231 = sphi 0, %s230
      %s247 = sphi 0, %s231
    $region4: #{tpu_custom_call.1} parent=1 // loop_header_branch
      %26 = sbr.rel (%p24) target = $region8
    $region5: #{tpu_custom_call.1} parent=1 // loop_body
      %s28 = ssub.s32 %s23, 1
      %s29 = ssub.s32 %s23, 2
      %s30 = sadd.s32 %s23, 1
      %s31 = ssub.s32 %s23, %s30
      %p32 = scmp.eq.s32.totalorder %s31, 0
      %s34 = sadd.s32 %s33, 1
      %s35 = scalar_select %p32, %s33, %s34
      %p38 = pneg %p32
      %p39 = scmp.eq.s32.totalorder %s23, 1
      %p40 = por %p38, %p39
      %p41 = scmp.ne.s32.totalorder %s33, %s36
      %p42 = scmp.eq.s32.totalorder %s23, 0
      %p43 = por %p41, %p42
      %p44 = scmp.ne.s32.totalorder %s33, %s36
      %p45 = scmp.eq.s32.totalorder %s28, 1
      %p46 = por %p44, %p45
      %p47 = scmp.ne.s32.totalorder %s36, %s37
      %p48 = scmp.eq.s32.totalorder %s28, 0
      %p49 = por %p47, %p48
      %p50 = scmp.ne.s32.totalorder %s36, %s37
      %p51 = scmp.eq.s32.totalorder %s29, 1
      %p52 = por %p50, %p51
      %p54 = scmp.ne.s32.totalorder %s37, %s53
      %p55 = scmp.eq.s32.totalorder %s29, 0
      %p56 = por %p54, %p55
      %s58 = sadd.s32 %s57, 1
      %p61 = scmp.eq.s32.totalorder %s23, 1
      %p62 = scmp.ne.s32.totalorder %s57, %s59
      %p63 = scmp.eq.s32.totalorder %s23, 0
      %p64 = por %p62, %p63
      %p65 = scmp.ne.s32.totalorder %s57, %s59
      %p66 = scmp.eq.s32.totalorder %s28, 1
      %p67 = por %p65, %p66
      %p68 = scmp.ne.s32.totalorder %s59, %s60
      %p69 = scmp.eq.s32.totalorder %s28, 0
      %p70 = por %p68, %p69
      %p71 = scmp.ne.s32.totalorder %s59, %s60
      %p72 = scmp.eq.s32.totalorder %s29, 1
      %p73 = por %p71, %p72
      %p75 = scmp.ne.s32.totalorder %s60, %s74
      %p76 = scmp.eq.s32.totalorder %s29, 0
      %p77 = por %p75, %p76
      %s79 = sadd.s32 %s78, 1
      %p82 = scmp.eq.s32.totalorder %s23, 1
      %p83 = scmp.ne.s32.totalorder %s78, %s80
      %p84 = scmp.eq.s32.totalorder %s23, 0
      %p85 = por %p83, %p84
      %p86 = scmp.ne.s32.totalorder %s78, %s80
      %p87 = scmp.eq.s32.totalorder %s28, 1
      %p88 = por %p86, %p87
      %p89 = scmp.ne.s32.totalorder %s80, %s81
      %p90 = scmp.eq.s32.totalorder %s28, 0
      %p91 = por %p89, %p90
      %p92 = scmp.ne.s32.totalorder %s80, %s81
      %p93 = scmp.eq.s32.totalorder %s29, 1
      %p94 = por %p92, %p93
      %p96 = scmp.ne.s32.totalorder %s81, %s95
      %p97 = scmp.eq.s32.totalorder %s29, 0
      %p98 = por %p96, %p97
      %s100 = sadd.s32 %s99, 1
      %p103 = scmp.eq.s32.totalorder %s23, 1
      %p104 = scmp.ne.s32.totalorder %s99, %s101
      %p105 = scmp.eq.s32.totalorder %s23, 0
      %p106 = por %p104, %p105
      %p107 = scmp.ne.s32.totalorder %s99, %s101
      %p108 = scmp.eq.s32.totalorder %s28, 1
      %p109 = por %p107, %p108
      %p110 = scmp.ne.s32.totalorder %s101, %s102
      %p111 = scmp.eq.s32.totalorder %s28, 0
      %p112 = por %p110, %p111
      %p113 = scmp.ne.s32.totalorder %s101, %s102
      %p114 = scmp.eq.s32.totalorder %s29, 1
      %p115 = por %p113, %p114
      %p117 = scmp.ne.s32.totalorder %s102, %s116
      %p118 = scmp.eq.s32.totalorder %s29, 0
      %p119 = por %p117, %p118
      %s121 = sadd.s32 %s120, 1
      %p124 = scmp.eq.s32.totalorder %s23, 1
      %p125 = scmp.ne.s32.totalorder %s120, %s122
      %p126 = scmp.eq.s32.totalorder %s23, 0
      %p127 = por %p125, %p126
      %p128 = scmp.ne.s32.totalorder %s120, %s122
      %p129 = scmp.eq.s32.totalorder %s28, 1
      %p130 = por %p128, %p129
      %p131 = scmp.ne.s32.totalorder %s122, %s123
      %p132 = scmp.eq.s32.totalorder %s28, 0
      %p133 = por %p131, %p132
      %p134 = scmp.ne.s32.totalorder %s122, %s123
      %p135 = scmp.eq.s32.totalorder %s29, 1
      %p136 = por %p134, %p135
      %p138 = scmp.ne.s32.totalorder %s123, %s137
      %p139 = scmp.eq.s32.totalorder %s29, 0
      %p140 = por %p138, %p139
      %s142 = sadd.s32 %s141, 1
      %p145 = scmp.eq.s32.totalorder %s23, 1
      %p146 = scmp.ne.s32.totalorder %s141, %s143
      %p147 = scmp.eq.s32.totalorder %s23, 0
      %p148 = por %p146, %p147
      %p149 = scmp.ne.s32.totalorder %s141, %s143
      %p150 = scmp.eq.s32.totalorder %s28, 1
      %p151 = por %p149, %p150
      %p152 = scmp.ne.s32.totalorder %s143, %s144
      %p153 = scmp.eq.s32.totalorder %s28, 0
      %p154 = por %p152, %p153
      %p155 = scmp.ne.s32.totalorder %s143, %s144
      %p156 = scmp.eq.s32.totalorder %s29, 1
      %p157 = por %p155, %p156
      %p159 = scmp.ne.s32.totalorder %s144, %s158
      %p160 = scmp.eq.s32.totalorder %s29, 0
      %p161 = por %p159, %p160
      %s163 = sadd.s32 %s162, 1
      %p166 = scmp.eq.s32.totalorder %s23, 1
      %p167 = scmp.ne.s32.totalorder %s162, %s164
      %p168 = scmp.eq.s32.totalorder %s23, 0
      %p169 = por %p167, %p168
      %p170 = scmp.ne.s32.totalorder %s162, %s164
      %p171 = scmp.eq.s32.totalorder %s28, 1
      %p172 = por %p170, %p171
      %p173 = scmp.ne.s32.totalorder %s164, %s165
      %p174 = scmp.eq.s32.totalorder %s28, 0
      %p175 = por %p173, %p174
      %p176 = scmp.ne.s32.totalorder %s164, %s165
      %p177 = scmp.eq.s32.totalorder %s29, 1
      %p178 = por %p176, %p177
      %p180 = scmp.ne.s32.totalorder %s165, %s179
      %p181 = scmp.eq.s32.totalorder %s29, 0
      %p182 = por %p180, %p181
      %s184 = sadd.s32 %s183, 1
      %p187 = scmp.eq.s32.totalorder %s23, 1
      %p188 = scmp.ne.s32.totalorder %s183, %s185
      %p189 = scmp.eq.s32.totalorder %s23, 0
      %p190 = por %p188, %p189
      %p191 = scmp.ne.s32.totalorder %s183, %s185
      %p192 = scmp.eq.s32.totalorder %s28, 1
      %p193 = por %p191, %p192
      %p194 = scmp.ne.s32.totalorder %s185, %s186
      %p195 = scmp.eq.s32.totalorder %s28, 0
      %p196 = por %p194, %p195
      %p197 = scmp.ne.s32.totalorder %s185, %s186
      %p198 = scmp.eq.s32.totalorder %s29, 1
      %p199 = por %p197, %p198
      %p201 = scmp.ne.s32.totalorder %s186, %s200
      %p202 = scmp.eq.s32.totalorder %s29, 0
      %p203 = por %p201, %p202
      %s205 = sadd.s32 %s204, 1
      %p208 = scmp.eq.s32.totalorder %s23, 1
      %p209 = scmp.ne.s32.totalorder %s204, %s206
      %p210 = scmp.eq.s32.totalorder %s23, 0
      %p211 = por %p209, %p210
      %p212 = scmp.ne.s32.totalorder %s204, %s206
      %p213 = scmp.eq.s32.totalorder %s28, 1
      %p214 = por %p212, %p213
      %p215 = scmp.ne.s32.totalorder %s206, %s207
      %p216 = scmp.eq.s32.totalorder %s28, 0
      %p217 = por %p215, %p216
      %p218 = scmp.ne.s32.totalorder %s206, %s207
      %p219 = scmp.eq.s32.totalorder %s29, 1
      %p220 = por %p218, %p219
      %p222 = scmp.ne.s32.totalorder %s207, %s221
      %p223 = scmp.eq.s32.totalorder %s29, 0
      %p224 = por %p222, %p223
      %s225 = ssub.s32 %s23, %s30
      %p226 = scmp.eq.s32.totalorder %s225, 0
      %s228 = sadd.s32 %s227, 1
      %s229 = scalar_select %p226, %s227, %s228
      %p232 = pneg %p226
      %p233 = scmp.eq.s32.totalorder %s23, 1
      %p234 = por %p232, %p233
      %p235 = scmp.ne.s32.totalorder %s227, %s230
      %p236 = scmp.eq.s32.totalorder %s23, 0
      %p237 = por %p235, %p236
      %p238 = scmp.ne.s32.totalorder %s227, %s230
      %p239 = scmp.eq.s32.totalorder %s28, 1
      %p240 = por %p238, %p239
      %p241 = scmp.ne.s32.totalorder %s230, %s231
      %p242 = scmp.eq.s32.totalorder %s28, 0
      %p243 = por %p241, %p242
      %p244 = scmp.ne.s32.totalorder %s230, %s231
      %p245 = scmp.eq.s32.totalorder %s29, 1
      %p246 = por %p244, %p245
      %p248 = scmp.ne.s32.totalorder %s231, %s247
      %p249 = scmp.eq.s32.totalorder %s29, 0
      %p250 = por %p248, %p249
      %p251 = scmp.le.s32.totalorder 1, %s23
      %p252 = scmp.lt.s32.totalorder %s23, 3
      %p253 = pnand %p251, %p252
      %p254 = pneg %p253
      // Predicated region
      $region9: #{tpu_custom_call.1} parent=5 // pred_check
        _
      $region10: #{tpu_custom_call.1} parent=5 // pred_check_branch
        %256 = sbr.rel (%p253) target = $region12
      $region11: #{tpu_custom_call.1} parent=5 // pred_region
        %s257 = ssub.s32 %s23, 1
        // Predicated region
        $region13: #{tpu_custom_call.1} parent=11 // pred_check
          %p258 = pneg %p70
        $region14: #{tpu_custom_call.1} parent=11 // pred_check_branch
          %260 = sbr.rel (%p258) target = $region16
        $region15: #{tpu_custom_call.1} parent=11 // pred_region
          %s262 = ssub.s32 256, 256
          %263 = vsyncadd [#allocation10], %s262
          %s264 = sshll.u32 [#allocation9], 4
          %s265 = int_to_ptr.vmem [resolvable:$true] %s264
          %270 = dma.hbm_to_vmem [thread:$0]  %s1, 256, %s265, [#allocation10], 64, 64, 4
        $region16: #{tpu_custom_call.1} parent=11 // pred_fallthru
          _
        // Predicated region
        $region17: #{tpu_custom_call.1} parent=11 // pred_check
          %p271 = pneg %p91
        $region18: #{tpu_custom_call.1} parent=11 // pred_check_branch
          %273 = sbr.rel (%p271) target = $region20
        $region19: #{tpu_custom_call.1} parent=11 // pred_region
          %s275 = ssub.s32 256, 256
          %276 = vsyncadd [#allocation10], %s275
          %s277 = sshll.u32 [#allocation11], 4
          %s278 = int_to_ptr.vmem [resolvable:$true] %s277
          %283 = dma.hbm_to_vmem [thread:$0]  %s2, 256, %s278, [#allocation10], 64, 64, 4
        $region20: #{tpu_custom_call.1} parent=11 // pred_fallthru
          _
        // Predicated region
        $region21: #{tpu_custom_call.1} parent=11 // pred_check
          %p284 = pneg %p112
        $region22: #{tpu_custom_call.1} parent=11 // pred_check_branch
          %286 = sbr.rel (%p284) target = $region24
        $region23: #{tpu_custom_call.1} parent=11 // pred_region
          %s288 = ssub.s32 256, 256
          %289 = vsyncadd [#allocation13], %s288
          %s290 = sshll.u32 [#allocation12], 4
          %s291 = int_to_ptr.vmem [resolvable:$true] %s290
          %296 = dma.hbm_to_vmem [thread:$0]  %s3, 256, %s291, [#allocation13], 64, 64, 4
        $region24: #{tpu_custom_call.1} parent=11 // pred_fallthru
          _
        // Predicated region
        $region25: #{tpu_custom_call.1} parent=11 // pred_check
          %p297 = pneg %p133
        $region26: #{tpu_custom_call.1} parent=11 // pred_check_branch
          %299 = sbr.rel (%p297) target = $region28
        $region27: #{tpu_custom_call.1} parent=11 // pred_region
          _
        $region28: #{tpu_custom_call.1} parent=11 // pred_fallthru
          _
        // Predicated region
        $region29: #{tpu_custom_call.1} parent=11 // pred_check
          %p300 = pneg %p154
        $region30: #{tpu_custom_call.1} parent=11 // pred_check_branch
          %302 = sbr.rel (%p300) target = $region32
        $region31: #{tpu_custom_call.1} parent=11 // pred_region
          _
        $region32: #{tpu_custom_call.1} parent=11 // pred_fallthru
          _
        // Predicated region
        $region33: #{tpu_custom_call.1} parent=11 // pred_check
          %p303 = pneg %p175
        $region34: #{tpu_custom_call.1} parent=11 // pred_check_branch
          %305 = sbr.rel (%p303) target = $region36
        $region35: #{tpu_custom_call.1} parent=11 // pred_region
          _
        $region36: #{tpu_custom_call.1} parent=11 // pred_fallthru
          _
        // Predicated region
        $region37: #{tpu_custom_call.1} parent=11 // pred_check
          %p306 = pneg %p196
        $region38: #{tpu_custom_call.1} parent=11 // pred_check_branch
          %308 = sbr.rel (%p306) target = $region40
        $region39: #{tpu_custom_call.1} parent=11 // pred_region
          _
        $region40: #{tpu_custom_call.1} parent=11 // pred_fallthru
          _
        // Predicated region
        $region41: #{tpu_custom_call.1} parent=11 // pred_check
          %p309 = pneg %p217
        $region42: #{tpu_custom_call.1} parent=11 // pred_check_branch
          %311 = sbr.rel (%p309) target = $region44
        $region43: #{tpu_custom_call.1} parent=11 // pred_region
          _
        $region44: #{tpu_custom_call.1} parent=11 // pred_fallthru
          _
      $region12: #{tpu_custom_call.1} parent=5 // pred_fallthru
        _
      %p312 = scmp.lt.s32.totalorder %s23, 2
      // Predicated region
      $region45: #{tpu_custom_call.1} parent=5 // pred_check
        %p313 = pneg %p312
      $region46: #{tpu_custom_call.1} parent=5 // pred_check_branch
        %315 = sbr.rel (%p313) target = $region48
      $region47: #{tpu_custom_call.1} parent=5 // pred_region
        // Predicated region
        $region49: #{tpu_custom_call.1} parent=47 // pred_check
          %p316 = pneg %p43
        $region50: #{tpu_custom_call.1} parent=47 // pred_check_branch
          %318 = sbr.rel (%p316) target = $region52
        $region51: #{tpu_custom_call.1} parent=47 // pred_region
          %s319 = sand.u32 %s33, 1
          %s320 = scalar_lea.sflag [#allocation7], %s319
          %s321 = sand.u32 %s33, 1
          %s322 = smul.addr %s321, 8
          %s323 = scalar_lea.vmem [#allocation6], %s322
          %s325 = ssub.s32 128, 128
          %326 = vsyncadd %s320, %s325
          %s327 = smul.addr %s23, 128
          %s328 = scalar_lea.hbm %s0, %s327
          %s330 = sshll.u32 %s323, 4
          %s331 = int_to_ptr.vmem [resolvable:$true] %s330
          %333 = dma.hbm_to_vmem [thread:$0]  %s328, 128, %s331, %s320
        $region52: #{tpu_custom_call.1} parent=47 // pred_fallthru
          _
      $region48: #{tpu_custom_call.1} parent=5 // pred_fallthru
        _
      %p334 = scmp.le.s32.totalorder 1, %s23
      %p335 = scmp.lt.s32.totalorder %s23, 3
      %p336 = pnand %p334, %p335
      %p337 = pneg %p336
      // Predicated region
      $region53: #{tpu_custom_call.1} parent=5 // pred_check
        _
      $region54: #{tpu_custom_call.1} parent=5 // pred_check_branch
        %339 = sbr.rel (%p336) target = $region56
      $region55: #{tpu_custom_call.1} parent=5 // pred_region
        %s340 = ssub.s32 %s23, 1
        %s341 = sand.u32 %s36, 1
        %s342 = scalar_lea.sflag [#allocation7], %s341
        %s343 = sand.u32 %s36, 1
        %s344 = smul.addr %s343, 8
        %s345 = scalar_lea.vmem [#allocation6], %s344
        // Predicated region
        $region57: #{tpu_custom_call.1} parent=55 // pred_check
          %p346 = pneg %p49
        $region58: #{tpu_custom_call.1} parent=55 // pred_check_branch
          %348 = sbr.rel (%p346) target = $region60
        $region59: #{tpu_custom_call.1} parent=55 // pred_region
          %349 = dma.done %s342, 128
        $region60: #{tpu_custom_call.1} parent=55 // pred_fallthru
          _
        // Predicated region
        $region61: #{tpu_custom_call.1} parent=55 // pred_check
          %p350 = pneg %p70
        $region62: #{tpu_custom_call.1} parent=55 // pred_check_branch
          %352 = sbr.rel (%p350) target = $region64
        $region63: #{tpu_custom_call.1} parent=55 // pred_region
          %353 = dma.done [#allocation10], 256
        $region64: #{tpu_custom_call.1} parent=55 // pred_fallthru
          _
        // Predicated region
        $region65: #{tpu_custom_call.1} parent=55 // pred_check
          %p354 = pneg %p91
        $region66: #{tpu_custom_call.1} parent=55 // pred_check_branch
          %356 = sbr.rel (%p354) target = $region68
        $region67: #{tpu_custom_call.1} parent=55 // pred_region
          %357 = dma.done [#allocation10], 256
        $region68: #{tpu_custom_call.1} parent=55 // pred_fallthru
          _
        // Predicated region
        $region69: #{tpu_custom_call.1} parent=55 // pred_check
          %p358 = pneg %p112
        $region70: #{tpu_custom_call.1} parent=55 // pred_check_branch
          %360 = sbr.rel (%p358) target = $region72
        $region71: #{tpu_custom_call.1} parent=55 // pred_region
          %361 = dma.done [#allocation13], 256
        $region72: #{tpu_custom_call.1} parent=55 // pred_fallthru
          _
        %s362 = sand.u32 %s36, 1
        %s363 = scalar_lea.sflag [#allocation7], %s362
        %s364 = sand.u32 %s36, 1
        %s365 = smul.addr %s364, 8
        %s366 = scalar_lea.vmem [#allocation6], %s365
        %p367 = pneg %p49
        %p368 = pneg %p46
        %p369 = pneg %p70
        %p370 = pneg %p67
        %p371 = pneg %p91
        %p372 = pneg %p88
        %p373 = pneg %p112
        %p374 = pneg %p109
        %p375 = pneg %p133
        %p376 = pneg %p130
        %p377 = pneg %p154
        %p378 = pneg %p151
        %p379 = pneg %p175
        %p380 = pneg %p172
        %p381 = pneg %p196
        %p382 = pneg %p193
        %p383 = pneg %p217
        %p384 = pneg %p214
        %p385 = pneg %p243
        %p386 = pneg %p240
        %s387 = sand.u32 %s230, 1
        %s388 = scalar_lea.sflag [#allocation8], %s387
        %s389 = sand.u32 %s230, 1
        %s390 = smul.addr %s389, 8
        %s391 = scalar_lea.vmem [#allocation14], %s390
        %v393 = vld [vmem:[%s345] sm:$0xff]
        %v394 = vpack.c.bf16 %v393, %v393
        %v395 = vld [vmem:[#allocation9] sm:$0xf]
        %v396 = vld [vmem:[#allocation9 + $0x4] sm:$0xf]
        %v397 = vld [vmem:[#allocation9 + $0x8] sm:$0xf]
        %v398 = vld [vmem:[#allocation9 + $0xc] sm:$0xf]
        %v399 = vld [vmem:[%s4] sm:$0x1]
        %v401 = vlaneseq
        %v402 = vshrl.u32 %v401, 7
        %v403 = vsub.s32 0, %v402
        %v404 = vrot.slane %v399, %v403
        %v410 = vunpack.c.l.b16 %v395
        %v411 = vunpack.c.l.b16 %v396
        %v412 = vunpack.c.l.b16 %v397
        %v413 = vunpack.c.l.b16 %v398
        %v414 = vpack.c.b16 %v411, %v410
        %v415 = vpack.c.b16 %v413, %v412
        %vm418 = vcmask 261120
        %v420 = vsel %vm418, %v394, 0
        %422 = vmatprep.subr.bf16.mxu0 0
        %423 = vmatpush1.bf16.msra.mxu0 %v414
        %424 = vmatprep.subr.bf16.mxu0 0
        %425 = vmatpush1.bf16.msra.mxu0 %v415
        %426 = vmatprep.subr.bf16.mxu0 0
        %427 = vmatpush1.bf16.msra.mxu0 0
        %428 = vmatprep.subr.bf16.mxu0 0
        %429 = vmatpush1.bf16.msra.mxu0 0
        %430 = vmatprep.subr.bf16.mxu0 0
        %431 = vmatpush1.bf16.msra.mxu0 0
        %432 = vmatprep.subr.bf16.mxu0 0
        %433 = vmatpush1.bf16.msra.mxu0 0
        %434 = vmatprep.subr.bf16.mxu0 0
        %435 = vmatpush1.bf16.msra.mxu0 0
        %436 = vmatprep.subr.bf16.mxu0 0
        %437 = vmatpush1.bf16.msra.mxu0 0
        %438 = vmatprep.subr.bf16.mxu0 0
        %439 = vmatpush1.bf16.msra.mxu0 0
        %440 = vmatprep.subr.bf16.mxu0 0
        %441 = vmatpush1.bf16.msra.mxu0 0
        %442 = vmatprep.subr.bf16.mxu0 0
        %443 = vmatpush1.bf16.msra.mxu0 0
        %444 = vmatprep.subr.bf16.mxu0 0
        %445 = vmatpush1.bf16.msra.mxu0 0
        %446 = vmatprep.subr.bf16.mxu0 0
        %447 = vmatpush1.bf16.msra.mxu0 0
        %448 = vmatprep.subr.bf16.mxu0 0
        %449 = vmatpush1.bf16.msra.mxu0 0
        %450 = vmatprep.subr.bf16.mxu0 0
        %451 = vmatpush1.bf16.msra.mxu0 0
        %452 = vmatprep.subr.bf16.mxu0 0
        %453 = vmatpush1.bf16.msra.mxu0 0
        %454 = vmatprep.mubr.bf16.mxu0 0
        %455 = vmatmul.mubr.bf16.gmra.mrb[0].mxu0 %v420
        %v456 = vpop.f32.mrb[0].mxu0
        %v457 = vadd.f32 %v404, %v456
        %v458 = vpop.f32.mrb[0].mxu0
        %v459 = vpop.f32.mrb[0].mxu0
        %v460 = vpop.f32.mrb[0].mxu0
        %461 = vdwg.mxu0
        %v462 = vpack.c.bf16 %v457, %v457
        %vm463 = vcmask 257024
        %464 = vst.msk [vmem:[#allocation2] sm:$0xf] %vm463, %v462
        %v465 = vld [vmem:[#allocation11] sm:$0xf]
        %v466 = vld [vmem:[#allocation11 + $0x4] sm:$0xf]
        %v467 = vld [vmem:[#allocation11 + $0x8] sm:$0xf]
        %v468 = vld [vmem:[#allocation11 + $0xc] sm:$0xf]
        %v469 = vld [vmem:[%s5] sm:$0x1]
        %v471 = vlaneseq
        %v472 = vshrl.u32 %v471, 7
        %v473 = vsub.s32 0, %v472
        %v474 = vrot.slane %v469, %v473
        %v480 = vunpack.c.l.b16 %v465
        %v481 = vunpack.c.l.b16 %v466
        %v482 = vunpack.c.l.b16 %v467
        %v483 = vunpack.c.l.b16 %v468
        %v484 = vpack.c.b16 %v481, %v480
        %v485 = vpack.c.b16 %v483, %v482
        %488 = vmatprep.subr.bf16.mxu0 0
        %489 = vmatpush1.bf16.msra.mxu0 %v484
        %490 = vmatprep.subr.bf16.mxu0 0
        %491 = vmatpush1.bf16.msra.mxu0 %v485
        %492 = vmatprep.subr.bf16.mxu0 0
        %493 = vmatpush1.bf16.msra.mxu0 0
        %494 = vmatprep.subr.bf16.mxu0 0
        %495 = vmatpush1.bf16.msra.mxu0 0
        %496 = vmatprep.subr.bf16.mxu0 0
        %497 = vmatpush1.bf16.msra.mxu0 0
        %498 = vmatprep.subr.bf16.mxu0 0
        %499 = vmatpush1.bf16.msra.mxu0 0
        %500 = vmatprep.subr.bf16.mxu0 0
        %501 = vmatpush1.bf16.msra.mxu0 0
        %502 = vmatprep.subr.bf16.mxu0 0
        %503 = vmatpush1.bf16.msra.mxu0 0
        %504 = vmatprep.subr.bf16.mxu0 0
        %505 = vmatpush1.bf16.msra.mxu0 0
        %506 = vmatprep.subr.bf16.mxu0 0
        %507 = vmatpush1.bf16.msra.mxu0 0
        %508 = vmatprep.subr.bf16.mxu0 0
        %509 = vmatpush1.bf16.msra.mxu0 0
        %510 = vmatprep.subr.bf16.mxu0 0
        %511 = vmatpush1.bf16.msra.mxu0 0
        %512 = vmatprep.subr.bf16.mxu0 0
        %513 = vmatpush1.bf16.msra.mxu0 0
        %514 = vmatprep.subr.bf16.mxu0 0
        %515 = vmatpush1.bf16.msra.mxu0 0
        %516 = vmatprep.subr.bf16.mxu0 0
        %517 = vmatpush1.bf16.msra.mxu0 0
        %518 = vmatprep.subr.bf16.mxu0 0
        %519 = vmatpush1.bf16.msra.mxu0 0
        %520 = vmatprep.mubr.bf16.mxu0 0
        %521 = vmatmul.mubr.bf16.gmra.mrb[0].mxu0 %v420
        %v522 = vpop.f32.mrb[0].mxu0
        %v523 = vadd.f32 %v474, %v522
        %v524 = vpop.f32.mrb[0].mxu0
        %v525 = vpop.f32.mrb[0].mxu0
        %v526 = vpop.f32.mrb[0].mxu0
        %527 = vdwg.mxu0
        %v528 = vpack.c.bf16 %v523, %v523
        %529 = vst.msk [vmem:[#allocation3] sm:$0xf] %vm463, %v528
        %v530 = vld [vmem:[#allocation12] sm:$0xf]
        %v531 = vld [vmem:[#allocation12 + $0x4] sm:$0xf]
        %v532 = vld [vmem:[#allocation12 + $0x8] sm:$0xf]
        %v533 = vld [vmem:[#allocation12 + $0xc] sm:$0xf]
        %v534 = vld [vmem:[%s6] sm:$0x1]
        %v536 = vlaneseq
        %v537 = vshrl.u32 %v536, 7
        %v538 = vsub.s32 0, %v537
        %v539 = vrot.slane %v534, %v538
        %v545 = vunpack.c.l.b16 %v530
        %v546 = vunpack.c.l.b16 %v531
        %v547 = vunpack.c.l.b16 %v532
        %v548 = vunpack.c.l.b16 %v533
        %v549 = vpack.c.b16 %v546, %v545
        %v550 = vpack.c.b16 %v548, %v547
        %553 = vmatprep.subr.bf16.mxu0 0
        %554 = vmatpush1.bf16.msra.mxu0 %v549
        %555 = vmatprep.subr.bf16.mxu0 0
        %556 = vmatpush1.bf16.msra.mxu0 %v550
        %557 = vmatprep.subr.bf16.mxu0 0
        %558 = vmatpush1.bf16.msra.mxu0 0
        %559 = vmatprep.subr.bf16.mxu0 0
        %560 = vmatpush1.bf16.msra.mxu0 0
        %561 = vmatprep.subr.bf16.mxu0 0
        %562 = vmatpush1.bf16.msra.mxu0 0
        %563 = vmatprep.subr.bf16.mxu0 0
        %564 = vmatpush1.bf16.msra.mxu0 0
        %565 = vmatprep.subr.bf16.mxu0 0
        %566 = vmatpush1.bf16.msra.mxu0 0
        %567 = vmatprep.subr.bf16.mxu0 0
        %568 = vmatpush1.bf16.msra.mxu0 0
        %569 = vmatprep.subr.bf16.mxu0 0
        %570 = vmatpush1.bf16.msra.mxu0 0
        %571 = vmatprep.subr.bf16.mxu0 0
        %572 = vmatpush1.bf16.msra.mxu0 0
        %573 = vmatprep.subr.bf16.mxu0 0
        %574 = vmatpush1.bf16.msra.mxu0 0
        %575 = vmatprep.subr.bf16.mxu0 0
        %576 = vmatpush1.bf16.msra.mxu0 0
        %577 = vmatprep.subr.bf16.mxu0 0
        %578 = vmatpush1.bf16.msra.mxu0 0
        %579 = vmatprep.subr.bf16.mxu0 0
        %580 = vmatpush1.bf16.msra.mxu0 0
        %581 = vmatprep.subr.bf16.mxu0 0
        %582 = vmatpush1.bf16.msra.mxu0 0
        %583 = vmatprep.subr.bf16.mxu0 0
        %584 = vmatpush1.bf16.msra.mxu0 0
        %585 = vmatprep.mubr.bf16.mxu0 0
        %586 = vmatmul.mubr.bf16.gmra.mrb[0].mxu0 %v420
        %v587 = vpop.f32.mrb[0].mxu0
        %v588 = vadd.f32 %v539, %v587
        %v589 = vpop.f32.mrb[0].mxu0
        %v590 = vpop.f32.mrb[0].mxu0
        %v591 = vpop.f32.mrb[0].mxu0
        %592 = vdwg.mxu0
        %v593 = vpack.c.bf16 %v588, %v588
        %594 = vst.msk [vmem:[#allocation4] sm:$0xf] %vm463, %v593
        %v595 = vld [vmem:[%s7] sm:$0xf]
        %v596 = vld [vmem:[#allocation2] sm:$0xf]
        %v597 = vld [vmem:[#allocation3] sm:$0xf]
        %v598 = vld [vmem:[#allocation4] sm:$0xf]
        %vm599 = vcmask 64512
        %v601 = vsel %vm599, %v596, 0
        %v604 = vsel %vm599, %v597, 0
        %606 = vmatprep.subr.bf16.mxu0 0
        %607 = vmatpush1.bf16.xpose.msra.mxu0 %v604
        %608 = vmatprep.subr.bf16.mxu0 0
        %609 = vmatpush1.bf16.xpose.msra.mxu0 0
        %610 = vmatprep.subr.bf16.mxu0 0
        %611 = vmatpush1.bf16.xpose.msra.mxu0 0
        %612 = vmatprep.subr.bf16.mxu0 0
        %613 = vmatpush1.bf16.xpose.msra.mxu0 0
        %614 = vmatprep.subr.bf16.mxu0 0
        %615 = vmatpush1.bf16.xpose.msra.mxu0 0
        %616 = vmatprep.subr.bf16.mxu0 0
        %617 = vmatpush1.bf16.xpose.msra.mxu0 0
        %618 = vmatprep.subr.bf16.mxu0 0
        %619 = vmatpush1.bf16.xpose.msra.mxu0 0
        %620 = vmatprep.subr.bf16.mxu0 0
        %621 = vmatpush1.bf16.xpose.msra.mxu0 0
        %622 = vmatprep.subr.bf16.mxu0 0
        %623 = vmatpush1.bf16.xpose.msra.mxu0 0
        %624 = vmatprep.subr.bf16.mxu0 0
        %625 = vmatpush1.bf16.xpose.msra.mxu0 0
        %626 = vmatprep.subr.bf16.mxu0 0
        %627 = vmatpush1.bf16.xpose.msra.mxu0 0
        %628 = vmatprep.subr.bf16.mxu0 0
        %629 = vmatpush1.bf16.xpose.msra.mxu0 0
        %630 = vmatprep.subr.bf16.mxu0 0
        %631 = vmatpush1.bf16.xpose.msra.mxu0 0
        %632 = vmatprep.subr.bf16.mxu0 0
        %633 = vmatpush1.bf16.xpose.msra.mxu0 0
        %634 = vmatprep.subr.bf16.mxu0 0
        %635 = vmatpush1.bf16.xpose.msra.mxu0 0
        %636 = vmatprep.subr.bf16.mxu0 0
        %637 = vmatpush1.bf16.xpose.msra.mxu0 0
        %638 = vmatprep.mubr.bf16.mxu0 0
        %639 = vmatmul.mubr.bf16.gmra.mrb[0].mxu0 %v601
        %v640 = vpop.f32.mrb[0].mxu0
        %v641 = vadd.f32 0.0, %v640
        %v642 = vpop.f32.mrb[0].mxu0
        %v643 = vpop.f32.mrb[0].mxu0
        %v644 = vpop.f32.mrb[0].mxu0
        %645 = vdwg.mxu0
        %v646 = vsel %vm599, %v641, -inf
        %647 = vmax.xlane.f32.xlu0 %v646
        %v648 = vpop.xlane.xlu0 %647
        %v649 = vsub.f32 %v641, %v648
        %v650 = vmul.f32 %v649, 1.442695
        %v651 = vpow.pop %v650
        %v652 = vsel %vm599, %v651, 0.0
        %653 = vadd.xlane.f32.xlu0 %v652
        %v654 = vpop.xlane.xlu0 %653
        %v655 = vrcp.pop %v654
        %v656 = vpack.c.bf16 %v651, %v651
        %v658 = vsel %vm599, %v656, 0
        %vm660 = vcmask 1043456
        %v662 = vsel %vm660, %v598, 0
        %664 = vmatprep.subr.bf16.mxu0 0
        %665 = vmatpush1.bf16.msra.mxu0 %v662
        %666 = vmatprep.subr.bf16.mxu0 0
        %667 = vmatpush1.bf16.msra.mxu0 0
        %668 = vmatprep.subr.bf16.mxu0 0
        %669 = vmatpush1.bf16.msra.mxu0 0
        %670 = vmatprep.subr.bf16.mxu0 0
        %671 = vmatpush1.bf16.msra.mxu0 0
        %672 = vmatprep.subr.bf16.mxu0 0
        %673 = vmatpush1.bf16.msra.mxu0 0
        %674 = vmatprep.subr.bf16.mxu0 0
        %675 = vmatpush1.bf16.msra.mxu0 0
        %676 = vmatprep.subr.bf16.mxu0 0
        %677 = vmatpush1.bf16.msra.mxu0 0
        %678 = vmatprep.subr.bf16.mxu0 0
        %679 = vmatpush1.bf16.msra.mxu0 0
        %680 = vmatprep.subr.bf16.mxu0 0
        %681 = vmatpush1.bf16.msra.mxu0 0
        %682 = vmatprep.subr.bf16.mxu0 0
        %683 = vmatpush1.bf16.msra.mxu0 0
        %684 = vmatprep.subr.bf16.mxu0 0
        %685 = vmatpush1.bf16.msra.mxu0 0
        %686 = vmatprep.subr.bf16.mxu0 0
        %687 = vmatpush1.bf16.msra.mxu0 0
        %688 = vmatprep.subr.bf16.mxu0 0
        %689 = vmatpush1.bf16.msra.mxu0 0
        %690 = vmatprep.subr.bf16.mxu0 0
        %691 = vmatpush1.bf16.msra.mxu0 0
        %692 = vmatprep.subr.bf16.mxu0 0
        %693 = vmatpush1.bf16.msra.mxu0 0
        %694 = vmatprep.subr.bf16.mxu0 0
        %695 = vmatpush1.bf16.msra.mxu0 0
        %696 = vmatprep.mubr.bf16.mxu0 0
        %697 = vmatmul.mubr.bf16.gmra.mrb[0].mxu0 %v658
        %v698 = vpop.f32.mrb[0].mxu0
        %v699 = vadd.f32 0.0, %v698
        %v700 = vpop.f32.mrb[0].mxu0
        %v701 = vpop.f32.mrb[0].mxu0
        %v702 = vpop.f32.mrb[0].mxu0
        %703 = vdwg.mxu0
        %v704 = vmul.f32 %v699, %v655
        %v705 = vpack.c.bf16 %v704, %v704
        %v707 = vsel %vm599, %v705, 0
        %v710 = vsel %vm660, %v595, 0
        %712 = vmatprep.subr.bf16.mxu0 0
        %713 = vmatpush1.bf16.msra.mxu0 %v710
        %714 = vmatprep.subr.bf16.mxu0 0
        %715 = vmatpush1.bf16.msra.mxu0 0
        %716 = vmatprep.subr.bf16.mxu0 0
        %717 = vmatpush1.bf16.msra.mxu0 0
        %718 = vmatprep.subr.bf16.mxu0 0
        %719 = vmatpush1.bf16.msra.mxu0 0
        %720 = vmatprep.subr.bf16.mxu0 0
        %721 = vmatpush1.bf16.msra.mxu0 0
        %722 = vmatprep.subr.bf16.mxu0 0
        %723 = vmatpush1.bf16.msra.mxu0 0
        %724 = vmatprep.subr.bf16.mxu0 0
        %725 = vmatpush1.bf16.msra.mxu0 0
        %726 = vmatprep.subr.bf16.mxu0 0
        %727 = vmatpush1.bf16.msra.mxu0 0
        %728 = vmatprep.subr.bf16.mxu0 0
        %729 = vmatpush1.bf16.msra.mxu0 0
        %730 = vmatprep.subr.bf16.mxu0 0
        %731 = vmatpush1.bf16.msra.mxu0 0
        %732 = vmatprep.subr.bf16.mxu0 0
        %733 = vmatpush1.bf16.msra.mxu0 0
        %734 = vmatprep.subr.bf16.mxu0 0
        %735 = vmatpush1.bf16.msra.mxu0 0
        %736 = vmatprep.subr.bf16.mxu0 0
        %737 = vmatpush1.bf16.msra.mxu0 0
        %738 = vmatprep.subr.bf16.mxu0 0
        %739 = vmatpush1.bf16.msra.mxu0 0
        %740 = vmatprep.subr.bf16.mxu0 0
        %741 = vmatpush1.bf16.msra.mxu0 0
        %742 = vmatprep.subr.bf16.mxu0 0
        %743 = vmatpush1.bf16.msra.mxu0 0
        %744 = vmatprep.mubr.bf16.mxu0 0
        %745 = vmatmul.mubr.bf16.gmra.mrb[0].mxu0 %v707
        %v746 = vpop.f32.mrb[0].mxu0
        %v747 = vadd.f32 0.0, %v746
        %v748 = vpop.f32.mrb[0].mxu0
        %v749 = vpop.f32.mrb[0].mxu0
        %v750 = vpop.f32.mrb[0].mxu0
        %751 = vdwg.mxu0
        %752 = vst.msk [vmem:[#allocation5] sm:$0xff] %vm418, %v747
        %v753 = vld [vmem:[%s7 + $0x4] sm:$0xf]
        %v754 = vld [vmem:[#allocation2] sm:$0xf]
        %v755 = vld [vmem:[#allocation3] sm:$0xf]
        %v756 = vld [vmem:[#allocation4] sm:$0xf]
        %v758 = vunpack.c.l.b16 %v754
        %v759 = vpack.c.b16 %v758, %v758
        %760 = vrot.lane.b32.xlu0 %v759, 120
        %v761 = vpop.permute.xlu0 %760
        %v763 = vunpack.c.l.b16 %v755
        %v764 = vpack.c.b16 %v763, %v763
        %765 = vrot.lane.b32.xlu0 %v764, 120
        %v766 = vpop.permute.xlu0 %765
        %v768 = vsel %vm599, %v761, 0
        %v771 = vsel %vm599, %v766, 0
        %773 = vmatprep.subr.bf16.mxu0 0
        %774 = vmatpush1.bf16.xpose.msra.mxu0 %v771
        %775 = vmatprep.subr.bf16.mxu0 0
        %776 = vmatpush1.bf16.xpose.msra.mxu0 0
        %777 = vmatprep.subr.bf16.mxu0 0
        %778 = vmatpush1.bf16.xpose.msra.mxu0 0
        %779 = vmatprep.subr.bf16.mxu0 0
        %780 = vmatpush1.bf16.xpose.msra.mxu0 0
        %781 = vmatprep.subr.bf16.mxu0 0
        %782 = vmatpush1.bf16.xpose.msra.mxu0 0
        %783 = vmatprep.subr.bf16.mxu0 0
        %784 = vmatpush1.bf16.xpose.msra.mxu0 0
        %785 = vmatprep.subr.bf16.mxu0 0
        %786 = vmatpush1.bf16.xpose.msra.mxu0 0
        %787 = vmatprep.subr.bf16.mxu0 0
        %788 = vmatpush1.bf16.xpose.msra.mxu0 0
        %789 = vmatprep.subr.bf16.mxu0 0
        %790 = vmatpush1.bf16.xpose.msra.mxu0 0
        %791 = vmatprep.subr.bf16.mxu0 0
        %792 = vmatpush1.bf16.xpose.msra.mxu0 0
        %793 = vmatprep.subr.bf16.mxu0 0
        %794 = vmatpush1.bf16.xpose.msra.mxu0 0
        %795 = vmatprep.subr.bf16.mxu0 0
        %796 = vmatpush1.bf16.xpose.msra.mxu0 0
        %797 = vmatprep.subr.bf16.mxu0 0
        %798 = vmatpush1.bf16.xpose.msra.mxu0 0
        %799 = vmatprep.subr.bf16.mxu0 0
        %800 = vmatpush1.bf16.xpose.msra.mxu0 0
        %801 = vmatprep.subr.bf16.mxu0 0
        %802 = vmatpush1.bf16.xpose.msra.mxu0 0
        %803 = vmatprep.subr.bf16.mxu0 0
        %804 = vmatpush1.bf16.xpose.msra.mxu0 0
        %805 = vmatprep.mubr.bf16.mxu0 0
        %806 = vmatmul.mubr.bf16.gmra.mrb[0].mxu0 %v768
        %v807 = vpop.f32.mrb[0].mxu0
        %v808 = vadd.f32 0.0, %v807
        %v809 = vpop.f32.mrb[0].mxu0
        %v810 = vpop.f32.mrb[0].mxu0
        %v811 = vpop.f32.mrb[0].mxu0
        %812 = vdwg.mxu0
        %v813 = vsel %vm599, %v808, -inf
        %814 = vmax.xlane.f32.xlu0 %v813
        %v815 = vpop.xlane.xlu0 %814
        %v816 = vsub.f32 %v808, %v815
        %v817 = vmul.f32 %v816, 1.442695
        %v818 = vpow.pop %v817
        %v819 = vsel %vm599, %v818, 0.0
        %820 = vadd.xlane.f32.xlu0 %v819
        %v821 = vpop.xlane.xlu0 %820
        %v822 = vrcp.pop %v821
        %v823 = vpack.c.bf16 %v818, %v818
        %v825 = vunpack.c.l.b16 %v756
        %v826 = vpack.c.b16 %v825, %v825
        %827 = vrot.lane.b32.xlu0 %v826, 120
        %v828 = vpop.permute.xlu0 %827
        %v830 = vsel %vm599, %v823, 0
        %v833 = vsel %vm660, %v828, 0
        %835 = vmatprep.subr.bf16.mxu0 0
        %836 = vmatpush1.bf16.msra.mxu0 %v833
        %837 = vmatprep.subr.bf16.mxu0 0
        %838 = vmatpush1.bf16.msra.mxu0 0
        %839 = vmatprep.subr.bf16.mxu0 0
        %840 = vmatpush1.bf16.msra.mxu0 0
        %841 = vmatprep.subr.bf16.mxu0 0
        %842 = vmatpush1.bf16.msra.mxu0 0
        %843 = vmatprep.subr.bf16.mxu0 0
        %844 = vmatpush1.bf16.msra.mxu0 0
        %845 = vmatprep.subr.bf16.mxu0 0
        %846 = vmatpush1.bf16.msra.mxu0 0
        %847 = vmatprep.subr.bf16.mxu0 0
        %848 = vmatpush1.bf16.msra.mxu0 0
        %849 = vmatprep.subr.bf16.mxu0 0
        %850 = vmatpush1.bf16.msra.mxu0 0
        %851 = vmatprep.subr.bf16.mxu0 0
        %852 = vmatpush1.bf16.msra.mxu0 0
        %853 = vmatprep.subr.bf16.mxu0 0
        %854 = vmatpush1.bf16.msra.mxu0 0
        %855 = vmatprep.subr.bf16.mxu0 0
        %856 = vmatpush1.bf16.msra.mxu0 0
        %857 = vmatprep.subr.bf16.mxu0 0
        %858 = vmatpush1.bf16.msra.mxu0 0
        %859 = vmatprep.subr.bf16.mxu0 0
        %860 = vmatpush1.bf16.msra.mxu0 0
        %861 = vmatprep.subr.bf16.mxu0 0
        %862 = vmatpush1.bf16.msra.mxu0 0
        %863 = vmatprep.subr.bf16.mxu0 0
        %864 = vmatpush1.bf16.msra.mxu0 0
        %865 = vmatprep.subr.bf16.mxu0 0
        %866 = vmatpush1.bf16.msra.mxu0 0
        %867 = vmatprep.mubr.bf16.mxu0 0
        %868 = vmatmul.mubr.bf16.gmra.mrb[0].mxu0 %v830
        %v869 = vpop.f32.mrb[0].mxu0
        %v870 = vadd.f32 0.0, %v869
        %v871 = vpop.f32.mrb[0].mxu0
        %v872 = vpop.f32.mrb[0].mxu0
        %v873 = vpop.f32.mrb[0].mxu0
        %874 = vdwg.mxu0
        %v875 = vmul.f32 %v870, %v822
        %v876 = vpack.c.bf16 %v875, %v875
        %v878 = vsel %vm599, %v876, 0
        %v881 = vsel %vm660, %v753, 0
        %883 = vmatprep.subr.bf16.mxu0 0
        %884 = vmatpush1.bf16.msra.mxu0 %v881
        %885 = vmatprep.subr.bf16.mxu0 0
        %886 = vmatpush1.bf16.msra.mxu0 0
        %887 = vmatprep.subr.bf16.mxu0 0
        %888 = vmatpush1.bf16.msra.mxu0 0
        %889 = vmatprep.subr.bf16.mxu0 0
        %890 = vmatpush1.bf16.msra.mxu0 0
        %891 = vmatprep.subr.bf16.mxu0 0
        %892 = vmatpush1.bf16.msra.mxu0 0
        %893 = vmatprep.subr.bf16.mxu0 0
        %894 = vmatpush1.bf16.msra.mxu0 0
        %895 = vmatprep.subr.bf16.mxu0 0
        %896 = vmatpush1.bf16.msra.mxu0 0
        %897 = vmatprep.subr.bf16.mxu0 0
        %898 = vmatpush1.bf16.msra.mxu0 0
        %899 = vmatprep.subr.bf16.mxu0 0
        %900 = vmatpush1.bf16.msra.mxu0 0
        %901 = vmatprep.subr.bf16.mxu0 0
        %902 = vmatpush1.bf16.msra.mxu0 0
        %903 = vmatprep.subr.bf16.mxu0 0
        %904 = vmatpush1.bf16.msra.mxu0 0
        %905 = vmatprep.subr.bf16.mxu0 0
        %906 = vmatpush1.bf16.msra.mxu0 0
        %907 = vmatprep.subr.bf16.mxu0 0
        %908 = vmatpush1.bf16.msra.mxu0 0
        %909 = vmatprep.subr.bf16.mxu0 0
        %910 = vmatpush1.bf16.msra.mxu0 0
        %911 = vmatprep.subr.bf16.mxu0 0
        %912 = vmatpush1.bf16.msra.mxu0 0
        %913 = vmatprep.subr.bf16.mxu0 0
        %914 = vmatpush1.bf16.msra.mxu0 0
        %915 = vmatprep.mubr.bf16.mxu0 0
        %916 = vmatmul.mubr.bf16.gmra.mrb[0].mxu0 %v878
        %v917 = vpop.f32.mrb[0].mxu0
        %v918 = vadd.f32 0.0, %v917
        %v919 = vpop.f32.mrb[0].mxu0
        %v920 = vpop.f32.mrb[0].mxu0
        %v921 = vpop.f32.mrb[0].mxu0
        %922 = vdwg.mxu0
        %v923 = vld [vmem:[#allocation5] sm:$0xff]
        %v924 = vadd.f32 %v923, %v918
        %925 = vst.msk [vmem:[#allocation5] sm:$0xff] %vm418, %v924
        %v926 = vld [vmem:[%s7 + $0x8] sm:$0xf]
        %v927 = vld [vmem:[#allocation2] sm:$0xf]
        %v928 = vld [vmem:[#allocation3] sm:$0xf]
        %v929 = vld [vmem:[#allocation4] sm:$0xf]
        %v931 = vunpack.c.l.b16 %v927
        %v932 = vpack.c.b16 %v931, %v931
        %933 = vrot.lane.b32.xlu0 %v932, 112
        %v934 = vpop.permute.xlu0 %933
        %v936 = vunpack.c.l.b16 %v928
        %v937 = vpack.c.b16 %v936, %v936
        %938 = vrot.lane.b32.xlu0 %v937, 112
        %v939 = vpop.permute.xlu0 %938
        %v941 = vsel %vm599, %v934, 0
        %v944 = vsel %vm599, %v939, 0
        %946 = vmatprep.subr.bf16.mxu0 0
        %947 = vmatpush1.bf16.xpose.msra.mxu0 %v944
        %948 = vmatprep.subr.bf16.mxu0 0
        %949 = vmatpush1.bf16.xpose.msra.mxu0 0
        %950 = vmatprep.subr.bf16.mxu0 0
        %951 = vmatpush1.bf16.xpose.msra.mxu0 0
        %952 = vmatprep.subr.bf16.mxu0 0
        %953 = vmatpush1.bf16.xpose.msra.mxu0 0
        %954 = vmatprep.subr.bf16.mxu0 0
        %955 = vmatpush1.bf16.xpose.msra.mxu0 0
        %956 = vmatprep.subr.bf16.mxu0 0
        %957 = vmatpush1.bf16.xpose.msra.mxu0 0
        %958 = vmatprep.subr.bf16.mxu0 0
        %959 = vmatpush1.bf16.xpose.msra.mxu0 0
        %960 = vmatprep.subr.bf16.mxu0 0
        %961 = vmatpush1.bf16.xpose.msra.mxu0 0
        %962 = vmatprep.subr.bf16.mxu0 0
        %963 = vmatpush1.bf16.xpose.msra.mxu0 0
        %964 = vmatprep.subr.bf16.mxu0 0
        %965 = vmatpush1.bf16.xpose.msra.mxu0 0
        %966 = vmatprep.subr.bf16.mxu0 0
        %967 = vmatpush1.bf16.xpose.msra.mxu0 0
        %968 = vmatprep.subr.bf16.mxu0 0
        %969 = vmatpush1.bf16.xpose.msra.mxu0 0
        %970 = vmatprep.subr.bf16.mxu0 0
        %971 = vmatpush1.bf16.xpose.msra.mxu0 0
        %972 = vmatprep.subr.bf16.mxu0 0
        %973 = vmatpush1.bf16.xpose.msra.mxu0 0
        %974 = vmatprep.subr.bf16.mxu0 0
        %975 = vmatpush1.bf16.xpose.msra.mxu0 0
        %976 = vmatprep.subr.bf16.mxu0 0
        %977 = vmatpush1.bf16.xpose.msra.mxu0 0
        %978 = vmatprep.mubr.bf16.mxu0 0
        %979 = vmatmul.mubr.bf16.gmra.mrb[0].mxu0 %v941
        %v980 = vpop.f32.mrb[0].mxu0
        %v981 = vadd.f32 0.0, %v980
        %v982 = vpop.f32.mrb[0].mxu0
        %v983 = vpop.f32.mrb[0].mxu0
        %v984 = vpop.f32.mrb[0].mxu0
        %985 = vdwg.mxu0
        %v986 = vsel %vm599, %v981, -inf
        %987 = vmax.xlane.f32.xlu0 %v986
        %v988 = vpop.xlane.xlu0 %987
        %v989 = vsub.f32 %v981, %v988
        %v990 = vmul.f32 %v989, 1.442695
        %v991 = vpow.pop %v990
        %v992 = vsel %vm599, %v991, 0.0
        %993 = vadd.xlane.f32.xlu0 %v992
        %v994 = vpop.xlane.xlu0 %993
        %v995 = vrcp.pop %v994
        %v996 = vpack.c.bf16 %v991, %v991
        %v998 = vunpack.c.l.b16 %v929
        %v999 = vpack.c.b16 %v998, %v998
        %1000 = vrot.lane.b32.xlu0 %v999, 112
        %v1001 = vpop.permute.xlu0 %1000
        %v1003 = vsel %vm599, %v996, 0
        %v1006 = vsel %vm660, %v1001, 0
        %1008 = vmatprep.subr.bf16.mxu0 0
        %1009 = vmatpush1.bf16.msra.mxu0 %v1006
        %1010 = vmatprep.subr.bf16.mxu0 0
        %1011 = vmatpush1.bf16.msra.mxu0 0
        %1012 = vmatprep.subr.bf16.mxu0 0
        %1013 = vmatpush1.bf16.msra.mxu0 0
        %1014 = vmatprep.subr.bf16.mxu0 0
        %1015 = vmatpush1.bf16.msra.mxu0 0
        %1016 = vmatprep.subr.bf16.mxu0 0
        %1017 = vmatpush1.bf16.msra.mxu0 0
        %1018 = vmatprep.subr.bf16.mxu0 0
        %1019 = vmatpush1.bf16.msra.mxu0 0
        %1020 = vmatprep.subr.bf16.mxu0 0
        %1021 = vmatpush1.bf16.msra.mxu0 0
        %1022 = vmatprep.subr.bf16.mxu0 0
        %1023 = vmatpush1.bf16.msra.mxu0 0
        %1024 = vmatprep.subr.bf16.mxu0 0
        %1025 = vmatpush1.bf16.msra.mxu0 0
        %1026 = vmatprep.subr.bf16.mxu0 0
        %1027 = vmatpush1.bf16.msra.mxu0 0
        %1028 = vmatprep.subr.bf16.mxu0 0
        %1029 = vmatpush1.bf16.msra.mxu0 0
        %1030 = vmatprep.subr.bf16.mxu0 0
        %1031 = vmatpush1.bf16.msra.mxu0 0
        %1032 = vmatprep.subr.bf16.mxu0 0
        %1033 = vmatpush1.bf16.msra.mxu0 0
        %1034 = vmatprep.subr.bf16.mxu0 0
        %1035 = vmatpush1.bf16.msra.mxu0 0
        %1036 = vmatprep.subr.bf16.mxu0 0
        %1037 = vmatpush1.bf16.msra.mxu0 0
        %1038 = vmatprep.subr.bf16.mxu0 0
        %1039 = vmatpush1.bf16.msra.mxu0 0
        %1040 = vmatprep.mubr.bf16.mxu0 0
        %1041 = vmatmul.mubr.bf16.gmra.mrb[0].mxu0 %v1003
        %v1042 = vpop.f32.mrb[0].mxu0
        %v1043 = vadd.f32 0.0, %v1042
        %v1044 = vpop.f32.mrb[0].mxu0
        %v1045 = vpop.f32.mrb[0].mxu0
        %v1046 = vpop.f32.mrb[0].mxu0
        %1047 = vdwg.mxu0
        %v1048 = vmul.f32 %v1043, %v995
        %v1049 = vpack.c.bf16 %v1048, %v1048
        %v1051 = vsel %vm599, %v1049, 0
        %v1054 = vsel %vm660, %v926, 0
        %1056 = vmatprep.subr.bf16.mxu0 0
        %1057 = vmatpush1.bf16.msra.mxu0 %v1054
        %1058 = vmatprep.subr.bf16.mxu0 0
        %1059 = vmatpush1.bf16.msra.mxu0 0
        %1060 = vmatprep.subr.bf16.mxu0 0
        %1061 = vmatpush1.bf16.msra.mxu0 0
        %1062 = vmatprep.subr.bf16.mxu0 0
        %1063 = vmatpush1.bf16.msra.mxu0 0
        %1064 = vmatprep.subr.bf16.mxu0 0
        %1065 = vmatpush1.bf16.msra.mxu0 0
        %1066 = vmatprep.subr.bf16.mxu0 0
        %1067 = vmatpush1.bf16.msra.mxu0 0
        %1068 = vmatprep.subr.bf16.mxu0 0
        %1069 = vmatpush1.bf16.msra.mxu0 0
        %1070 = vmatprep.subr.bf16.mxu0 0
        %1071 = vmatpush1.bf16.msra.mxu0 0
        %1072 = vmatprep.subr.bf16.mxu0 0
        %1073 = vmatpush1.bf16.msra.mxu0 0
        %1074 = vmatprep.subr.bf16.mxu0 0
        %1075 = vmatpush1.bf16.msra.mxu0 0
        %1076 = vmatprep.subr.bf16.mxu0 0
        %1077 = vmatpush1.bf16.msra.mxu0 0
        %1078 = vmatprep.subr.bf16.mxu0 0
        %1079 = vmatpush1.bf16.msra.mxu0 0
        %1080 = vmatprep.subr.bf16.mxu0 0
        %1081 = vmatpush1.bf16.msra.mxu0 0
        %1082 = vmatprep.subr.bf16.mxu0 0
        %1083 = vmatpush1.bf16.msra.mxu0 0
        %1084 = vmatprep.subr.bf16.mxu0 0
        %1085 = vmatpush1.bf16.msra.mxu0 0
        %1086 = vmatprep.subr.bf16.mxu0 0
        %1087 = vmatpush1.bf16.msra.mxu0 0
        %1088 = vmatprep.mubr.bf16.mxu0 0
        %1089 = vmatmul.mubr.bf16.gmra.mrb[0].mxu0 %v1051
        %v1090 = vpop.f32.mrb[0].mxu0
        %v1091 = vadd.f32 0.0, %v1090
        %v1092 = vpop.f32.mrb[0].mxu0
        %v1093 = vpop.f32.mrb[0].mxu0
        %v1094 = vpop.f32.mrb[0].mxu0
        %1095 = vdwg.mxu0
        %v1096 = vld [vmem:[#allocation5] sm:$0xff]
        %v1097 = vadd.f32 %v1096, %v1091
        %1098 = vst.msk [vmem:[#allocation5] sm:$0xff] %vm418, %v1097
        %v1099 = vld [vmem:[%s7 + $0xc] sm:$0xf]
        %v1100 = vld [vmem:[#allocation2] sm:$0xf]
        %v1101 = vld [vmem:[#allocation3] sm:$0xf]
        %v1102 = vld [vmem:[#allocation4] sm:$0xf]
        %v1104 = vunpack.c.l.b16 %v1100
        %v1105 = vpack.c.b16 %v1104, %v1104
        %1106 = vrot.lane.b32.xlu0 %v1105, 104
        %v1107 = vpop.permute.xlu0 %1106
        %v1109 = vunpack.c.l.b16 %v1101
        %v1110 = vpack.c.b16 %v1109, %v1109
        %1111 = vrot.lane.b32.xlu0 %v1110, 104
        %v1112 = vpop.permute.xlu0 %1111
        %v1114 = vsel %vm599, %v1107, 0
        %v1117 = vsel %vm599, %v1112, 0
        %1119 = vmatprep.subr.bf16.mxu0 0
        %1120 = vmatpush1.bf16.xpose.msra.mxu0 %v1117
        %1121 = vmatprep.subr.bf16.mxu0 0
        %1122 = vmatpush1.bf16.xpose.msra.mxu0 0
        %1123 = vmatprep.subr.bf16.mxu0 0
        %1124 = vmatpush1.bf16.xpose.msra.mxu0 0
        %1125 = vmatprep.subr.bf16.mxu0 0
        %1126 = vmatpush1.bf16.xpose.msra.mxu0 0
        %1127 = vmatprep.subr.bf16.mxu0 0
        %1128 = vmatpush1.bf16.xpose.msra.mxu0 0
        %1129 = vmatprep.subr.bf16.mxu0 0
        %1130 = vmatpush1.bf16.xpose.msra.mxu0 0
        %1131 = vmatprep.subr.bf16.mxu0 0
        %1132 = vmatpush1.bf16.xpose.msra.mxu0 0
        %1133 = vmatprep.subr.bf16.mxu0 0
        %1134 = vmatpush1.bf16.xpose.msra.mxu0 0
        %1135 = vmatprep.subr.bf16.mxu0 0
        %1136 = vmatpush1.bf16.xpose.msra.mxu0 0
        %1137 = vmatprep.subr.bf16.mxu0 0
        %1138 = vmatpush1.bf16.xpose.msra.mxu0 0
        %1139 = vmatprep.subr.bf16.mxu0 0
        %1140 = vmatpush1.bf16.xpose.msra.mxu0 0
        %1141 = vmatprep.subr.bf16.mxu0 0
        %1142 = vmatpush1.bf16.xpose.msra.mxu0 0
        %1143 = vmatprep.subr.bf16.mxu0 0
        %1144 = vmatpush1.bf16.xpose.msra.mxu0 0
        %1145 = vmatprep.subr.bf16.mxu0 0
        %1146 = vmatpush1.bf16.xpose.msra.mxu0 0
        %1147 = vmatprep.subr.bf16.mxu0 0
        %1148 = vmatpush1.bf16.xpose.msra.mxu0 0
        %1149 = vmatprep.subr.bf16.mxu0 0
        %1150 = vmatpush1.bf16.xpose.msra.mxu0 0
        %1151 = vmatprep.mubr.bf16.mxu0 0
        %1152 = vmatmul.mubr.bf16.gmra.mrb[0].mxu0 %v1114
        %v1153 = vpop.f32.mrb[0].mxu0
        %v1154 = vadd.f32 0.0, %v1153
        %v1155 = vpop.f32.mrb[0].mxu0
        %v1156 = vpop.f32.mrb[0].mxu0
        %v1157 = vpop.f32.mrb[0].mxu0
        %1158 = vdwg.mxu0
        %v1159 = vsel %vm599, %v1154, -inf
        %1160 = vmax.xlane.f32.xlu0 %v1159
        %v1161 = vpop.xlane.xlu0 %1160
        %v1162 = vsub.f32 %v1154, %v1161
        %v1163 = vmul.f32 %v1162, 1.442695
        %v1164 = vpow.pop %v1163
        %v1165 = vsel %vm599, %v1164, 0.0
        %1166 = vadd.xlane.f32.xlu0 %v1165
        %v1167 = vpop.xlane.xlu0 %1166
        %v1168 = vrcp.pop %v1167
        %v1169 = vpack.c.bf16 %v1164, %v1164
        %v1171 = vunpack.c.l.b16 %v1102
        %v1172 = vpack.c.b16 %v1171, %v1171
        %1173 = vrot.lane.b32.xlu0 %v1172, 104
        %v1174 = vpop.permute.xlu0 %1173
        %v1176 = vsel %vm599, %v1169, 0
        %v1179 = vsel %vm660, %v1174, 0
        %1181 = vmatprep.subr.bf16.mxu0 0
        %1182 = vmatpush1.bf16.msra.mxu0 %v1179
        %1183 = vmatprep.subr.bf16.mxu0 0
        %1184 = vmatpush1.bf16.msra.mxu0 0
        %1185 = vmatprep.subr.bf16.mxu0 0
        %1186 = vmatpush1.bf16.msra.mxu0 0
        %1187 = vmatprep.subr.bf16.mxu0 0
        %1188 = vmatpush1.bf16.msra.mxu0 0
        %1189 = vmatprep.subr.bf16.mxu0 0
        %1190 = vmatpush1.bf16.msra.mxu0 0
        %1191 = vmatprep.subr.bf16.mxu0 0
        %1192 = vmatpush1.bf16.msra.mxu0 0
        %1193 = vmatprep.subr.bf16.mxu0 0
        %1194 = vmatpush1.bf16.msra.mxu0 0
        %1195 = vmatprep.subr.bf16.mxu0 0
        %1196 = vmatpush1.bf16.msra.mxu0 0
        %1197 = vmatprep.subr.bf16.mxu0 0
        %1198 = vmatpush1.bf16.msra.mxu0 0
        %1199 = vmatprep.subr.bf16.mxu0 0
        %1200 = vmatpush1.bf16.msra.mxu0 0
        %1201 = vmatprep.subr.bf16.mxu0 0
        %1202 = vmatpush1.bf16.msra.mxu0 0
        %1203 = vmatprep.subr.bf16.mxu0 0
        %1204 = vmatpush1.bf16.msra.mxu0 0
        %1205 = vmatprep.subr.bf16.mxu0 0
        %1206 = vmatpush1.bf16.msra.mxu0 0
        %1207 = vmatprep.subr.bf16.mxu0 0
        %1208 = vmatpush1.bf16.msra.mxu0 0
        %1209 = vmatprep.subr.bf16.mxu0 0
        %1210 = vmatpush1.bf16.msra.mxu0 0
        %1211 = vmatprep.subr.bf16.mxu0 0
        %1212 = vmatpush1.bf16.msra.mxu0 0
        %1213 = vmatprep.mubr.bf16.mxu0 0
        %1214 = vmatmul.mubr.bf16.gmra.mrb[0].mxu0 %v1176
        %v1215 = vpop.f32.mrb[0].mxu0
        %v1216 = vadd.f32 0.0, %v1215
        %v1217 = vpop.f32.mrb[0].mxu0
        %v1218 = vpop.f32.mrb[0].mxu0
        %v1219 = vpop.f32.mrb[0].mxu0
        %1220 = vdwg.mxu0
        %v1221 = vmul.f32 %v1216, %v1168
        %v1222 = vpack.c.bf16 %v1221, %v1221
        %v1224 = vsel %vm599, %v1222, 0
        %v1227 = vsel %vm660, %v1099, 0
        %1229 = vmatprep.subr.bf16.mxu0 0
        %1230 = vmatpush1.bf16.msra.mxu0 %v1227
        %1231 = vmatprep.subr.bf16.mxu0 0
        %1232 = vmatpush1.bf16.msra.mxu0 0
        %1233 = vmatprep.subr.bf16.mxu0 0
        %1234 = vmatpush1.bf16.msra.mxu0 0
        %1235 = vmatprep.subr.bf16.mxu0 0
        %1236 = vmatpush1.bf16.msra.mxu0 0
        %1237 = vmatprep.subr.bf16.mxu0 0
        %1238 = vmatpush1.bf16.msra.mxu0 0
        %1239 = vmatprep.subr.bf16.mxu0 0
        %1240 = vmatpush1.bf16.msra.mxu0 0
        %1241 = vmatprep.subr.bf16.mxu0 0
        %1242 = vmatpush1.bf16.msra.mxu0 0
        %1243 = vmatprep.subr.bf16.mxu0 0
        %1244 = vmatpush1.bf16.msra.mxu0 0
        %1245 = vmatprep.subr.bf16.mxu0 0
        %1246 = vmatpush1.bf16.msra.mxu0 0
        %1247 = vmatprep.subr.bf16.mxu0 0
        %1248 = vmatpush1.bf16.msra.mxu0 0
        %1249 = vmatprep.subr.bf16.mxu0 0
        %1250 = vmatpush1.bf16.msra.mxu0 0
        %1251 = vmatprep.subr.bf16.mxu0 0
        %1252 = vmatpush1.bf16.msra.mxu0 0
        %1253 = vmatprep.subr.bf16.mxu0 0
        %1254 = vmatpush1.bf16.msra.mxu0 0
        %1255 = vmatprep.subr.bf16.mxu0 0
        %1256 = vmatpush1.bf16.msra.mxu0 0
        %1257 = vmatprep.subr.bf16.mxu0 0
        %1258 = vmatpush1.bf16.msra.mxu0 0
        %1259 = vmatprep.subr.bf16.mxu0 0
        %1260 = vmatpush1.bf16.msra.mxu0 0
        %1261 = vmatprep.mubr.bf16.mxu0 0
        %1262 = vmatmul.mubr.bf16.gmra.mrb[0].mxu0 %v1224
        %v1263 = vpop.f32.mrb[0].mxu0
        %v1264 = vadd.f32 0.0, %v1263
        %v1265 = vpop.f32.mrb[0].mxu0
        %v1266 = vpop.f32.mrb[0].mxu0
        %v1267 = vpop.f32.mrb[0].mxu0
        %1268 = vdwg.mxu0
        %v1269 = vld [vmem:[#allocation5] sm:$0xff]
        %v1270 = vadd.f32 %v1269, %v1264
        %1271 = vst.msk [vmem:[#allocation5] sm:$0xff] %vm418, %v1270
        %v1272 = vld [vmem:[#allocation5] sm:$0xff]
        %v1273 = vld [vmem:[%s8] sm:$0x1]
        %v1275 = vlaneseq
        %v1276 = vshrl.u32 %v1275, 7
        %v1277 = vsub.s32 0, %v1276
        %v1278 = vrot.slane %v1273, %v1277
        %v1280 = vadd.f32 %v1272, %v1278
        %1281 = vst.msk [vmem:[%s391] sm:$0xff] %vm418, %v1280
        %s1282 = sand.u32 %s230, 1
        %s1283 = scalar_lea.sflag [#allocation8], %s1282
        %s1284 = sand.u32 %s230, 1
        %s1285 = smul.addr %s1284, 8
        %s1286 = scalar_lea.vmem [#allocation14], %s1285
        // Predicated region
        $region73: #{tpu_custom_call.1} parent=55 // pred_check
          %p1287 = pneg %p240
        $region74: #{tpu_custom_call.1} parent=55 // pred_check_branch
          %1289 = sbr.rel (%p1287) target = $region76
        $region75: #{tpu_custom_call.1} parent=55 // pred_region
          %s1291 = ssub.s32 128, 128
          %1292 = vsyncadd %s1283, %s1291
          %s1293 = smul.addr %s28, 128
          %s1294 = scalar_lea.hbm %s9, %s1293
          %s1296 = sshll.u32 %s1286, 4
          %s1297 = int_to_ptr.vmem [resolvable:$true] %s1296
          %1299 = dma.vmem_to_hbm [thread:$0]  %s1297, 128, %s1294, %s1283
        $region76: #{tpu_custom_call.1} parent=55 // pred_fallthru
          _
      $region56: #{tpu_custom_call.1} parent=5 // pred_fallthru
        _
      %p1300 = scmp.le.s32.totalorder 2, %s23
      // Predicated region
      $region77: #{tpu_custom_call.1} parent=5 // pred_check
        %p1301 = pneg %p1300
      $region78: #{tpu_custom_call.1} parent=5 // pred_check_branch
        %1303 = sbr.rel (%p1301) target = $region80
      $region79: #{tpu_custom_call.1} parent=5 // pred_region
        %s1304 = ssub.s32 %s23, 2
        // Predicated region
        $region81: #{tpu_custom_call.1} parent=79 // pred_check
          %p1305 = pneg %p246
        $region82: #{tpu_custom_call.1} parent=79 // pred_check_branch
          %1307 = sbr.rel (%p1305) target = $region84
        $region83: #{tpu_custom_call.1} parent=79 // pred_region
          %s1308 = sand.u32 %s231, 1
          %s1309 = scalar_lea.sflag [#allocation8], %s1308
          %s1310 = sand.u32 %s231, 1
          %s1311 = smul.addr %s1310, 8
          %s1312 = scalar_lea.vmem [#allocation14], %s1311
          %1313 = dma.done %s1309, 128
        $region84: #{tpu_custom_call.1} parent=79 // pred_fallthru
          _
      $region80: #{tpu_custom_call.1} parent=5 // pred_fallthru
        _
    $region6: #{tpu_custom_call.1} parent=1 // loop_footer
      %s27 = sadd.s32 1, %s23
    $region7: #{tpu_custom_call.1} parent=1 // loop_footer_branch
      %22 = sbr.rel target = $region3
    $region8: #{tpu_custom_call.1} parent=1 // loop_exit
      _
    %1314 = vsyncpa [#allocation7], 1
    %s1315 = scalar_lea.sflag [#allocation7], 1
    %1316 = vsyncpa %s1315, 1
    %1317 = vsyncpa [#allocation10], 1
    %1318 = vsyncpa [#allocation13], 1
    %1319 = vsyncpa [#allocation8], 1
    %s1320 = scalar_lea.sflag [#allocation8], 1
    %1321 = vsyncpa %s1320, 1

</llo_original>
